<compile_context>
chip_gen: v6e
topology: v6e:2x2x1
jax: 0.10.0
libtpu: 0.0.40
codegen_flags: <defaults>
</compile_context>

<pallas_src>
import math

import jax
import jax.numpy as jnp
from jax.experimental import pallas as pl
from jax.experimental.pallas import tpu as pltpu


# ----------------------------------------------------------------------------
# helpers mirroring the PyTorch module
# ----------------------------------------------------------------------------
def cal_linear_num(layer_num, num_timesteps_input):
    return num_timesteps_input + 4 * (2 ** layer_num - 1)


def cal_channel_size(layers, timesteps_input):
    return [timesteps_input] * (layers - 1) + [timesteps_input - 2]


# ----------------------------------------------------------------------------
# static configuration (small shapes consistent with the module: Linear(192,.))
# ----------------------------------------------------------------------------
B = 2          # batch
N = 8          # num_nodes == max_node_number
T = 8          # timesteps_input
F = 1          # features
S = 4          # spatial_channels
CO = 32        # out_channels of the TCN linear
T_OUT = 3      # timesteps_output
TCN_LAYERS = 5
KS = 3         # temporal kernel size

CPAD = 8                       # per-node channel slots, padded 4/6 -> 8
NC = N * CPAD                  # 64
BNC = B * NC                   # 128 lanes: batch-major, node, channel-minor
BN = B * N                     # 16
CC = T - 2                     # valid channels out of the conv stack (6)

DIL = [2 ** (j // 2) for j in range(2 * TCN_LAYERS)]       # [1,1,2,2,4,4,8,8,16,16]
_lens = [T]
for _d in DIL:
    _lens.append(_lens[-1] + 2 * _d)
LIN = _lens[:-1]               # conv input lengths
LOUT = _lens[1:]               # conv output lengths
LF = LOUT[-1]                  # 132 == cal_linear_num(5, T)
assert LF == cal_linear_num(TCN_LAYERS, T)
assert CC * CO == 192          # the module hardcodes nn.Linear(192, timesteps_output)

HALO = 32                                   # = 2 * max dilation, sublane aligned
LTIME = ((HALO + LF + 7) // 8) * 8          # 168 rows: halo + longest activation


# ----------------------------------------------------------------------------
# Single fused kernel: graph mix + Theta1 + leaky_relu + 10 dilated convs +
#   TCN time-linear + BatchNorm2d(num_nodes) + sigmoid + Linear(192, T_OUT)
# ----------------------------------------------------------------------------
def _treecns_kernel(xcat_ref, gbig_ref, wcat_ref, bexp_ref, wlinT_ref, blinT_ref,
                    gamma_ref, beta_ref, wlane_ref, bf_ref,
                    selN_ref, selNT_ref, selBNT_ref,
                    o_ref, buf_a, buf_b):
    f32 = jnp.float32

    # Zero both ping-pong buffers once: the 32-row front halo and the rows
    # beyond each layer's output serve as the symmetric conv padding for every
    # later layer (write lengths only grow, so trailing zeros stay valid).
    buf_a[...] = jnp.zeros((LTIME, BNC), f32)
    buf_b[...] = jnp.zeros((LTIME, BNC), f32)

    # Graph mixing + Theta1 + leaky_relu, batch folded into lanes:
    #   h0[t, b*64 + n*8 + s] = leaky_relu(sum_j X[b,j,t,0]*tg[n,j]*theta[s])
    h0 = jnp.dot(xcat_ref[...], gbig_ref[...], preferred_element_type=f32)  # (T, 128)
    h0 = jnp.where(h0 >= 0.0, h0, 0.01 * h0)
    buf_a[HALO:HALO + T, :] = h0

    # 10 dilated temporal convs (kernel 3, weights shared across batch/node,
    # block-diagonal kron(I_16, w)).  The 3 taps are fused into one matmul by
    # concatenating the shifted slices along the contraction axis.
    bufs = (buf_a, buf_b)
    for j in range(2 * TCN_LAYERS):
        src = bufs[j % 2]
        dst = bufs[(j + 1) % 2]
        d = DIL[j]
        lout = LOUT[j]
        base = HALO - 2 * d                              # implicit front padding
        lhs = jnp.concatenate(
            [src[base:base + lout, :],
             src[base + d:base + d + lout, :],
             src[base + 2 * d:base + 2 * d + lout, :]],
            axis=1)                                      # (lout, 3*128)
        acc = jnp.dot(lhs, wcat_ref[j], preferred_element_type=f32)     # (lout, 128)
        acc = jnp.maximum(acc + bexp_ref[j:j + 1, :], 0.0)              # bias + ReLU
        dst[HALO:HALO + lout, :] = acc                   # aligned store, exact rows

    # TCN linear over the time axis: t3t[co, lane] = sum_t Wlin[t,co]*h[t,lane]+b
    hfin = bufs[(2 * TCN_LAYERS) % 2]
    t3t = jnp.dot(wlinT_ref[...], hfin[HALO:HALO + LF, :],
                  preferred_element_type=f32) + blinT_ref[...]          # (CO, 128)

    # BatchNorm2d(num_nodes), training-mode batch statistics over (B, CC, CO).
    cnt = float(B * CC * CO)                                            # 384
    s1 = jnp.sum(t3t, axis=0, keepdims=True)                            # (1, 128)
    s2 = jnp.sum(t3t * t3t, axis=0, keepdims=True)                      # (1, 128)
    s1n = jnp.dot(s1, selN_ref[...], preferred_element_type=f32)        # (1, 8)
    s2n = jnp.dot(s2, selN_ref[...], preferred_element_type=f32)        # (1, 8)
    mean = s1n / cnt
    var = s2n / cnt - mean * mean                                       # biased var
    inv = jax.lax.rsqrt(var + 1e-5)
    scale_n = gamma_ref[...] * inv                                      # (1, 8)
    shift_n = beta_ref[...] - mean * scale_n                            # (1, 8)
    scale_l = jnp.dot(scale_n, selNT_ref[...], preferred_element_type=f32)  # (1,128)
    shift_l = jnp.dot(shift_n, selNT_ref[...], preferred_element_type=f32)  # (1,128)
    y = jax.nn.sigmoid(t3t * scale_l + shift_l)                         # (CO, 128)

    # fully: Linear(192, T_OUT).  Contract co on sublanes with lane-broadcast
    # weights (zero on padded channels), then sum each (b, n) lane group.
    r = jnp.concatenate(
        [jnp.sum(y * wlane_ref[t], axis=0, keepdims=True) for t in range(T_OUT)],
        axis=0)                                                         # (3, 128)
    o_ref[...] = jnp.dot(r, selBNT_ref[...],
                         preferred_element_type=f32) + bf_ref[...]      # (3, 16)


def treecns_pallas(xcat, gbig, packed):
    return pl.pallas_call(
        _treecns_kernel,
        out_shape=jax.ShapeDtypeStruct((T_OUT, BN), jnp.float32),
        scratch_shapes=[
            pltpu.VMEM((LTIME, BNC), jnp.float32),
            pltpu.VMEM((LTIME, BNC), jnp.float32),
        ],
    )(xcat, gbig, packed["wcat"], packed["bexp"], packed["wlinT"],
      packed["blinT"], packed["gamma"], packed["beta"], packed["wlane"],
      packed["bf"], packed["selN"], packed["selNT"], packed["selBNT"])


# ----------------------------------------------------------------------------
# Parameter init (deterministic, synthetic, PyTorch-like shapes)
# ----------------------------------------------------------------------------
def init_params(key):
    ks = list(jax.random.split(key, 64))

    def uniform(shape, scale):
        return jax.random.uniform(ks.pop(), shape, jnp.float32,
                                  minval=-scale, maxval=scale)

    params = {}
    params["theta1"] = uniform((1, S), 1.0 / math.sqrt(S))

    channel_size = cal_channel_size(TCN_LAYERS, T)            # [8, 8, 8, 8, 6]
    convs = []
    in_ch = S
    for i in range(TCN_LAYERS):
        out_ch = channel_size[i]
        for _ in range(2):
            fan_in = in_ch * KS
            w = uniform((KS, in_ch, out_ch), 1.0 / math.sqrt(fan_in))
            bb = uniform((out_ch,), 1.0 / math.sqrt(fan_in))
            convs.append((w, bb))
            in_ch = out_ch
    params["tcn_convs"] = convs

    params["tcn_lin_w"] = uniform((LF, CO), 1.0 / math.sqrt(LF))
    params["tcn_lin_b"] = uniform((CO,), 1.0 / math.sqrt(LF))

    params["bn_gamma"] = jnp.ones((N,), jnp.float32)
    params["bn_beta"] = jnp.zeros((N,), jnp.float32)

    params["fully_w"] = uniform((CC * CO, T_OUT), 1.0 / math.sqrt(CC * CO))
    params["fully_b"] = uniform((T_OUT,), 1.0 / math.sqrt(CC * CO))
    return params


def pack_params(params):
    """Derive the kernel-ready (padded / block-diag / lane-broadcast) tensors."""
    # Theta1 padded to 8 channel slots; E[n', n*8+s] = delta(n,n') * theta[s]
    theta_pad = jnp.zeros((1, CPAD), jnp.float32).at[:, :S].set(params["theta1"])
    e_theta = jnp.kron(jnp.eye(N, dtype=jnp.float32), theta_pad)          # (N, 64)

    # Conv weights zero-padded to (10, 3, 8, 8)/(10, 8), block-diag over the
    # B*N = 16 lane groups, and the 3 taps stacked along the contraction axis.
    wp = jnp.zeros((2 * TCN_LAYERS, KS, CPAD, CPAD), jnp.float32)
    bp = jnp.zeros((2 * TCN_LAYERS, CPAD), jnp.float32)
    for j, (w, bb) in enumerate(params["tcn_convs"]):
        ci, co = w.shape[1], w.shape[2]
        wp = wp.at[j, :, :ci, :co].set(w)
        bp = bp.at[j, :co].set(bb)
    eye_bn = jnp.eye(BN, dtype=jnp.float32)
    wcat = jnp.einsum("pq,jkio->jkpiqo", eye_bn, wp).reshape(
        2 * TCN_LAYERS, KS * BNC, BNC)                                    # (10,384,128)
    bexp = jnp.tile(bp, (1, BN))                                          # (10, 128)

    # BN / fully selector & lane-broadcast tensors (lane = b*64 + n*8 + c).
    lane = jnp.arange(BNC)
    lane_c = lane % CPAD
    lane_n = (lane // CPAD) % N
    lane_bn = lane // CPAD
    valid = (lane_c < CC).astype(jnp.float32)
    selN = (lane_n[:, None] == jnp.arange(N)[None, :]).astype(jnp.float32)
    selN = selN * valid[:, None]                                          # (128, 8)
    selNT = selN.T                                                        # (8, 128)
    selBNT = (lane_bn[:, None] == jnp.arange(BN)[None, :]).astype(jnp.float32)  # (128,16)

    # fully weights broadcast over lanes: wlane[t, co, b*64+n*8+c] = Wf[c*CO+co, t]
    wf3 = params["fully_w"].reshape(CC, CO, T_OUT)                        # [c, co, t]
    wlane_small = jnp.zeros((T_OUT, CO, CPAD), jnp.float32).at[:, :, :CC].set(
        jnp.transpose(wf3, (2, 1, 0)))                                    # [t, co, c]
    wlane = jnp.tile(wlane_small, (1, 1, BN))                             # (3, 32, 128)

    return {
        "e_theta": e_theta,
        "wcat": wcat,
        "bexp": bexp,
        "wlinT": params["tcn_lin_w"].T,                                   # (32, 132)
        "blinT": params["tcn_lin_b"].reshape(CO, 1),
        "gamma": params["bn_gamma"].reshape(1, N),
        "beta": params["bn_beta"].reshape(1, N),
        "wlane": wlane,
        "bf": params["fully_b"].reshape(T_OUT, 1),
        "selN": selN,
        "selNT": selNT,
        "selBNT": selBNT,
    }


# ----------------------------------------------------------------------------
# Full forward (one pallas_call + tiny weight/layout glue)
# ----------------------------------------------------------------------------
def tree_cns_forward(packed, NATree, X):
    # TODO(synk): TreeGradient source unavailable -> deterministic row-softmax stand-in.
    tg = jax.nn.softmax(NATree.astype(jnp.float32), axis=-1)              # (N, N)
    # fold tree mixing and Theta1 into one operand; batch block-diag to 128 lanes
    g = jnp.dot(tg.T, packed["e_theta"])                                  # (N, 64)
    gbig = jnp.kron(jnp.eye(B, dtype=jnp.float32), g)                     # (16, 128)
    xcat = jnp.transpose(X[..., 0], (2, 0, 1)).reshape(T, B * N)          # (T, 16)

    out_mat = treecns_pallas(xcat, gbig, packed)                          # (3, 16)
    return jnp.transpose(out_mat).reshape(B, N, T_OUT)                    # (B, N, 3)


# ----------------------------------------------------------------------------
if __name__ == "__main__":
    key = jax.random.PRNGKey(0)
    k_par, k_na, k_x = jax.random.split(key, 3)

    params = init_params(k_par)
    packed = pack_params(params)
    NATree = jax.random.uniform(k_na, (N, N), jnp.float32)   # max_node_number == N
    X = jax.random.normal(k_x, (B, N, T, F), jnp.float32)

    fwd = jax.jit(tree_cns_forward)
    out = jax.block_until_ready(fwd(packed, NATree, X))

    assert out.shape == (B, N, T_OUT)
    assert bool(jnp.all(jnp.isfinite(out)))
    print("KERNEL_OK")
</pallas_src>

<mosaic_0001>
module attributes {stable_mosaic.version = 11 : i64} {
  func.func @_treecns_kernel(%arg0: memref<8x16xf32, #tpu.memory_space<vmem>>, %arg1: memref<16x128xf32, #tpu.memory_space<vmem>>, %arg2: memref<10x384x128xf32, #tpu.memory_space<vmem>>, %arg3: memref<10x128xf32, #tpu.memory_space<vmem>>, %arg4: memref<32x132xf32, #tpu.memory_space<vmem>>, %arg5: memref<32x1xf32, #tpu.memory_space<vmem>>, %arg6: memref<1x8xf32, #tpu.memory_space<vmem>>, %arg7: memref<1x8xf32, #tpu.memory_space<vmem>>, %arg8: memref<3x32x128xf32, #tpu.memory_space<vmem>>, %arg9: memref<3x1xf32, #tpu.memory_space<vmem>>, %arg10: memref<128x8xf32, #tpu.memory_space<vmem>>, %arg11: memref<8x128xf32, #tpu.memory_space<vmem>>, %arg12: memref<128x16xf32, #tpu.memory_space<vmem>>, %arg13: memref<3x16xf32, #tpu.memory_space<vmem>>, %arg14: memref<168x128xf32, #tpu.memory_space<vmem>>, %arg15: memref<168x128xf32, #tpu.memory_space<vmem>>) attributes {dimension_semantics = [], scalar_prefetch = 0 : i64, scratch_operands = 2 : i64, tpu.core_type = #tpu.core_type<tc>} {
    %cst = arith.constant 0.000000e+00 : f32
    %0 = vector.broadcast %cst : f32 to vector<168x128xf32>
    %c0 = arith.constant 0 : index
    %c0_0 = arith.constant 0 : index
    %1 = vector.load %arg14[%c0, %c0_0] : memref<168x128xf32, #tpu.memory_space<vmem>>, vector<168x128xf32>
    tpu.vector_store %arg14[%c0, %c0_0], %0 {strides = array<i32>} : memref<168x128xf32, #tpu.memory_space<vmem>>, vector<168x128xf32>,
    %cst_1 = arith.constant 0.000000e+00 : f32
    %2 = vector.broadcast %cst_1 : f32 to vector<168x128xf32>
    %c0_2 = arith.constant 0 : index
    %c0_3 = arith.constant 0 : index
    %3 = vector.load %arg15[%c0_2, %c0_3] : memref<168x128xf32, #tpu.memory_space<vmem>>, vector<168x128xf32>
    tpu.vector_store %arg15[%c0_2, %c0_3], %2 {strides = array<i32>} : memref<168x128xf32, #tpu.memory_space<vmem>>, vector<168x128xf32>,
    %c0_4 = arith.constant 0 : index
    %c0_5 = arith.constant 0 : index
    %4 = vector.load %arg0[%c0_4, %c0_5] : memref<8x16xf32, #tpu.memory_space<vmem>>, vector<8x16xf32>
    %c0_6 = arith.constant 0 : index
    %c0_7 = arith.constant 0 : index
    %5 = vector.load %arg1[%c0_6, %c0_7] : memref<16x128xf32, #tpu.memory_space<vmem>>, vector<16x128xf32>
    %cst_8 = arith.constant dense<0.000000e+00> : vector<8x128xf32>
    %6 = tpu.matmul %4, %5, %cst_8 {dimension_numbers = #tpu.dot_dimension_numbers<[1], [0], [0], [1], [0, 0, 1, 1], [], []>} : vector<8x16xf32>, vector<16x128xf32>, vector<8x128xf32> -> vector<8x128xf32>
    %cst_9 = arith.constant 0.000000e+00 : f32
    %7 = vector.broadcast %cst_9 : f32 to vector<8x128xf32>
    %8 = arith.cmpf oge, %6, %7 : vector<8x128xf32>
    %cst_10 = arith.constant 0.00999999977 : f32
    %9 = vector.broadcast %cst_10 : f32 to vector<8x128xf32>
    %10 = arith.mulf %9, %6 : vector<8x128xf32>
    %11 = arith.select %8, %6, %10 : vector<8x128xi1>, vector<8x128xf32>
    %c32 = arith.constant 32 : index
    %c0_11 = arith.constant 0 : index
    %12 = vector.load %arg14[%c32, %c0_11] : memref<168x128xf32, #tpu.memory_space<vmem>>, vector<8x128xf32>
    tpu.vector_store %arg14[%c32, %c0_11], %11 {strides = array<i32>} : memref<168x128xf32, #tpu.memory_space<vmem>>, vector<8x128xf32>,
    %c30 = arith.constant 30 : index
    %c0_12 = arith.constant 0 : index
    %13 = vector.load %arg14[%c30, %c0_12] : memref<168x128xf32, #tpu.memory_space<vmem>>, vector<10x128xf32>
    %c31 = arith.constant 31 : index
    %c0_13 = arith.constant 0 : index
    %14 = vector.load %arg14[%c31, %c0_13] : memref<168x128xf32, #tpu.memory_space<vmem>>, vector<10x128xf32>
    %c32_14 = arith.constant 32 : index
    %c0_15 = arith.constant 0 : index
    %15 = vector.load %arg14[%c32_14, %c0_15] : memref<168x128xf32, #tpu.memory_space<vmem>>, vector<10x128xf32>
    %16 = tpu.concatenate %13, %14, %15 in 1 : vector<10x128xf32>, vector<10x128xf32>, vector<10x128xf32> -> vector<10x384xf32>
    %c0_16 = arith.constant 0 : index
    %c0_17 = arith.constant 0 : index
    %c0_18 = arith.constant 0 : index
    %17 = vector.load %arg2[%c0_16, %c0_17, %c0_18] : memref<10x384x128xf32, #tpu.memory_space<vmem>>, vector<1x384x128xf32>
    %18 = vector.shape_cast %17 : vector<1x384x128xf32> to vector<384x128xf32>
    %cst_19 = arith.constant dense<0.000000e+00> : vector<10x128xf32>
    %19 = tpu.matmul %16, %18, %cst_19 {dimension_numbers = #tpu.dot_dimension_numbers<[1], [0], [0], [1], [0, 0, 1, 1], [], []>} : vector<10x384xf32>, vector<384x128xf32>, vector<10x128xf32> -> vector<10x128xf32>
    %c0_20 = arith.constant 0 : index
    %c0_21 = arith.constant 0 : index
    %20 = vector.load %arg3[%c0_20, %c0_21] : memref<10x128xf32, #tpu.memory_space<vmem>>, vector<1x128xf32>
    %21 = vector.broadcast %20 : vector<1x128xf32> to vector<10x128xf32>
    %22 = arith.addf %19, %21 : vector<10x128xf32>
    %cst_22 = arith.constant 0.000000e+00 : f32
    %23 = vector.broadcast %cst_22 : f32 to vector<10x128xf32>
    %24 = arith.maximumf %22, %23 : vector<10x128xf32>
    %c32_23 = arith.constant 32 : index
    %c0_24 = arith.constant 0 : index
    %25 = vector.load %arg15[%c32_23, %c0_24] : memref<168x128xf32, #tpu.memory_space<vmem>>, vector<10x128xf32>
    tpu.vector_store %arg15[%c32_23, %c0_24], %24 {strides = array<i32>} : memref<168x128xf32, #tpu.memory_space<vmem>>, vector<10x128xf32>,
    %c30_25 = arith.constant 30 : index
    %c0_26 = arith.constant 0 : index
    %26 = vector.load %arg15[%c30_25, %c0_26] : memref<168x128xf32, #tpu.memory_space<vmem>>, vector<12x128xf32>
    %c31_27 = arith.constant 31 : index
    %c0_28 = arith.constant 0 : index
    %27 = vector.load %arg15[%c31_27, %c0_28] : memref<168x128xf32, #tpu.memory_space<vmem>>, vector<12x128xf32>
    %c32_29 = arith.constant 32 : index
    %c0_30 = arith.constant 0 : index
    %28 = vector.load %arg15[%c32_29, %c0_30] : memref<168x128xf32, #tpu.memory_space<vmem>>, vector<12x128xf32>
    %29 = tpu.concatenate %26, %27, %28 in 1 : vector<12x128xf32>, vector<12x128xf32>, vector<12x128xf32> -> vector<12x384xf32>
    %c1 = arith.constant 1 : index
    %c0_31 = arith.constant 0 : index
    %c0_32 = arith.constant 0 : index
    %30 = vector.load %arg2[%c1, %c0_31, %c0_32] : memref<10x384x128xf32, #tpu.memory_space<vmem>>, vector<1x384x128xf32>
    %31 = vector.shape_cast %30 : vector<1x384x128xf32> to vector<384x128xf32>
    %cst_33 = arith.constant dense<0.000000e+00> : vector<12x128xf32>
    %32 = tpu.matmul %29, %31, %cst_33 {dimension_numbers = #tpu.dot_dimension_numbers<[1], [0], [0], [1], [0, 0, 1, 1], [], []>} : vector<12x384xf32>, vector<384x128xf32>, vector<12x128xf32> -> vector<12x128xf32>
    %c1_34 = arith.constant 1 : index
    %c0_35 = arith.constant 0 : index
    %33 = vector.load %arg3[%c1_34, %c0_35] : memref<10x128xf32, #tpu.memory_space<vmem>>, vector<1x128xf32>
    %34 = vector.broadcast %33 : vector<1x128xf32> to vector<12x128xf32>
    %35 = arith.addf %32, %34 : vector<12x128xf32>
    %cst_36 = arith.constant 0.000000e+00 : f32
    %36 = vector.broadcast %cst_36 : f32 to vector<12x128xf32>
    %37 = arith.maximumf %35, %36 : vector<12x128xf32>
    %c32_37 = arith.constant 32 : index
    %c0_38 = arith.constant 0 : index
    %38 = vector.load %arg14[%c32_37, %c0_38] : memref<168x128xf32, #tpu.memory_space<vmem>>, vector<12x128xf32>
    tpu.vector_store %arg14[%c32_37, %c0_38], %37 {strides = array<i32>} : memref<168x128xf32, #tpu.memory_space<vmem>>, vector<12x128xf32>,
    %c28 = arith.constant 28 : index
    %c0_39 = arith.constant 0 : index
    %39 = vector.load %arg14[%c28, %c0_39] : memref<168x128xf32, #tpu.memory_space<vmem>>, vector<16x128xf32>
    %c30_40 = arith.constant 30 : index
    %c0_41 = arith.constant 0 : index
    %40 = vector.load %arg14[%c30_40, %c0_41] : memref<168x128xf32, #tpu.memory_space<vmem>>, vector<16x128xf32>
    %c32_42 = arith.constant 32 : index
    %c0_43 = arith.constant 0 : index
    %41 = vector.load %arg14[%c32_42, %c0_43] : memref<168x128xf32, #tpu.memory_space<vmem>>, vector<16x128xf32>
    %42 = tpu.concatenate %39, %40, %41 in 1 : vector<16x128xf32>, vector<16x128xf32>, vector<16x128xf32> -> vector<16x384xf32>
    %c2 = arith.constant 2 : index
    %c0_44 = arith.constant 0 : index
    %c0_45 = arith.constant 0 : index
    %43 = vector.load %arg2[%c2, %c0_44, %c0_45] : memref<10x384x128xf32, #tpu.memory_space<vmem>>, vector<1x384x128xf32>
    %44 = vector.shape_cast %43 : vector<1x384x128xf32> to vector<384x128xf32>
    %cst_46 = arith.constant dense<0.000000e+00> : vector<16x128xf32>
    %45 = tpu.matmul %42, %44, %cst_46 {dimension_numbers = #tpu.dot_dimension_numbers<[1], [0], [0], [1], [0, 0, 1, 1], [], []>} : vector<16x384xf32>, vector<384x128xf32>, vector<16x128xf32> -> vector<16x128xf32>
    %c2_47 = arith.constant 2 : index
    %c0_48 = arith.constant 0 : index
    %46 = vector.load %arg3[%c2_47, %c0_48] : memref<10x128xf32, #tpu.memory_space<vmem>>, vector<1x128xf32>
    %47 = vector.broadcast %46 : vector<1x128xf32> to vector<16x128xf32>
    %48 = arith.addf %45, %47 : vector<16x128xf32>
    %cst_49 = arith.constant 0.000000e+00 : f32
    %49 = vector.broadcast %cst_49 : f32 to vector<16x128xf32>
    %50 = arith.maximumf %48, %49 : vector<16x128xf32>
    %c32_50 = arith.constant 32 : index
    %c0_51 = arith.constant 0 : index
    %51 = vector.load %arg15[%c32_50, %c0_51] : memref<168x128xf32, #tpu.memory_space<vmem>>, vector<16x128xf32>
    tpu.vector_store %arg15[%c32_50, %c0_51], %50 {strides = array<i32>} : memref<168x128xf32, #tpu.memory_space<vmem>>, vector<16x128xf32>,
    %c28_52 = arith.constant 28 : index
    %c0_53 = arith.constant 0 : index
    %52 = vector.load %arg15[%c28_52, %c0_53] : memref<168x128xf32, #tpu.memory_space<vmem>>, vector<20x128xf32>
    %c30_54 = arith.constant 30 : index
    %c0_55 = arith.constant 0 : index
    %53 = vector.load %arg15[%c30_54, %c0_55] : memref<168x128xf32, #tpu.memory_space<vmem>>, vector<20x128xf32>
    %c32_56 = arith.constant 32 : index
    %c0_57 = arith.constant 0 : index
    %54 = vector.load %arg15[%c32_56, %c0_57] : memref<168x128xf32, #tpu.memory_space<vmem>>, vector<20x128xf32>
    %55 = tpu.concatenate %52, %53, %54 in 1 : vector<20x128xf32>, vector<20x128xf32>, vector<20x128xf32> -> vector<20x384xf32>
    %c3 = arith.constant 3 : index
    %c0_58 = arith.constant 0 : index
    %c0_59 = arith.constant 0 : index
    %56 = vector.load %arg2[%c3, %c0_58, %c0_59] : memref<10x384x128xf32, #tpu.memory_space<vmem>>, vector<1x384x128xf32>
    %57 = vector.shape_cast %56 : vector<1x384x128xf32> to vector<384x128xf32>
    %cst_60 = arith.constant dense<0.000000e+00> : vector<20x128xf32>
    %58 = tpu.matmul %55, %57, %cst_60 {dimension_numbers = #tpu.dot_dimension_numbers<[1], [0], [0], [1], [0, 0, 1, 1], [], []>} : vector<20x384xf32>, vector<384x128xf32>, vector<20x128xf32> -> vector<20x128xf32>
    %c3_61 = arith.constant 3 : index
    %c0_62 = arith.constant 0 : index
    %59 = vector.load %arg3[%c3_61, %c0_62] : memref<10x128xf32, #tpu.memory_space<vmem>>, vector<1x128xf32>
    %60 = vector.broadcast %59 : vector<1x128xf32> to vector<20x128xf32>
    %61 = arith.addf %58, %60 : vector<20x128xf32>
    %cst_63 = arith.constant 0.000000e+00 : f32
    %62 = vector.broadcast %cst_63 : f32 to vector<20x128xf32>
    %63 = arith.maximumf %61, %62 : vector<20x128xf32>
    %c32_64 = arith.constant 32 : index
    %c0_65 = arith.constant 0 : index
    %64 = vector.load %arg14[%c32_64, %c0_65] : memref<168x128xf32, #tpu.memory_space<vmem>>, vector<20x128xf32>
    tpu.vector_store %arg14[%c32_64, %c0_65], %63 {strides = array<i32>} : memref<168x128xf32, #tpu.memory_space<vmem>>, vector<20x128xf32>,
    %c24 = arith.constant 24 : index
    %c0_66 = arith.constant 0 : index
    %65 = vector.load %arg14[%c24, %c0_66] : memref<168x128xf32, #tpu.memory_space<vmem>>, vector<28x128xf32>
    %c28_67 = arith.constant 28 : index
    %c0_68 = arith.constant 0 : index
    %66 = vector.load %arg14[%c28_67, %c0_68] : memref<168x128xf32, #tpu.memory_space<vmem>>, vector<28x128xf32>
    %c32_69 = arith.constant 32 : index
    %c0_70 = arith.constant 0 : index
    %67 = vector.load %arg14[%c32_69, %c0_70] : memref<168x128xf32, #tpu.memory_space<vmem>>, vector<28x128xf32>
    %68 = tpu.concatenate %65, %66, %67 in 1 : vector<28x128xf32>, vector<28x128xf32>, vector<28x128xf32> -> vector<28x384xf32>
    %c4 = arith.constant 4 : index
    %c0_71 = arith.constant 0 : index
    %c0_72 = arith.constant 0 : index
    %69 = vector.load %arg2[%c4, %c0_71, %c0_72] : memref<10x384x128xf32, #tpu.memory_space<vmem>>, vector<1x384x128xf32>
    %70 = vector.shape_cast %69 : vector<1x384x128xf32> to vector<384x128xf32>
    %cst_73 = arith.constant dense<0.000000e+00> : vector<28x128xf32>
    %71 = tpu.matmul %68, %70, %cst_73 {dimension_numbers = #tpu.dot_dimension_numbers<[1], [0], [0], [1], [0, 0, 1, 1], [], []>} : vector<28x384xf32>, vector<384x128xf32>, vector<28x128xf32> -> vector<28x128xf32>
    %c4_74 = arith.constant 4 : index
    %c0_75 = arith.constant 0 : index
    %72 = vector.load %arg3[%c4_74, %c0_75] : memref<10x128xf32, #tpu.memory_space<vmem>>, vector<1x128xf32>
    %73 = vector.broadcast %72 : vector<1x128xf32> to vector<28x128xf32>
    %74 = arith.addf %71, %73 : vector<28x128xf32>
    %cst_76 = arith.constant 0.000000e+00 : f32
    %75 = vector.broadcast %cst_76 : f32 to vector<28x128xf32>
    %76 = arith.maximumf %74, %75 : vector<28x128xf32>
    %c32_77 = arith.constant 32 : index
    %c0_78 = arith.constant 0 : index
    %77 = vector.load %arg15[%c32_77, %c0_78] : memref<168x128xf32, #tpu.memory_space<vmem>>, vector<28x128xf32>
    tpu.vector_store %arg15[%c32_77, %c0_78], %76 {strides = array<i32>} : memref<168x128xf32, #tpu.memory_space<vmem>>, vector<28x128xf32>,
    %c24_79 = arith.constant 24 : index
    %c0_80 = arith.constant 0 : index
    %78 = vector.load %arg15[%c24_79, %c0_80] : memref<168x128xf32, #tpu.memory_space<vmem>>, vector<36x128xf32>
    %c28_81 = arith.constant 28 : index
    %c0_82 = arith.constant 0 : index
    %79 = vector.load %arg15[%c28_81, %c0_82] : memref<168x128xf32, #tpu.memory_space<vmem>>, vector<36x128xf32>
    %c32_83 = arith.constant 32 : index
    %c0_84 = arith.constant 0 : index
    %80 = vector.load %arg15[%c32_83, %c0_84] : memref<168x128xf32, #tpu.memory_space<vmem>>, vector<36x128xf32>
    %81 = tpu.concatenate %78, %79, %80 in 1 : vector<36x128xf32>, vector<36x128xf32>, vector<36x128xf32> -> vector<36x384xf32>
    %c5 = arith.constant 5 : index
    %c0_85 = arith.constant 0 : index
    %c0_86 = arith.constant 0 : index
    %82 = vector.load %arg2[%c5, %c0_85, %c0_86] : memref<10x384x128xf32, #tpu.memory_space<vmem>>, vector<1x384x128xf32>
    %83 = vector.shape_cast %82 : vector<1x384x128xf32> to vector<384x128xf32>
    %cst_87 = arith.constant dense<0.000000e+00> : vector<36x128xf32>
    %84 = tpu.matmul %81, %83, %cst_87 {dimension_numbers = #tpu.dot_dimension_numbers<[1], [0], [0], [1], [0, 0, 1, 1], [], []>} : vector<36x384xf32>, vector<384x128xf32>, vector<36x128xf32> -> vector<36x128xf32>
    %c5_88 = arith.constant 5 : index
    %c0_89 = arith.constant 0 : index
    %85 = vector.load %arg3[%c5_88, %c0_89] : memref<10x128xf32, #tpu.memory_space<vmem>>, vector<1x128xf32>
    %86 = vector.broadcast %85 : vector<1x128xf32> to vector<36x128xf32>
    %87 = arith.addf %84, %86 : vector<36x128xf32>
    %cst_90 = arith.constant 0.000000e+00 : f32
    %88 = vector.broadcast %cst_90 : f32 to vector<36x128xf32>
    %89 = arith.maximumf %87, %88 : vector<36x128xf32>
    %c32_91 = arith.constant 32 : index
    %c0_92 = arith.constant 0 : index
    %90 = vector.load %arg14[%c32_91, %c0_92] : memref<168x128xf32, #tpu.memory_space<vmem>>, vector<36x128xf32>
    tpu.vector_store %arg14[%c32_91, %c0_92], %89 {strides = array<i32>} : memref<168x128xf32, #tpu.memory_space<vmem>>, vector<36x128xf32>,
    %c16 = arith.constant 16 : index
    %c0_93 = arith.constant 0 : index
    %91 = vector.load %arg14[%c16, %c0_93] : memref<168x128xf32, #tpu.memory_space<vmem>>, vector<52x128xf32>
    %c24_94 = arith.constant 24 : index
    %c0_95 = arith.constant 0 : index
    %92 = vector.load %arg14[%c24_94, %c0_95] : memref<168x128xf32, #tpu.memory_space<vmem>>, vector<52x128xf32>
    %c32_96 = arith.constant 32 : index
    %c0_97 = arith.constant 0 : index
    %93 = vector.load %arg14[%c32_96, %c0_97] : memref<168x128xf32, #tpu.memory_space<vmem>>, vector<52x128xf32>
    %94 = tpu.concatenate %91, %92, %93 in 1 : vector<52x128xf32>, vector<52x128xf32>, vector<52x128xf32> -> vector<52x384xf32>
    %c6 = arith.constant 6 : index
    %c0_98 = arith.constant 0 : index
    %c0_99 = arith.constant 0 : index
    %95 = vector.load %arg2[%c6, %c0_98, %c0_99] : memref<10x384x128xf32, #tpu.memory_space<vmem>>, vector<1x384x128xf32>
    %96 = vector.shape_cast %95 : vector<1x384x128xf32> to vector<384x128xf32>
    %cst_100 = arith.constant dense<0.000000e+00> : vector<52x128xf32>
    %97 = tpu.matmul %94, %96, %cst_100 {dimension_numbers = #tpu.dot_dimension_numbers<[1], [0], [0], [1], [0, 0, 1, 1], [], []>} : vector<52x384xf32>, vector<384x128xf32>, vector<52x128xf32> -> vector<52x128xf32>
    %c6_101 = arith.constant 6 : index
    %c0_102 = arith.constant 0 : index
    %98 = vector.load %arg3[%c6_101, %c0_102] : memref<10x128xf32, #tpu.memory_space<vmem>>, vector<1x128xf32>
    %99 = vector.broadcast %98 : vector<1x128xf32> to vector<52x128xf32>
    %100 = arith.addf %97, %99 : vector<52x128xf32>
    %cst_103 = arith.constant 0.000000e+00 : f32
    %101 = vector.broadcast %cst_103 : f32 to vector<52x128xf32>
    %102 = arith.maximumf %100, %101 : vector<52x128xf32>
    %c32_104 = arith.constant 32 : index
    %c0_105 = arith.constant 0 : index
    %103 = vector.load %arg15[%c32_104, %c0_105] : memref<168x128xf32, #tpu.memory_space<vmem>>, vector<52x128xf32>
    tpu.vector_store %arg15[%c32_104, %c0_105], %102 {strides = array<i32>} : memref<168x128xf32, #tpu.memory_space<vmem>>, vector<52x128xf32>,
    %c16_106 = arith.constant 16 : index
    %c0_107 = arith.constant 0 : index
    %104 = vector.load %arg15[%c16_106, %c0_107] : memref<168x128xf32, #tpu.memory_space<vmem>>, vector<68x128xf32>
    %c24_108 = arith.constant 24 : index
    %c0_109 = arith.constant 0 : index
    %105 = vector.load %arg15[%c24_108, %c0_109] : memref<168x128xf32, #tpu.memory_space<vmem>>, vector<68x128xf32>
    %c32_110 = arith.constant 32 : index
    %c0_111 = arith.constant 0 : index
    %106 = vector.load %arg15[%c32_110, %c0_111] : memref<168x128xf32, #tpu.memory_space<vmem>>, vector<68x128xf32>
    %107 = tpu.concatenate %104, %105, %106 in 1 : vector<68x128xf32>, vector<68x128xf32>, vector<68x128xf32> -> vector<68x384xf32>
    %c7 = arith.constant 7 : index
    %c0_112 = arith.constant 0 : index
    %c0_113 = arith.constant 0 : index
    %108 = vector.load %arg2[%c7, %c0_112, %c0_113] : memref<10x384x128xf32, #tpu.memory_space<vmem>>, vector<1x384x128xf32>
    %109 = vector.shape_cast %108 : vector<1x384x128xf32> to vector<384x128xf32>
    %cst_114 = arith.constant dense<0.000000e+00> : vector<68x128xf32>
    %110 = tpu.matmul %107, %109, %cst_114 {dimension_numbers = #tpu.dot_dimension_numbers<[1], [0], [0], [1], [0, 0, 1, 1], [], []>} : vector<68x384xf32>, vector<384x128xf32>, vector<68x128xf32> -> vector<68x128xf32>
    %c7_115 = arith.constant 7 : index
    %c0_116 = arith.constant 0 : index
    %111 = vector.load %arg3[%c7_115, %c0_116] : memref<10x128xf32, #tpu.memory_space<vmem>>, vector<1x128xf32>
    %112 = vector.broadcast %111 : vector<1x128xf32> to vector<68x128xf32>
    %113 = arith.addf %110, %112 : vector<68x128xf32>
    %cst_117 = arith.constant 0.000000e+00 : f32
    %114 = vector.broadcast %cst_117 : f32 to vector<68x128xf32>
    %115 = arith.maximumf %113, %114 : vector<68x128xf32>
    %c32_118 = arith.constant 32 : index
    %c0_119 = arith.constant 0 : index
    %116 = vector.load %arg14[%c32_118, %c0_119] : memref<168x128xf32, #tpu.memory_space<vmem>>, vector<68x128xf32>
    tpu.vector_store %arg14[%c32_118, %c0_119], %115 {strides = array<i32>} : memref<168x128xf32, #tpu.memory_space<vmem>>, vector<68x128xf32>,
    %c0_120 = arith.constant 0 : index
    %c0_121 = arith.constant 0 : index
    %117 = vector.load %arg14[%c0_120, %c0_121] : memref<168x128xf32, #tpu.memory_space<vmem>>, vector<100x128xf32>
    %c16_122 = arith.constant 16 : index
    %c0_123 = arith.constant 0 : index
    %118 = vector.load %arg14[%c16_122, %c0_123] : memref<168x128xf32, #tpu.memory_space<vmem>>, vector<100x128xf32>
    %c32_124 = arith.constant 32 : index
    %c0_125 = arith.constant 0 : index
    %119 = vector.load %arg14[%c32_124, %c0_125] : memref<168x128xf32, #tpu.memory_space<vmem>>, vector<100x128xf32>
    %120 = tpu.concatenate %117, %118, %119 in 1 : vector<100x128xf32>, vector<100x128xf32>, vector<100x128xf32> -> vector<100x384xf32>
    %c8 = arith.constant 8 : index
    %c0_126 = arith.constant 0 : index
    %c0_127 = arith.constant 0 : index
    %121 = vector.load %arg2[%c8, %c0_126, %c0_127] : memref<10x384x128xf32, #tpu.memory_space<vmem>>, vector<1x384x128xf32>
    %122 = vector.shape_cast %121 : vector<1x384x128xf32> to vector<384x128xf32>
    %cst_128 = arith.constant dense<0.000000e+00> : vector<100x128xf32>
    %123 = tpu.matmul %120, %122, %cst_128 {dimension_numbers = #tpu.dot_dimension_numbers<[1], [0], [0], [1], [0, 0, 1, 1], [], []>} : vector<100x384xf32>, vector<384x128xf32>, vector<100x128xf32> -> vector<100x128xf32>
    %c8_129 = arith.constant 8 : index
    %c0_130 = arith.constant 0 : index
    %124 = vector.load %arg3[%c8_129, %c0_130] : memref<10x128xf32, #tpu.memory_space<vmem>>, vector<1x128xf32>
    %125 = vector.broadcast %124 : vector<1x128xf32> to vector<100x128xf32>
    %126 = arith.addf %123, %125 : vector<100x128xf32>
    %cst_131 = arith.constant 0.000000e+00 : f32
    %127 = vector.broadcast %cst_131 : f32 to vector<100x128xf32>
    %128 = arith.maximumf %126, %127 : vector<100x128xf32>
    %c32_132 = arith.constant 32 : index
    %c0_133 = arith.constant 0 : index
    %129 = vector.load %arg15[%c32_132, %c0_133] : memref<168x128xf32, #tpu.memory_space<vmem>>, vector<100x128xf32>
    tpu.vector_store %arg15[%c32_132, %c0_133], %128 {strides = array<i32>} : memref<168x128xf32, #tpu.memory_space<vmem>>, vector<100x128xf32>,
    %c0_134 = arith.constant 0 : index
    %c0_135 = arith.constant 0 : index
    %130 = vector.load %arg15[%c0_134, %c0_135] : memref<168x128xf32, #tpu.memory_space<vmem>>, vector<132x128xf32>
    %c16_136 = arith.constant 16 : index
    %c0_137 = arith.constant 0 : index
    %131 = vector.load %arg15[%c16_136, %c0_137] : memref<168x128xf32, #tpu.memory_space<vmem>>, vector<132x128xf32>
    %c32_138 = arith.constant 32 : index
    %c0_139 = arith.constant 0 : index
    %132 = vector.load %arg15[%c32_138, %c0_139] : memref<168x128xf32, #tpu.memory_space<vmem>>, vector<132x128xf32>
    %133 = tpu.concatenate %130, %131, %132 in 1 : vector<132x128xf32>, vector<132x128xf32>, vector<132x128xf32> -> vector<132x384xf32>
    %c9 = arith.constant 9 : index
    %c0_140 = arith.constant 0 : index
    %c0_141 = arith.constant 0 : index
    %134 = vector.load %arg2[%c9, %c0_140, %c0_141] : memref<10x384x128xf32, #tpu.memory_space<vmem>>, vector<1x384x128xf32>
    %135 = vector.shape_cast %134 : vector<1x384x128xf32> to vector<384x128xf32>
    %cst_142 = arith.constant dense<0.000000e+00> : vector<132x128xf32>
    %136 = tpu.matmul %133, %135, %cst_142 {dimension_numbers = #tpu.dot_dimension_numbers<[1], [0], [0], [1], [0, 0, 1, 1], [], []>} : vector<132x384xf32>, vector<384x128xf32>, vector<132x128xf32> -> vector<132x128xf32>
    %c9_143 = arith.constant 9 : index
    %c0_144 = arith.constant 0 : index
    %137 = vector.load %arg3[%c9_143, %c0_144] : memref<10x128xf32, #tpu.memory_space<vmem>>, vector<1x128xf32>
    %138 = vector.broadcast %137 : vector<1x128xf32> to vector<132x128xf32>
    %139 = arith.addf %136, %138 : vector<132x128xf32>
    %cst_145 = arith.constant 0.000000e+00 : f32
    %140 = vector.broadcast %cst_145 : f32 to vector<132x128xf32>
    %141 = arith.maximumf %139, %140 : vector<132x128xf32>
    %c32_146 = arith.constant 32 : index
    %c0_147 = arith.constant 0 : index
    %142 = vector.load %arg14[%c32_146, %c0_147] : memref<168x128xf32, #tpu.memory_space<vmem>>, vector<132x128xf32>
    tpu.vector_store %arg14[%c32_146, %c0_147], %141 {strides = array<i32>} : memref<168x128xf32, #tpu.memory_space<vmem>>, vector<132x128xf32>,
    %c0_148 = arith.constant 0 : index
    %c0_149 = arith.constant 0 : index
    %143 = vector.load %arg4[%c0_148, %c0_149] : memref<32x132xf32, #tpu.memory_space<vmem>>, vector<32x132xf32>
    %c32_150 = arith.constant 32 : index
    %c0_151 = arith.constant 0 : index
    %144 = vector.load %arg14[%c32_150, %c0_151] : memref<168x128xf32, #tpu.memory_space<vmem>>, vector<132x128xf32>
    %cst_152 = arith.constant dense<0.000000e+00> : vector<32x128xf32>
    %145 = tpu.matmul %143, %144, %cst_152 {dimension_numbers = #tpu.dot_dimension_numbers<[1], [0], [0], [1], [0, 0, 1, 1], [], []>} : vector<32x132xf32>, vector<132x128xf32>, vector<32x128xf32> -> vector<32x128xf32>
    %c0_153 = arith.constant 0 : index
    %c0_154 = arith.constant 0 : index
    %146 = vector.load %arg5[%c0_153, %c0_154] : memref<32x1xf32, #tpu.memory_space<vmem>>, vector<32x1xf32>
    %147 = vector.broadcast %146 : vector<32x1xf32> to vector<32x128xf32>
    %148 = arith.addf %145, %147 : vector<32x128xf32>
    %cst_155 = arith.constant dense<0.000000e+00> : vector<128xf32>
    %149 = vector.multi_reduction <add>, %148, %cst_155 [0] : vector<32x128xf32> to vector<128xf32>
    %150 = vector.shape_cast %149 : vector<128xf32> to vector<1x128xf32>
    %151 = arith.mulf %148, %148 : vector<32x128xf32>
    %cst_156 = arith.constant dense<0.000000e+00> : vector<128xf32>
    %152 = vector.multi_reduction <add>, %151, %cst_156 [0] : vector<32x128xf32> to vector<128xf32>
    %153 = vector.shape_cast %152 : vector<128xf32> to vector<1x128xf32>
    %c0_157 = arith.constant 0 : index
    %c0_158 = arith.constant 0 : index
    %154 = vector.load %arg10[%c0_157, %c0_158] : memref<128x8xf32, #tpu.memory_space<vmem>>, vector<128x8xf32>
    %cst_159 = arith.constant dense<0.000000e+00> : vector<1x8xf32>
    %155 = tpu.matmul %150, %154, %cst_159 {dimension_numbers = #tpu.dot_dimension_numbers<[1], [0], [0], [1], [0, 0, 1, 1], [], []>} : vector<1x128xf32>, vector<128x8xf32>, vector<1x8xf32> -> vector<1x8xf32>
    %c0_160 = arith.constant 0 : index
    %c0_161 = arith.constant 0 : index
    %156 = vector.load %arg10[%c0_160, %c0_161] : memref<128x8xf32, #tpu.memory_space<vmem>>, vector<128x8xf32>
    %cst_162 = arith.constant dense<0.000000e+00> : vector<1x8xf32>
    %157 = tpu.matmul %153, %156, %cst_162 {dimension_numbers = #tpu.dot_dimension_numbers<[1], [0], [0], [1], [0, 0, 1, 1], [], []>} : vector<1x128xf32>, vector<128x8xf32>, vector<1x8xf32> -> vector<1x8xf32>
    %cst_163 = arith.constant 3.840000e+02 : f32
    %158 = vector.broadcast %cst_163 : f32 to vector<1x8xf32>
    %159 = arith.divf %155, %158 : vector<1x8xf32>
    %cst_164 = arith.constant 3.840000e+02 : f32
    %160 = vector.broadcast %cst_164 : f32 to vector<1x8xf32>
    %161 = arith.divf %157, %160 : vector<1x8xf32>
    %162 = arith.mulf %159, %159 : vector<1x8xf32>
    %163 = arith.subf %161, %162 : vector<1x8xf32>
    %cst_165 = arith.constant 9.99999974E-6 : f32
    %164 = vector.broadcast %cst_165 : f32 to vector<1x8xf32>
    %165 = arith.addf %163, %164 : vector<1x8xf32>
    %166 = math.rsqrt %165 : vector<1x8xf32>
    %c0_166 = arith.constant 0 : index
    %c0_167 = arith.constant 0 : index
    %167 = vector.load %arg6[%c0_166, %c0_167] : memref<1x8xf32, #tpu.memory_space<vmem>>, vector<1x8xf32>
    %168 = arith.mulf %167, %166 : vector<1x8xf32>
    %c0_168 = arith.constant 0 : index
    %c0_169 = arith.constant 0 : index
    %169 = vector.load %arg7[%c0_168, %c0_169] : memref<1x8xf32, #tpu.memory_space<vmem>>, vector<1x8xf32>
    %170 = arith.mulf %159, %168 : vector<1x8xf32>
    %171 = arith.subf %169, %170 : vector<1x8xf32>
    %c0_170 = arith.constant 0 : index
    %c0_171 = arith.constant 0 : index
    %172 = vector.load %arg11[%c0_170, %c0_171] : memref<8x128xf32, #tpu.memory_space<vmem>>, vector<8x128xf32>
    %cst_172 = arith.constant dense<0.000000e+00> : vector<1x128xf32>
    %173 = tpu.matmul %168, %172, %cst_172 {dimension_numbers = #tpu.dot_dimension_numbers<[1], [0], [0], [1], [0, 0, 1, 1], [], []>} : vector<1x8xf32>, vector<8x128xf32>, vector<1x128xf32> -> vector<1x128xf32>
    %c0_173 = arith.constant 0 : index
    %c0_174 = arith.constant 0 : index
    %174 = vector.load %arg11[%c0_173, %c0_174] : memref<8x128xf32, #tpu.memory_space<vmem>>, vector<8x128xf32>
    %cst_175 = arith.constant dense<0.000000e+00> : vector<1x128xf32>
    %175 = tpu.matmul %171, %174, %cst_175 {dimension_numbers = #tpu.dot_dimension_numbers<[1], [0], [0], [1], [0, 0, 1, 1], [], []>} : vector<1x8xf32>, vector<8x128xf32>, vector<1x128xf32> -> vector<1x128xf32>
    %176 = vector.broadcast %173 : vector<1x128xf32> to vector<32x128xf32>
    %177 = arith.mulf %148, %176 : vector<32x128xf32>
    %178 = vector.broadcast %175 : vector<1x128xf32> to vector<32x128xf32>
    %179 = arith.addf %177, %178 : vector<32x128xf32>
    %180 = arith.negf %179 : vector<32x128xf32>
    %181 = math.exp %180 : vector<32x128xf32>
    %cst_176 = arith.constant 1.000000e+00 : f32
    %182 = vector.broadcast %cst_176 : f32 to vector<32x128xf32>
    %183 = arith.addf %182, %181 : vector<32x128xf32>
    %184 = arith.divf %182, %183 : vector<32x128xf32>
    %c0_177 = arith.constant 0 : index
    %c0_178 = arith.constant 0 : index
    %c0_179 = arith.constant 0 : index
    %185 = vector.load %arg8[%c0_177, %c0_178, %c0_179] : memref<3x32x128xf32, #tpu.memory_space<vmem>>, vector<1x32x128xf32>
    %186 = vector.shape_cast %185 : vector<1x32x128xf32> to vector<32x128xf32>
    %187 = arith.mulf %184, %186 : vector<32x128xf32>
    %cst_180 = arith.constant dense<0.000000e+00> : vector<128xf32>
    %188 = vector.multi_reduction <add>, %187, %cst_180 [0] : vector<32x128xf32> to vector<128xf32>
    %189 = vector.shape_cast %188 : vector<128xf32> to vector<1x128xf32>
    %c1_181 = arith.constant 1 : index
    %c0_182 = arith.constant 0 : index
    %c0_183 = arith.constant 0 : index
    %190 = vector.load %arg8[%c1_181, %c0_182, %c0_183] : memref<3x32x128xf32, #tpu.memory_space<vmem>>, vector<1x32x128xf32>
    %191 = vector.shape_cast %190 : vector<1x32x128xf32> to vector<32x128xf32>
    %192 = arith.mulf %184, %191 : vector<32x128xf32>
    %cst_184 = arith.constant dense<0.000000e+00> : vector<128xf32>
    %193 = vector.multi_reduction <add>, %192, %cst_184 [0] : vector<32x128xf32> to vector<128xf32>
    %194 = vector.shape_cast %193 : vector<128xf32> to vector<1x128xf32>
    %c2_185 = arith.constant 2 : index
    %c0_186 = arith.constant 0 : index
    %c0_187 = arith.constant 0 : index
    %195 = vector.load %arg8[%c2_185, %c0_186, %c0_187] : memref<3x32x128xf32, #tpu.memory_space<vmem>>, vector<1x32x128xf32>
    %196 = vector.shape_cast %195 : vector<1x32x128xf32> to vector<32x128xf32>
    %197 = arith.mulf %184, %196 : vector<32x128xf32>
    %cst_188 = arith.constant dense<0.000000e+00> : vector<128xf32>
    %198 = vector.multi_reduction <add>, %197, %cst_188 [0] : vector<32x128xf32> to vector<128xf32>
    %199 = vector.shape_cast %198 : vector<128xf32> to vector<1x128xf32>
    %200 = tpu.concatenate %189, %194, %199 in 0 : vector<1x128xf32>, vector<1x128xf32>, vector<1x128xf32> -> vector<3x128xf32>
    %c0_189 = arith.constant 0 : index
    %c0_190 = arith.constant 0 : index
    %201 = vector.load %arg12[%c0_189, %c0_190] : memref<128x16xf32, #tpu.memory_space<vmem>>, vector<128x16xf32>
    %cst_191 = arith.constant dense<0.000000e+00> : vector<3x16xf32>
    %202 = tpu.matmul %200, %201, %cst_191 {dimension_numbers = #tpu.dot_dimension_numbers<[1], [0], [0], [1], [0, 0, 1, 1], [], []>} : vector<3x128xf32>, vector<128x16xf32>, vector<3x16xf32> -> vector<3x16xf32>
    %c0_192 = arith.constant 0 : index
    %c0_193 = arith.constant 0 : index
    %203 = vector.load %arg9[%c0_192, %c0_193] : memref<3x1xf32, #tpu.memory_space<vmem>>, vector<3x1xf32>
    %204 = vector.broadcast %203 : vector<3x1xf32> to vector<3x16xf32>
    %205 = arith.addf %202, %204 : vector<3x16xf32>
    %c0_194 = arith.constant 0 : index
    %c0_195 = arith.constant 0 : index
    %206 = vector.load %arg13[%c0_194, %c0_195] : memref<3x16xf32, #tpu.memory_space<vmem>>, vector<3x16xf32>
    tpu.vector_store %arg13[%c0_194, %c0_195], %205 {strides = array<i32>} : memref<3x16xf32, #tpu.memory_space<vmem>>, vector<3x16xf32>,
    return
  }
}

</mosaic_0001>

<llo_original>
// kernel: tree_cns_forward.1
$region0: #{tree_cns_forward.1}
  #allocation0 [shape = 'u32[]', space=smem, size = 0x4, offset = 0x4, fixed_abs, tag = 'smem constant byte address 0x4 - core index']
  #allocation1 [shape = 'u32[144,128]{1,0:T(1,128)}', space=vmem, size = 0x12000, scoped, tag = 'internal scratch']
  #allocation2 [shape = 'f32[168,128]{1,0:T(8,128)}', space=vmem, size = 0x15000, scoped, tag = 'scratch operand']
  #allocation3 [shape = 'f32[168,128]{1,0:T(8,128)}', space=vmem, size = 0x15000, scoped, tag = 'scratch operand']
  %s0 = inlined_call_operand.vmem [shape: f32[8,16], index: 0, kind: input, shape index: {}]
  %s1 = inlined_call_operand.vmem [shape: f32[16,128], index: 1, kind: input, shape index: {}]
  %s2 = inlined_call_operand.hbm [shape: f32[10,384,128], index: 2, kind: input, shape index: {}]
  %s3 = inlined_call_operand.hbm [shape: f32[10,128], index: 3, kind: input, shape index: {}]
  %s4 = inlined_call_operand.hbm [shape: f32[32,132], index: 4, kind: input, shape index: {}]
  %s5 = inlined_call_operand.vmem [shape: f32[32,1], index: 5, kind: input, shape index: {}]
  %s6 = inlined_call_operand.hbm [shape: f32[1,8], index: 6, kind: input, shape index: {}]
  %s7 = inlined_call_operand.hbm [shape: f32[1,8], index: 7, kind: input, shape index: {}]
  %s8 = inlined_call_operand.hbm [shape: f32[3,32,128], index: 8, kind: input, shape index: {}]
  %s9 = inlined_call_operand.vmem [shape: f32[3,1], index: 9, kind: input, shape index: {}]
  %s10 = inlined_call_operand.vmem [shape: f32[128,8], index: 10, kind: input, shape index: {}]
  %s11 = inlined_call_operand.hbm [shape: f32[8,128], index: 11, kind: input, shape index: {}]
  %s12 = inlined_call_operand.vmem [shape: f32[128,16], index: 12, kind: input, shape index: {}]
  %s13 = inlined_call_operand.vmem [shape: f32[3,16], index: 13, kind: output, shape index: {}]
  %s14 = sld [smem:[#allocation0]]
  $region90: #{tree_cns_forward.1} parent=0
    _
  %s16 = ssub.s32 1, %s14
  %s17 = scalar_select 0, %s16, %s14
  $region1: #{tree_cns_forward.1} parent=0
    #allocation4 [shape = 'u8[1966080]{0}', space=vmem, size = 0x1e0000, scoped, tag = 'input window, operand 2, single buffered']
    #allocation5 [shape = 's32[1]{0}', space=sflag, size = 0x4, scoped, tag = 'scoped memory for tree_cns_forward.1']
    #allocation6 [shape = 'u8[8192]{0}', space=vmem, size = 0x2000, scoped, tag = 'input window, operand 3, single buffered']
    #allocation7 [shape = 's32[1]{0}', space=sflag, size = 0x4, scoped, tag = 'scoped memory for tree_cns_forward.1']
    #allocation8 [shape = 'u8[32768]{0}', space=vmem, size = 0x8000, scoped, tag = 'input window, operand 4, single buffered']
    #allocation9 [shape = 'u8[512]{0}', space=vmem, size = 0x400, scoped, tag = 'input window, operand 6, single buffered']
    #allocation10 [shape = 's32[1]{0}', space=sflag, size = 0x4, scoped, tag = 'scoped memory for tree_cns_forward.1']
    #allocation11 [shape = 'u8[512]{0}', space=vmem, size = 0x400, scoped, tag = 'input window, operand 7, single buffered']
    #allocation12 [shape = 'u8[49152]{0}', space=vmem, size = 0xc000, scoped, tag = 'input window, operand 8, single buffered']
    #allocation13 [shape = 's32[1]{0}', space=sflag, size = 0x4, scoped, tag = 'scoped memory for tree_cns_forward.1']
    #allocation14 [shape = 'u8[4096]{0}', space=vmem, size = 0x1000, scoped, tag = 'input window, operand 11, single buffered']
    %18 = vsyncpa [#allocation5], 0
    %19 = vsyncpa [#allocation7], 0
    %20 = vsyncpa [#allocation10], 0
    %21 = vsyncpa [#allocation13], 0
    // Predicated region
    $region2: #{tree_cns_forward.1} parent=1 // pred_check
      _
    $region3: #{tree_cns_forward.1} parent=1 // pred_check_branch
      %23 = sbr.rel (0) target = $region5
    $region4: #{tree_cns_forward.1} parent=1 // pred_region
      _
    $region5: #{tree_cns_forward.1} parent=1 // pred_fallthru
      _
    // Predicated region
    $region6: #{tree_cns_forward.1} parent=1 // pred_check
      _
    $region7: #{tree_cns_forward.1} parent=1 // pred_check_branch
      %25 = sbr.rel (0) target = $region9
    $region8: #{tree_cns_forward.1} parent=1 // pred_region
      _
    $region9: #{tree_cns_forward.1} parent=1 // pred_fallthru
      _
    // Predicated region
    $region10: #{tree_cns_forward.1} parent=1 // pred_check
      _
    $region11: #{tree_cns_forward.1} parent=1 // pred_check_branch
      %27 = sbr.rel (0) target = $region13
    $region12: #{tree_cns_forward.1} parent=1 // pred_region
      %s29 = ssub.s32 61440, 61440
      %30 = vsyncadd [#allocation5], %s29
      %s31 = sshll.u32 [#allocation4], 4
      %s32 = int_to_ptr.vmem [resolvable:$true] %s31
      %37 = dma.hbm_to_vmem [thread:$0]  %s2, 61440, %s32, [#allocation5], 128, 128, 8
    $region13: #{tree_cns_forward.1} parent=1 // pred_fallthru
      _
    // Predicated region
    $region14: #{tree_cns_forward.1} parent=1 // pred_check
      _
    $region15: #{tree_cns_forward.1} parent=1 // pred_check_branch
      %39 = sbr.rel (0) target = $region17
    $region16: #{tree_cns_forward.1} parent=1 // pred_region
      %s41 = ssub.s32 256, 256
      %42 = vsyncadd [#allocation7], %s41
      %s43 = sshll.u32 [#allocation6], 4
      %s44 = int_to_ptr.vmem [resolvable:$true] %s43
      %49 = dma.hbm_to_vmem [thread:$0]  %s3, 256, %s44, [#allocation7], 128, 128, 8
    $region17: #{tree_cns_forward.1} parent=1 // pred_fallthru
      _
    // Predicated region
    $region18: #{tree_cns_forward.1} parent=1 // pred_check
      _
    $region19: #{tree_cns_forward.1} parent=1 // pred_check_branch
      %51 = sbr.rel (0) target = $region21
    $region20: #{tree_cns_forward.1} parent=1 // pred_region
      %s53 = ssub.s32 1024, 1024
      %54 = vsyncadd [#allocation7], %s53
      %s55 = sshll.u32 [#allocation8], 4
      %s56 = int_to_ptr.vmem [resolvable:$true] %s55
      %61 = dma.hbm_to_vmem [thread:$0]  %s4, 1024, %s56, [#allocation7], 256, 256, 16
    $region21: #{tree_cns_forward.1} parent=1 // pred_fallthru
      _
    // Predicated region
    $region22: #{tree_cns_forward.1} parent=1 // pred_check
      _
    $region23: #{tree_cns_forward.1} parent=1 // pred_check_branch
      %63 = sbr.rel (0) target = $region25
    $region24: #{tree_cns_forward.1} parent=1 // pred_region
      _
    $region25: #{tree_cns_forward.1} parent=1 // pred_fallthru
      _
    // Predicated region
    $region26: #{tree_cns_forward.1} parent=1 // pred_check
      _
    $region27: #{tree_cns_forward.1} parent=1 // pred_check_branch
      %65 = sbr.rel (0) target = $region29
    $region28: #{tree_cns_forward.1} parent=1 // pred_region
      %s67 = ssub.s32 16, 16
      %68 = vsyncadd [#allocation10], %s67
      %s70 = sshll.u32 [#allocation9], 4
      %s71 = int_to_ptr.vmem [resolvable:$true] %s70
      %73 = dma.hbm_to_vmem [thread:$0]  %s6, 16, %s71, [#allocation10]
    $region29: #{tree_cns_forward.1} parent=1 // pred_fallthru
      _
    // Predicated region
    $region30: #{tree_cns_forward.1} parent=1 // pred_check
      _
    $region31: #{tree_cns_forward.1} parent=1 // pred_check_branch
      %75 = sbr.rel (0) target = $region33
    $region32: #{tree_cns_forward.1} parent=1 // pred_region
      %s77 = ssub.s32 16, 16
      %78 = vsyncadd [#allocation10], %s77
      %s80 = sshll.u32 [#allocation11], 4
      %s81 = int_to_ptr.vmem [resolvable:$true] %s80
      %83 = dma.hbm_to_vmem [thread:$0]  %s7, 16, %s81, [#allocation10]
    $region33: #{tree_cns_forward.1} parent=1 // pred_fallthru
      _
    // Predicated region
    $region34: #{tree_cns_forward.1} parent=1 // pred_check
      _
    $region35: #{tree_cns_forward.1} parent=1 // pred_check_branch
      %85 = sbr.rel (0) target = $region37
    $region36: #{tree_cns_forward.1} parent=1 // pred_region
      %s87 = ssub.s32 1536, 1536
      %88 = vsyncadd [#allocation13], %s87
      %s89 = sshll.u32 [#allocation12], 4
      %s90 = int_to_ptr.vmem [resolvable:$true] %s89
      %95 = dma.hbm_to_vmem [thread:$0]  %s8, 1536, %s90, [#allocation13], 128, 128, 8
    $region37: #{tree_cns_forward.1} parent=1 // pred_fallthru
      _
    // Predicated region
    $region38: #{tree_cns_forward.1} parent=1 // pred_check
      _
    $region39: #{tree_cns_forward.1} parent=1 // pred_check_branch
      %97 = sbr.rel (0) target = $region41
    $region40: #{tree_cns_forward.1} parent=1 // pred_region
      _
    $region41: #{tree_cns_forward.1} parent=1 // pred_fallthru
      _
    // Predicated region
    $region42: #{tree_cns_forward.1} parent=1 // pred_check
      _
    $region43: #{tree_cns_forward.1} parent=1 // pred_check_branch
      %99 = sbr.rel (0) target = $region45
    $region44: #{tree_cns_forward.1} parent=1 // pred_region
      _
    $region45: #{tree_cns_forward.1} parent=1 // pred_fallthru
      _
    // Predicated region
    $region46: #{tree_cns_forward.1} parent=1 // pred_check
      _
    $region47: #{tree_cns_forward.1} parent=1 // pred_check_branch
      %101 = sbr.rel (0) target = $region49
    $region48: #{tree_cns_forward.1} parent=1 // pred_region
      %s103 = ssub.s32 128, 128
      %104 = vsyncadd [#allocation13], %s103
      %s106 = sshll.u32 [#allocation14], 4
      %s107 = int_to_ptr.vmem [resolvable:$true] %s106
      %109 = dma.hbm_to_vmem [thread:$0]  %s11, 128, %s107, [#allocation13]
    $region49: #{tree_cns_forward.1} parent=1 // pred_fallthru
      _
    // Predicated region
    $region50: #{tree_cns_forward.1} parent=1 // pred_check
      _
    $region51: #{tree_cns_forward.1} parent=1 // pred_check_branch
      %111 = sbr.rel (0) target = $region53
    $region52: #{tree_cns_forward.1} parent=1 // pred_region
      _
    $region53: #{tree_cns_forward.1} parent=1 // pred_fallthru
      _
    // Predicated region
    $region54: #{tree_cns_forward.1} parent=1 // pred_check
      _
    $region55: #{tree_cns_forward.1} parent=1 // pred_check_branch
      %113 = sbr.rel (0) target = $region57
    $region56: #{tree_cns_forward.1} parent=1 // pred_region
      %114 = dma.done [#allocation5], 61440
    $region57: #{tree_cns_forward.1} parent=1 // pred_fallthru
      _
    // Predicated region
    $region58: #{tree_cns_forward.1} parent=1 // pred_check
      _
    $region59: #{tree_cns_forward.1} parent=1 // pred_check_branch
      %116 = sbr.rel (0) target = $region61
    $region60: #{tree_cns_forward.1} parent=1 // pred_region
      %117 = dma.done [#allocation7], 256
    $region61: #{tree_cns_forward.1} parent=1 // pred_fallthru
      _
    // Predicated region
    $region62: #{tree_cns_forward.1} parent=1 // pred_check
      _
    $region63: #{tree_cns_forward.1} parent=1 // pred_check_branch
      %119 = sbr.rel (0) target = $region65
    $region64: #{tree_cns_forward.1} parent=1 // pred_region
      %120 = dma.done [#allocation7], 1024
    $region65: #{tree_cns_forward.1} parent=1 // pred_fallthru
      _
    // Predicated region
    $region66: #{tree_cns_forward.1} parent=1 // pred_check
      _
    $region67: #{tree_cns_forward.1} parent=1 // pred_check_branch
      %122 = sbr.rel (0) target = $region69
    $region68: #{tree_cns_forward.1} parent=1 // pred_region
      %123 = dma.done [#allocation10], 16
    $region69: #{tree_cns_forward.1} parent=1 // pred_fallthru
      _
    // Predicated region
    $region70: #{tree_cns_forward.1} parent=1 // pred_check
      _
    $region71: #{tree_cns_forward.1} parent=1 // pred_check_branch
      %125 = sbr.rel (0) target = $region73
    $region72: #{tree_cns_forward.1} parent=1 // pred_region
      %126 = dma.done [#allocation10], 16
    $region73: #{tree_cns_forward.1} parent=1 // pred_fallthru
      _
    // Predicated region
    $region74: #{tree_cns_forward.1} parent=1 // pred_check
      _
    $region75: #{tree_cns_forward.1} parent=1 // pred_check_branch
      %128 = sbr.rel (0) target = $region77
    $region76: #{tree_cns_forward.1} parent=1 // pred_region
      %129 = dma.done [#allocation13], 1536
    $region77: #{tree_cns_forward.1} parent=1 // pred_fallthru
      _
    // Predicated region
    $region78: #{tree_cns_forward.1} parent=1 // pred_check
      _
    $region79: #{tree_cns_forward.1} parent=1 // pred_check_branch
      %131 = sbr.rel (0) target = $region81
    $region80: #{tree_cns_forward.1} parent=1 // pred_region
      %132 = dma.done [#allocation13], 128
    $region81: #{tree_cns_forward.1} parent=1 // pred_fallthru
      _
    %133 = vst [vmem:[#allocation2] sm:$0xff] 0.0
    %134 = vst [vmem:[#allocation2 + $0x8] sm:$0xff] 0.0
    %135 = vst [vmem:[#allocation2 + $0x10] sm:$0xff] 0.0
    %136 = vst [vmem:[#allocation2 + $0x18] sm:$0xff] 0.0
    %137 = vst [vmem:[#allocation2 + $0x20] sm:$0xff] 0.0
    %138 = vst [vmem:[#allocation2 + $0x28] sm:$0xff] 0.0
    %139 = vst [vmem:[#allocation2 + $0x30] sm:$0xff] 0.0
    %140 = vst [vmem:[#allocation2 + $0x38] sm:$0xff] 0.0
    %141 = vst [vmem:[#allocation2 + $0x40] sm:$0xff] 0.0
    %142 = vst [vmem:[#allocation2 + $0x48] sm:$0xff] 0.0
    %143 = vst [vmem:[#allocation2 + $0x50] sm:$0xff] 0.0
    %144 = vst [vmem:[#allocation2 + $0x58] sm:$0xff] 0.0
    %145 = vst [vmem:[#allocation2 + $0x60] sm:$0xff] 0.0
    %146 = vst [vmem:[#allocation2 + $0x68] sm:$0xff] 0.0
    %147 = vst [vmem:[#allocation2 + $0x70] sm:$0xff] 0.0
    %148 = vst [vmem:[#allocation2 + $0x78] sm:$0xff] 0.0
    %149 = vst [vmem:[#allocation2 + $0x80] sm:$0xff] 0.0
    %150 = vst [vmem:[#allocation2 + $0x88] sm:$0xff] 0.0
    %151 = vst [vmem:[#allocation2 + $0x90] sm:$0xff] 0.0
    %152 = vst [vmem:[#allocation2 + $0x98] sm:$0xff] 0.0
    %153 = vst [vmem:[#allocation2 + $0xa0] sm:$0xff] 0.0
    %154 = vst [vmem:[#allocation3] sm:$0xff] 0.0
    %155 = vst [vmem:[#allocation3 + $0x8] sm:$0xff] 0.0
    %156 = vst [vmem:[#allocation3 + $0x10] sm:$0xff] 0.0
    %157 = vst [vmem:[#allocation3 + $0x18] sm:$0xff] 0.0
    %158 = vst [vmem:[#allocation3 + $0x20] sm:$0xff] 0.0
    %159 = vst [vmem:[#allocation3 + $0x28] sm:$0xff] 0.0
    %160 = vst [vmem:[#allocation3 + $0x30] sm:$0xff] 0.0
    %161 = vst [vmem:[#allocation3 + $0x38] sm:$0xff] 0.0
    %162 = vst [vmem:[#allocation3 + $0x40] sm:$0xff] 0.0
    %163 = vst [vmem:[#allocation3 + $0x48] sm:$0xff] 0.0
    %164 = vst [vmem:[#allocation3 + $0x50] sm:$0xff] 0.0
    %165 = vst [vmem:[#allocation3 + $0x58] sm:$0xff] 0.0
    %166 = vst [vmem:[#allocation3 + $0x60] sm:$0xff] 0.0
    %167 = vst [vmem:[#allocation3 + $0x68] sm:$0xff] 0.0
    %168 = vst [vmem:[#allocation3 + $0x70] sm:$0xff] 0.0
    %169 = vst [vmem:[#allocation3 + $0x78] sm:$0xff] 0.0
    %170 = vst [vmem:[#allocation3 + $0x80] sm:$0xff] 0.0
    %171 = vst [vmem:[#allocation3 + $0x88] sm:$0xff] 0.0
    %172 = vst [vmem:[#allocation3 + $0x90] sm:$0xff] 0.0
    %173 = vst [vmem:[#allocation3 + $0x98] sm:$0xff] 0.0
    %174 = vst [vmem:[#allocation3 + $0xa0] sm:$0xff] 0.0
    %v175 = vld [vmem:[%s0] sm:$0xff]
    %v176 = vld [vmem:[%s1] sm:$0xff]
    %v177 = vld [vmem:[%s1 + $0x8] sm:$0xff]
    %vm178 = vcmask 130048
    %v180 = vsel %vm178, %v175, 0
    %182 = vmatprep.subr.mxu0 0.0
    %183 = vmatpush1.msra.mxu0 0.0
    %184 = vmatprep.subr.mxu0 0.0
    %185 = vmatpush1.msra.mxu0 0.0
    %186 = vmatprep.subr.mxu0 0.0
    %187 = vmatpush1.msra.mxu0 0.0
    %188 = vmatprep.subr.mxu0 0.0
    %189 = vmatpush1.msra.mxu0 0.0
    %190 = vmatprep.subr.mxu0 0.0
    %191 = vmatpush1.msra.mxu0 0.0
    %192 = vmatprep.subr.mxu0 0.0
    %193 = vmatpush1.msra.mxu0 0.0
    %194 = vmatprep.subr.mxu0 0.0
    %195 = vmatpush1.msra.mxu0 0.0
    %196 = vmatprep.subr.mxu0 0.0
    %197 = vmatpush1.msra.mxu0 0.0
    %198 = vmatprep.subr.mxu0 0.0
    %199 = vmatpush1.msra.mxu0 0.0
    %200 = vmatprep.subr.mxu0 0.0
    %201 = vmatpush1.msra.mxu0 0.0
    %202 = vmatprep.subr.mxu0 0.0
    %203 = vmatpush1.msra.mxu0 0.0
    %204 = vmatprep.subr.mxu0 0.0
    %205 = vmatpush1.msra.mxu0 0.0
    %206 = vmatprep.subr.mxu0 0.0
    %207 = vmatpush1.msra.mxu0 0.0
    %208 = vmatprep.subr.mxu0 0.0
    %209 = vmatpush1.msra.mxu0 0.0
    %210 = vmatprep.subr.mxu0 0.0
    %211 = vmatpush1.msra.mxu0 %v177
    %212 = vmatprep.subr.mxu0 0.0
    %213 = vmatpush1.msra.mxu0 %v176
    %214 = vmatprep.subr.mxu0 0.0
    %215 = vmatpush2.msra.mxu0 0.0
    %216 = vmatprep.subr.mxu0 0.0
    %217 = vmatpush2.msra.mxu0 0.0
    %218 = vmatprep.subr.mxu0 0.0
    %219 = vmatpush2.msra.mxu0 0.0
    %220 = vmatprep.subr.mxu0 0.0
    %221 = vmatpush2.msra.mxu0 0.0
    %222 = vmatprep.subr.mxu0 0.0
    %223 = vmatpush2.msra.mxu0 0.0
    %224 = vmatprep.subr.mxu0 0.0
    %225 = vmatpush2.msra.mxu0 0.0
    %226 = vmatprep.subr.mxu0 0.0
    %227 = vmatpush2.msra.mxu0 0.0
    %228 = vmatprep.subr.mxu0 0.0
    %229 = vmatpush2.msra.mxu0 0.0
    %230 = vmatprep.subr.mxu0 0.0
    %231 = vmatpush2.msra.mxu0 0.0
    %232 = vmatprep.subr.mxu0 0.0
    %233 = vmatpush2.msra.mxu0 0.0
    %234 = vmatprep.subr.mxu0 0.0
    %235 = vmatpush2.msra.mxu0 0.0
    %236 = vmatprep.subr.mxu0 0.0
    %237 = vmatpush2.msra.mxu0 0.0
    %238 = vmatprep.subr.mxu0 0.0
    %239 = vmatpush2.msra.mxu0 0.0
    %240 = vmatprep.subr.mxu0 0.0
    %241 = vmatpush2.msra.mxu0 0.0
    %242 = vmatprep.subr.mxu0 0.0
    %243 = vmatpush2.msra.mxu0 0.0
    %244 = vmatprep.subr.mxu0 0.0
    %245 = vmatpush2.msra.mxu0 0.0
    %246 = vmatprep.mubr.f32.mxu0 0.0
    %247 = vmatmul.mubr.f32.gmra.mxu0 %v180
    %v248 = vpop.f32.mrf.mxu0
    %v249 = vadd.f32 0.0, %v248
    %v250 = vpop.f32.mrf.mxu0
    %251 = vdwg.mxu0
    %vm252 = vcmp.ge.f32.partialorder %v249, 0.0
    %v253 = vmul.f32 %v249, 0.01
    %v254 = vsel %vm252, %v249, %v253
    %255 = vst [vmem:[#allocation2 + $0x20] sm:$0xff] %v254
    %v256 = vld [vmem:[#allocation2 + $0x1e] sm:$0xff]
    %v257 = vld [vmem:[#allocation2 + $0x26] sm:$0x3]
    %v258 = vld [vmem:[#allocation2 + $0x1f] sm:$0xff]
    %v259 = vld [vmem:[#allocation2 + $0x27] sm:$0x3]
    %v260 = vld [vmem:[#allocation2 + $0x20] sm:$0xff]
    %v261 = vld [vmem:[#allocation2 + $0x28] sm:$0x3]
    %v262 = vld [vmem:[#allocation4] sm:$0xff]
    %v263 = vld [vmem:[#allocation4 + $0x8] sm:$0xff]
    %v264 = vld [vmem:[#allocation4 + $0x10] sm:$0xff]
    %v265 = vld [vmem:[#allocation4 + $0x18] sm:$0xff]
    %v266 = vld [vmem:[#allocation4 + $0x20] sm:$0xff]
    %v267 = vld [vmem:[#allocation4 + $0x28] sm:$0xff]
    %v268 = vld [vmem:[#allocation4 + $0x30] sm:$0xff]
    %v269 = vld [vmem:[#allocation4 + $0x38] sm:$0xff]
    %v270 = vld [vmem:[#allocation4 + $0x40] sm:$0xff]
    %v271 = vld [vmem:[#allocation4 + $0x48] sm:$0xff]
    %v272 = vld [vmem:[#allocation4 + $0x50] sm:$0xff]
    %v273 = vld [vmem:[#allocation4 + $0x58] sm:$0xff]
    %v274 = vld [vmem:[#allocation4 + $0x60] sm:$0xff]
    %v275 = vld [vmem:[#allocation4 + $0x68] sm:$0xff]
    %v276 = vld [vmem:[#allocation4 + $0x70] sm:$0xff]
    %v277 = vld [vmem:[#allocation4 + $0x78] sm:$0xff]
    %v278 = vld [vmem:[#allocation4 + $0x80] sm:$0xff]
    %v279 = vld [vmem:[#allocation4 + $0x88] sm:$0xff]
    %v280 = vld [vmem:[#allocation4 + $0x90] sm:$0xff]
    %v281 = vld [vmem:[#allocation4 + $0x98] sm:$0xff]
    %v282 = vld [vmem:[#allocation4 + $0xa0] sm:$0xff]
    %v283 = vld [vmem:[#allocation4 + $0xa8] sm:$0xff]
    %v284 = vld [vmem:[#allocation4 + $0xb0] sm:$0xff]
    %v285 = vld [vmem:[#allocation4 + $0xb8] sm:$0xff]
    %v286 = vld [vmem:[#allocation4 + $0xc0] sm:$0xff]
    %v287 = vld [vmem:[#allocation4 + $0xc8] sm:$0xff]
    %v288 = vld [vmem:[#allocation4 + $0xd0] sm:$0xff]
    %v289 = vld [vmem:[#allocation4 + $0xd8] sm:$0xff]
    %v290 = vld [vmem:[#allocation4 + $0xe0] sm:$0xff]
    %v291 = vld [vmem:[#allocation4 + $0xe8] sm:$0xff]
    %v292 = vld [vmem:[#allocation4 + $0xf0] sm:$0xff]
    %v293 = vld [vmem:[#allocation4 + $0xf8] sm:$0xff]
    %v294 = vld [vmem:[#allocation4 + $0x100] sm:$0xff]
    %v295 = vld [vmem:[#allocation4 + $0x108] sm:$0xff]
    %v296 = vld [vmem:[#allocation4 + $0x110] sm:$0xff]
    %v297 = vld [vmem:[#allocation4 + $0x118] sm:$0xff]
    %v298 = vld [vmem:[#allocation4 + $0x120] sm:$0xff]
    %v299 = vld [vmem:[#allocation4 + $0x128] sm:$0xff]
    %v300 = vld [vmem:[#allocation4 + $0x130] sm:$0xff]
    %v301 = vld [vmem:[#allocation4 + $0x138] sm:$0xff]
    %v302 = vld [vmem:[#allocation4 + $0x140] sm:$0xff]
    %v303 = vld [vmem:[#allocation4 + $0x148] sm:$0xff]
    %v304 = vld [vmem:[#allocation4 + $0x150] sm:$0xff]
    %v305 = vld [vmem:[#allocation4 + $0x158] sm:$0xff]
    %v306 = vld [vmem:[#allocation4 + $0x160] sm:$0xff]
    %v307 = vld [vmem:[#allocation4 + $0x168] sm:$0xff]
    %v308 = vld [vmem:[#allocation4 + $0x170] sm:$0xff]
    %v309 = vld [vmem:[#allocation4 + $0x178] sm:$0xff]
    %v310 = vld [vmem:[#allocation6] sm:$0x1]
    %v311 = vlaneseq
    %v312 = vshrl.u32 %v311, 7
    %v313 = vsub.s32 0, %v312
    %v314 = vrot.slane %v310, %v313
    %315 = vmatprep.subr.mxu0 0.0
    %316 = vmatpush1.msra.mxu0 %v277
    %317 = vmatprep.subr.mxu0 0.0
    %318 = vmatpush1.msra.mxu0 %v276
    %319 = vmatprep.subr.mxu0 0.0
    %320 = vmatpush1.msra.mxu0 %v275
    %321 = vmatprep.subr.mxu0 0.0
    %322 = vmatpush1.msra.mxu0 %v274
    %323 = vmatprep.subr.mxu0 0.0
    %324 = vmatpush1.msra.mxu0 %v273
    %325 = vmatprep.subr.mxu0 0.0
    %326 = vmatpush1.msra.mxu0 %v272
    %327 = vmatprep.subr.mxu0 0.0
    %328 = vmatpush1.msra.mxu0 %v271
    %329 = vmatprep.subr.mxu0 0.0
    %330 = vmatpush1.msra.mxu0 %v270
    %331 = vmatprep.subr.mxu0 0.0
    %332 = vmatpush1.msra.mxu0 %v269
    %333 = vmatprep.subr.mxu0 0.0
    %334 = vmatpush1.msra.mxu0 %v268
    %335 = vmatprep.subr.mxu0 0.0
    %336 = vmatpush1.msra.mxu0 %v267
    %337 = vmatprep.subr.mxu0 0.0
    %338 = vmatpush1.msra.mxu0 %v266
    %339 = vmatprep.subr.mxu0 0.0
    %340 = vmatpush1.msra.mxu0 %v265
    %341 = vmatprep.subr.mxu0 0.0
    %342 = vmatpush1.msra.mxu0 %v264
    %343 = vmatprep.subr.mxu0 0.0
    %344 = vmatpush1.msra.mxu0 %v263
    %345 = vmatprep.subr.mxu0 0.0
    %346 = vmatpush1.msra.mxu0 %v262
    %347 = vmatprep.subr.mxu0 0.0
    %348 = vmatpush2.msra.mxu0 %v293
    %349 = vmatprep.subr.mxu0 0.0
    %350 = vmatpush2.msra.mxu0 %v292
    %351 = vmatprep.subr.mxu0 0.0
    %352 = vmatpush2.msra.mxu0 %v291
    %353 = vmatprep.subr.mxu0 0.0
    %354 = vmatpush2.msra.mxu0 %v290
    %355 = vmatprep.subr.mxu0 0.0
    %356 = vmatpush2.msra.mxu0 %v289
    %357 = vmatprep.subr.mxu0 0.0
    %358 = vmatpush2.msra.mxu0 %v288
    %359 = vmatprep.subr.mxu0 0.0
    %360 = vmatpush2.msra.mxu0 %v287
    %361 = vmatprep.subr.mxu0 0.0
    %362 = vmatpush2.msra.mxu0 %v286
    %363 = vmatprep.subr.mxu0 0.0
    %364 = vmatpush2.msra.mxu0 %v285
    %365 = vmatprep.subr.mxu0 0.0
    %366 = vmatpush2.msra.mxu0 %v284
    %367 = vmatprep.subr.mxu0 0.0
    %368 = vmatpush2.msra.mxu0 %v283
    %369 = vmatprep.subr.mxu0 0.0
    %370 = vmatpush2.msra.mxu0 %v282
    %371 = vmatprep.subr.mxu0 0.0
    %372 = vmatpush2.msra.mxu0 %v281
    %373 = vmatprep.subr.mxu0 0.0
    %374 = vmatpush2.msra.mxu0 %v280
    %375 = vmatprep.subr.mxu0 0.0
    %376 = vmatpush2.msra.mxu0 %v279
    %377 = vmatprep.subr.mxu0 0.0
    %378 = vmatpush2.msra.mxu0 %v278
    %379 = vmatprep.mubr.f32.mxu0 %v258
    %380 = vmatmul.mubr.f32.gmra.mxu0 %v256
    %v381 = vpop.f32.mrf.mxu0
    %v382 = vadd.f32 %v314, %v381
    %v383 = vpop.f32.mrf.mxu0
    %384 = vmatprep.mubr.f32.mxu0 %v259
    %385 = vmatmul.mubr.f32.gmra.mxu0 %v257
    %v386 = vpop.f32.mrf.mxu0
    %v387 = vadd.f32 %v314, %v386
    %v388 = vpop.f32.mrf.mxu0
    %389 = vdwg.mxu0
    %390 = vmatprep.subr.mxu0 0.0
    %391 = vmatpush1.msra.mxu0 %v309
    %392 = vmatprep.subr.mxu0 0.0
    %393 = vmatpush1.msra.mxu0 %v308
    %394 = vmatprep.subr.mxu0 0.0
    %395 = vmatpush1.msra.mxu0 %v307
    %396 = vmatprep.subr.mxu0 0.0
    %397 = vmatpush1.msra.mxu0 %v306
    %398 = vmatprep.subr.mxu0 0.0
    %399 = vmatpush1.msra.mxu0 %v305
    %400 = vmatprep.subr.mxu0 0.0
    %401 = vmatpush1.msra.mxu0 %v304
    %402 = vmatprep.subr.mxu0 0.0
    %403 = vmatpush1.msra.mxu0 %v303
    %404 = vmatprep.subr.mxu0 0.0
    %405 = vmatpush1.msra.mxu0 %v302
    %406 = vmatprep.subr.mxu0 0.0
    %407 = vmatpush1.msra.mxu0 %v301
    %408 = vmatprep.subr.mxu0 0.0
    %409 = vmatpush1.msra.mxu0 %v300
    %410 = vmatprep.subr.mxu0 0.0
    %411 = vmatpush1.msra.mxu0 %v299
    %412 = vmatprep.subr.mxu0 0.0
    %413 = vmatpush1.msra.mxu0 %v298
    %414 = vmatprep.subr.mxu0 0.0
    %415 = vmatpush1.msra.mxu0 %v297
    %416 = vmatprep.subr.mxu0 0.0
    %417 = vmatpush1.msra.mxu0 %v296
    %418 = vmatprep.subr.mxu0 0.0
    %419 = vmatpush1.msra.mxu0 %v295
    %420 = vmatprep.subr.mxu0 0.0
    %421 = vmatpush1.msra.mxu0 %v294
    %422 = vmatprep.subr.mxu0 0.0
    %423 = vmatpush2.msra.mxu0 0.0
    %424 = vmatprep.subr.mxu0 0.0
    %425 = vmatpush2.msra.mxu0 0.0
    %426 = vmatprep.subr.mxu0 0.0
    %427 = vmatpush2.msra.mxu0 0.0
    %428 = vmatprep.subr.mxu0 0.0
    %429 = vmatpush2.msra.mxu0 0.0
    %430 = vmatprep.subr.mxu0 0.0
    %431 = vmatpush2.msra.mxu0 0.0
    %432 = vmatprep.subr.mxu0 0.0
    %433 = vmatpush2.msra.mxu0 0.0
    %434 = vmatprep.subr.mxu0 0.0
    %435 = vmatpush2.msra.mxu0 0.0
    %436 = vmatprep.subr.mxu0 0.0
    %437 = vmatpush2.msra.mxu0 0.0
    %438 = vmatprep.subr.mxu0 0.0
    %439 = vmatpush2.msra.mxu0 0.0
    %440 = vmatprep.subr.mxu0 0.0
    %441 = vmatpush2.msra.mxu0 0.0
    %442 = vmatprep.subr.mxu0 0.0
    %443 = vmatpush2.msra.mxu0 0.0
    %444 = vmatprep.subr.mxu0 0.0
    %445 = vmatpush2.msra.mxu0 0.0
    %446 = vmatprep.subr.mxu0 0.0
    %447 = vmatpush2.msra.mxu0 0.0
    %448 = vmatprep.subr.mxu0 0.0
    %449 = vmatpush2.msra.mxu0 0.0
    %450 = vmatprep.subr.mxu0 0.0
    %451 = vmatpush2.msra.mxu0 0.0
    %452 = vmatprep.subr.mxu0 0.0
    %453 = vmatpush2.msra.mxu0 0.0
    %454 = vmatprep.mubr.f32.mxu0 0.0
    %455 = vmatmul.mubr.f32.gmra.mxu0 %v260
    %v456 = vpop.f32.mrf.mxu0
    %v457 = vadd.f32 %v382, %v456
    %v458 = vpop.f32.mrf.mxu0
    %459 = vmatprep.mubr.f32.mxu0 0.0
    %460 = vmatmul.mubr.f32.gmra.mxu0 %v261
    %v461 = vpop.f32.mrf.mxu0
    %v462 = vadd.f32 %v387, %v461
    %v463 = vpop.f32.mrf.mxu0
    %464 = vdwg.mxu0
    %v465 = vmax.f32 %v457, 0.0
    %v466 = vmax.f32 %v462, 0.0
    %467 = vst [vmem:[#allocation3 + $0x20] sm:$0xff] %v465
    %468 = vst [vmem:[#allocation3 + $0x28] sm:$0x3] %v466
    %v469 = vld [vmem:[#allocation3 + $0x1e] sm:$0xff]
    %v470 = vld [vmem:[#allocation3 + $0x26] sm:$0xf]
    %v471 = vld [vmem:[#allocation3 + $0x1f] sm:$0xff]
    %v472 = vld [vmem:[#allocation3 + $0x27] sm:$0xf]
    %v473 = vld [vmem:[#allocation3 + $0x20] sm:$0xff]
    %v474 = vld [vmem:[#allocation3 + $0x28] sm:$0xf]
    %s475 = scalar_lea.vmem [#allocation4], 384
    %v476 = vld [vmem:[%s475] sm:$0xff]
    %v477 = vld [vmem:[%s475 + $0x8] sm:$0xff]
    %v478 = vld [vmem:[%s475 + $0x10] sm:$0xff]
    %v479 = vld [vmem:[%s475 + $0x18] sm:$0xff]
    %v480 = vld [vmem:[%s475 + $0x20] sm:$0xff]
    %v481 = vld [vmem:[%s475 + $0x28] sm:$0xff]
    %v482 = vld [vmem:[%s475 + $0x30] sm:$0xff]
    %v483 = vld [vmem:[%s475 + $0x38] sm:$0xff]
    %v484 = vld [vmem:[%s475 + $0x40] sm:$0xff]
    %v485 = vld [vmem:[%s475 + $0x48] sm:$0xff]
    %v486 = vld [vmem:[%s475 + $0x50] sm:$0xff]
    %v487 = vld [vmem:[%s475 + $0x58] sm:$0xff]
    %v488 = vld [vmem:[%s475 + $0x60] sm:$0xff]
    %v489 = vld [vmem:[%s475 + $0x68] sm:$0xff]
    %v490 = vld [vmem:[%s475 + $0x70] sm:$0xff]
    %v491 = vld [vmem:[%s475 + $0x78] sm:$0xff]
    %v492 = vld [vmem:[%s475 + $0x80] sm:$0xff]
    %v493 = vld [vmem:[%s475 + $0x88] sm:$0xff]
    %v494 = vld [vmem:[%s475 + $0x90] sm:$0xff]
    %v495 = vld [vmem:[%s475 + $0x98] sm:$0xff]
    %v496 = vld [vmem:[%s475 + $0xa0] sm:$0xff]
    %v497 = vld [vmem:[%s475 + $0xa8] sm:$0xff]
    %v498 = vld [vmem:[%s475 + $0xb0] sm:$0xff]
    %v499 = vld [vmem:[%s475 + $0xb8] sm:$0xff]
    %v500 = vld [vmem:[%s475 + $0xc0] sm:$0xff]
    %v501 = vld [vmem:[%s475 + $0xc8] sm:$0xff]
    %v502 = vld [vmem:[%s475 + $0xd0] sm:$0xff]
    %v503 = vld [vmem:[%s475 + $0xd8] sm:$0xff]
    %v504 = vld [vmem:[%s475 + $0xe0] sm:$0xff]
    %v505 = vld [vmem:[%s475 + $0xe8] sm:$0xff]
    %v506 = vld [vmem:[%s475 + $0xf0] sm:$0xff]
    %v507 = vld [vmem:[%s475 + $0xf8] sm:$0xff]
    %v508 = vld [vmem:[%s475 + $0x100] sm:$0xff]
    %v509 = vld [vmem:[%s475 + $0x108] sm:$0xff]
    %v510 = vld [vmem:[%s475 + $0x110] sm:$0xff]
    %v511 = vld [vmem:[%s475 + $0x118] sm:$0xff]
    %v512 = vld [vmem:[%s475 + $0x120] sm:$0xff]
    %v513 = vld [vmem:[%s475 + $0x128] sm:$0xff]
    %v514 = vld [vmem:[%s475 + $0x130] sm:$0xff]
    %v515 = vld [vmem:[%s475 + $0x138] sm:$0xff]
    %v516 = vld [vmem:[%s475 + $0x140] sm:$0xff]
    %v517 = vld [vmem:[%s475 + $0x148] sm:$0xff]
    %v518 = vld [vmem:[%s475 + $0x150] sm:$0xff]
    %v519 = vld [vmem:[%s475 + $0x158] sm:$0xff]
    %v520 = vld [vmem:[%s475 + $0x160] sm:$0xff]
    %v521 = vld [vmem:[%s475 + $0x168] sm:$0xff]
    %v522 = vld [vmem:[%s475 + $0x170] sm:$0xff]
    %v523 = vld [vmem:[%s475 + $0x178] sm:$0xff]
    %v524 = vld [vmem:[#allocation6 + $0x1] sm:$0x1]
    %v525 = vlaneseq
    %v526 = vshrl.u32 %v525, 7
    %v527 = vsub.s32 0, %v526
    %v528 = vrot.slane %v524, %v527
    %529 = vmatprep.subr.mxu0 0.0
    %530 = vmatpush1.msra.mxu0 %v491
    %531 = vmatprep.subr.mxu0 0.0
    %532 = vmatpush1.msra.mxu0 %v490
    %533 = vmatprep.subr.mxu0 0.0
    %534 = vmatpush1.msra.mxu0 %v489
    %535 = vmatprep.subr.mxu0 0.0
    %536 = vmatpush1.msra.mxu0 %v488
    %537 = vmatprep.subr.mxu0 0.0
    %538 = vmatpush1.msra.mxu0 %v487
    %539 = vmatprep.subr.mxu0 0.0
    %540 = vmatpush1.msra.mxu0 %v486
    %541 = vmatprep.subr.mxu0 0.0
    %542 = vmatpush1.msra.mxu0 %v485
    %543 = vmatprep.subr.mxu0 0.0
    %544 = vmatpush1.msra.mxu0 %v484
    %545 = vmatprep.subr.mxu0 0.0
    %546 = vmatpush1.msra.mxu0 %v483
    %547 = vmatprep.subr.mxu0 0.0
    %548 = vmatpush1.msra.mxu0 %v482
    %549 = vmatprep.subr.mxu0 0.0
    %550 = vmatpush1.msra.mxu0 %v481
    %551 = vmatprep.subr.mxu0 0.0
    %552 = vmatpush1.msra.mxu0 %v480
    %553 = vmatprep.subr.mxu0 0.0
    %554 = vmatpush1.msra.mxu0 %v479
    %555 = vmatprep.subr.mxu0 0.0
    %556 = vmatpush1.msra.mxu0 %v478
    %557 = vmatprep.subr.mxu0 0.0
    %558 = vmatpush1.msra.mxu0 %v477
    %559 = vmatprep.subr.mxu0 0.0
    %560 = vmatpush1.msra.mxu0 %v476
    %561 = vmatprep.subr.mxu0 0.0
    %562 = vmatpush2.msra.mxu0 %v507
    %563 = vmatprep.subr.mxu0 0.0
    %564 = vmatpush2.msra.mxu0 %v506
    %565 = vmatprep.subr.mxu0 0.0
    %566 = vmatpush2.msra.mxu0 %v505
    %567 = vmatprep.subr.mxu0 0.0
    %568 = vmatpush2.msra.mxu0 %v504
    %569 = vmatprep.subr.mxu0 0.0
    %570 = vmatpush2.msra.mxu0 %v503
    %571 = vmatprep.subr.mxu0 0.0
    %572 = vmatpush2.msra.mxu0 %v502
    %573 = vmatprep.subr.mxu0 0.0
    %574 = vmatpush2.msra.mxu0 %v501
    %575 = vmatprep.subr.mxu0 0.0
    %576 = vmatpush2.msra.mxu0 %v500
    %577 = vmatprep.subr.mxu0 0.0
    %578 = vmatpush2.msra.mxu0 %v499
    %579 = vmatprep.subr.mxu0 0.0
    %580 = vmatpush2.msra.mxu0 %v498
    %581 = vmatprep.subr.mxu0 0.0
    %582 = vmatpush2.msra.mxu0 %v497
    %583 = vmatprep.subr.mxu0 0.0
    %584 = vmatpush2.msra.mxu0 %v496
    %585 = vmatprep.subr.mxu0 0.0
    %586 = vmatpush2.msra.mxu0 %v495
    %587 = vmatprep.subr.mxu0 0.0
    %588 = vmatpush2.msra.mxu0 %v494
    %589 = vmatprep.subr.mxu0 0.0
    %590 = vmatpush2.msra.mxu0 %v493
    %591 = vmatprep.subr.mxu0 0.0
    %592 = vmatpush2.msra.mxu0 %v492
    %593 = vmatprep.mubr.f32.mxu0 %v471
    %594 = vmatmul.mubr.f32.gmra.mxu0 %v469
    %v595 = vpop.f32.mrf.mxu0
    %v596 = vadd.f32 %v528, %v595
    %v597 = vpop.f32.mrf.mxu0
    %598 = vmatprep.mubr.f32.mxu0 %v472
    %599 = vmatmul.mubr.f32.gmra.mxu0 %v470
    %v600 = vpop.f32.mrf.mxu0
    %v601 = vadd.f32 %v528, %v600
    %v602 = vpop.f32.mrf.mxu0
    %603 = vdwg.mxu0
    %604 = vmatprep.subr.mxu0 0.0
    %605 = vmatpush1.msra.mxu0 %v523
    %606 = vmatprep.subr.mxu0 0.0
    %607 = vmatpush1.msra.mxu0 %v522
    %608 = vmatprep.subr.mxu0 0.0
    %609 = vmatpush1.msra.mxu0 %v521
    %610 = vmatprep.subr.mxu0 0.0
    %611 = vmatpush1.msra.mxu0 %v520
    %612 = vmatprep.subr.mxu0 0.0
    %613 = vmatpush1.msra.mxu0 %v519
    %614 = vmatprep.subr.mxu0 0.0
    %615 = vmatpush1.msra.mxu0 %v518
    %616 = vmatprep.subr.mxu0 0.0
    %617 = vmatpush1.msra.mxu0 %v517
    %618 = vmatprep.subr.mxu0 0.0
    %619 = vmatpush1.msra.mxu0 %v516
    %620 = vmatprep.subr.mxu0 0.0
    %621 = vmatpush1.msra.mxu0 %v515
    %622 = vmatprep.subr.mxu0 0.0
    %623 = vmatpush1.msra.mxu0 %v514
    %624 = vmatprep.subr.mxu0 0.0
    %625 = vmatpush1.msra.mxu0 %v513
    %626 = vmatprep.subr.mxu0 0.0
    %627 = vmatpush1.msra.mxu0 %v512
    %628 = vmatprep.subr.mxu0 0.0
    %629 = vmatpush1.msra.mxu0 %v511
    %630 = vmatprep.subr.mxu0 0.0
    %631 = vmatpush1.msra.mxu0 %v510
    %632 = vmatprep.subr.mxu0 0.0
    %633 = vmatpush1.msra.mxu0 %v509
    %634 = vmatprep.subr.mxu0 0.0
    %635 = vmatpush1.msra.mxu0 %v508
    %636 = vmatprep.subr.mxu0 0.0
    %637 = vmatpush2.msra.mxu0 0.0
    %638 = vmatprep.subr.mxu0 0.0
    %639 = vmatpush2.msra.mxu0 0.0
    %640 = vmatprep.subr.mxu0 0.0
    %641 = vmatpush2.msra.mxu0 0.0
    %642 = vmatprep.subr.mxu0 0.0
    %643 = vmatpush2.msra.mxu0 0.0
    %644 = vmatprep.subr.mxu0 0.0
    %645 = vmatpush2.msra.mxu0 0.0
    %646 = vmatprep.subr.mxu0 0.0
    %647 = vmatpush2.msra.mxu0 0.0
    %648 = vmatprep.subr.mxu0 0.0
    %649 = vmatpush2.msra.mxu0 0.0
    %650 = vmatprep.subr.mxu0 0.0
    %651 = vmatpush2.msra.mxu0 0.0
    %652 = vmatprep.subr.mxu0 0.0
    %653 = vmatpush2.msra.mxu0 0.0
    %654 = vmatprep.subr.mxu0 0.0
    %655 = vmatpush2.msra.mxu0 0.0
    %656 = vmatprep.subr.mxu0 0.0
    %657 = vmatpush2.msra.mxu0 0.0
    %658 = vmatprep.subr.mxu0 0.0
    %659 = vmatpush2.msra.mxu0 0.0
    %660 = vmatprep.subr.mxu0 0.0
    %661 = vmatpush2.msra.mxu0 0.0
    %662 = vmatprep.subr.mxu0 0.0
    %663 = vmatpush2.msra.mxu0 0.0
    %664 = vmatprep.subr.mxu0 0.0
    %665 = vmatpush2.msra.mxu0 0.0
    %666 = vmatprep.subr.mxu0 0.0
    %667 = vmatpush2.msra.mxu0 0.0
    %668 = vmatprep.mubr.f32.mxu0 0.0
    %669 = vmatmul.mubr.f32.gmra.mxu0 %v473
    %v670 = vpop.f32.mrf.mxu0
    %v671 = vadd.f32 %v596, %v670
    %v672 = vpop.f32.mrf.mxu0
    %673 = vmatprep.mubr.f32.mxu0 0.0
    %674 = vmatmul.mubr.f32.gmra.mxu0 %v474
    %v675 = vpop.f32.mrf.mxu0
    %v676 = vadd.f32 %v601, %v675
    %v677 = vpop.f32.mrf.mxu0
    %678 = vdwg.mxu0
    %v679 = vmax.f32 %v671, 0.0
    %v680 = vmax.f32 %v676, 0.0
    %681 = vst [vmem:[#allocation2 + $0x20] sm:$0xff] %v679
    %682 = vst [vmem:[#allocation2 + $0x28] sm:$0xf] %v680
    %v683 = vld [vmem:[#allocation2 + $0x1c] sm:$0xff]
    %v684 = vld [vmem:[#allocation2 + $0x24] sm:$0xff]
    %v685 = vld [vmem:[#allocation2 + $0x1e] sm:$0xff]
    %v686 = vld [vmem:[#allocation2 + $0x26] sm:$0xff]
    %v687 = vld [vmem:[#allocation2 + $0x20] sm:$0xff]
    %v688 = vld [vmem:[#allocation2 + $0x28] sm:$0xff]
    %s689 = scalar_lea.vmem [#allocation4], 768
    %v690 = vld [vmem:[%s689] sm:$0xff]
    %v691 = vld [vmem:[%s689 + $0x8] sm:$0xff]
    %v692 = vld [vmem:[%s689 + $0x10] sm:$0xff]
    %v693 = vld [vmem:[%s689 + $0x18] sm:$0xff]
    %v694 = vld [vmem:[%s689 + $0x20] sm:$0xff]
    %v695 = vld [vmem:[%s689 + $0x28] sm:$0xff]
    %v696 = vld [vmem:[%s689 + $0x30] sm:$0xff]
    %v697 = vld [vmem:[%s689 + $0x38] sm:$0xff]
    %v698 = vld [vmem:[%s689 + $0x40] sm:$0xff]
    %v699 = vld [vmem:[%s689 + $0x48] sm:$0xff]
    %v700 = vld [vmem:[%s689 + $0x50] sm:$0xff]
    %v701 = vld [vmem:[%s689 + $0x58] sm:$0xff]
    %v702 = vld [vmem:[%s689 + $0x60] sm:$0xff]
    %v703 = vld [vmem:[%s689 + $0x68] sm:$0xff]
    %v704 = vld [vmem:[%s689 + $0x70] sm:$0xff]
    %v705 = vld [vmem:[%s689 + $0x78] sm:$0xff]
    %v706 = vld [vmem:[%s689 + $0x80] sm:$0xff]
    %v707 = vld [vmem:[%s689 + $0x88] sm:$0xff]
    %v708 = vld [vmem:[%s689 + $0x90] sm:$0xff]
    %v709 = vld [vmem:[%s689 + $0x98] sm:$0xff]
    %v710 = vld [vmem:[%s689 + $0xa0] sm:$0xff]
    %v711 = vld [vmem:[%s689 + $0xa8] sm:$0xff]
    %v712 = vld [vmem:[%s689 + $0xb0] sm:$0xff]
    %v713 = vld [vmem:[%s689 + $0xb8] sm:$0xff]
    %v714 = vld [vmem:[%s689 + $0xc0] sm:$0xff]
    %v715 = vld [vmem:[%s689 + $0xc8] sm:$0xff]
    %v716 = vld [vmem:[%s689 + $0xd0] sm:$0xff]
    %v717 = vld [vmem:[%s689 + $0xd8] sm:$0xff]
    %v718 = vld [vmem:[%s689 + $0xe0] sm:$0xff]
    %v719 = vld [vmem:[%s689 + $0xe8] sm:$0xff]
    %v720 = vld [vmem:[%s689 + $0xf0] sm:$0xff]
    %v721 = vld [vmem:[%s689 + $0xf8] sm:$0xff]
    %v722 = vld [vmem:[%s689 + $0x100] sm:$0xff]
    %v723 = vld [vmem:[%s689 + $0x108] sm:$0xff]
    %v724 = vld [vmem:[%s689 + $0x110] sm:$0xff]
    %v725 = vld [vmem:[%s689 + $0x118] sm:$0xff]
    %v726 = vld [vmem:[%s689 + $0x120] sm:$0xff]
    %v727 = vld [vmem:[%s689 + $0x128] sm:$0xff]
    %v728 = vld [vmem:[%s689 + $0x130] sm:$0xff]
    %v729 = vld [vmem:[%s689 + $0x138] sm:$0xff]
    %v730 = vld [vmem:[%s689 + $0x140] sm:$0xff]
    %v731 = vld [vmem:[%s689 + $0x148] sm:$0xff]
    %v732 = vld [vmem:[%s689 + $0x150] sm:$0xff]
    %v733 = vld [vmem:[%s689 + $0x158] sm:$0xff]
    %v734 = vld [vmem:[%s689 + $0x160] sm:$0xff]
    %v735 = vld [vmem:[%s689 + $0x168] sm:$0xff]
    %v736 = vld [vmem:[%s689 + $0x170] sm:$0xff]
    %v737 = vld [vmem:[%s689 + $0x178] sm:$0xff]
    %v738 = vld [vmem:[#allocation6 + $0x2] sm:$0x1]
    %v739 = vlaneseq
    %v740 = vshrl.u32 %v739, 7
    %v741 = vsub.s32 0, %v740
    %v742 = vrot.slane %v738, %v741
    %743 = vmatprep.subr.mxu0 0.0
    %744 = vmatpush1.msra.mxu0 %v705
    %745 = vmatprep.subr.mxu0 0.0
    %746 = vmatpush1.msra.mxu0 %v704
    %747 = vmatprep.subr.mxu0 0.0
    %748 = vmatpush1.msra.mxu0 %v703
    %749 = vmatprep.subr.mxu0 0.0
    %750 = vmatpush1.msra.mxu0 %v702
    %751 = vmatprep.subr.mxu0 0.0
    %752 = vmatpush1.msra.mxu0 %v701
    %753 = vmatprep.subr.mxu0 0.0
    %754 = vmatpush1.msra.mxu0 %v700
    %755 = vmatprep.subr.mxu0 0.0
    %756 = vmatpush1.msra.mxu0 %v699
    %757 = vmatprep.subr.mxu0 0.0
    %758 = vmatpush1.msra.mxu0 %v698
    %759 = vmatprep.subr.mxu0 0.0
    %760 = vmatpush1.msra.mxu0 %v697
    %761 = vmatprep.subr.mxu0 0.0
    %762 = vmatpush1.msra.mxu0 %v696
    %763 = vmatprep.subr.mxu0 0.0
    %764 = vmatpush1.msra.mxu0 %v695
    %765 = vmatprep.subr.mxu0 0.0
    %766 = vmatpush1.msra.mxu0 %v694
    %767 = vmatprep.subr.mxu0 0.0
    %768 = vmatpush1.msra.mxu0 %v693
    %769 = vmatprep.subr.mxu0 0.0
    %770 = vmatpush1.msra.mxu0 %v692
    %771 = vmatprep.subr.mxu0 0.0
    %772 = vmatpush1.msra.mxu0 %v691
    %773 = vmatprep.subr.mxu0 0.0
    %774 = vmatpush1.msra.mxu0 %v690
    %775 = vmatprep.subr.mxu0 0.0
    %776 = vmatpush2.msra.mxu0 %v721
    %777 = vmatprep.subr.mxu0 0.0
    %778 = vmatpush2.msra.mxu0 %v720
    %779 = vmatprep.subr.mxu0 0.0
    %780 = vmatpush2.msra.mxu0 %v719
    %781 = vmatprep.subr.mxu0 0.0
    %782 = vmatpush2.msra.mxu0 %v718
    %783 = vmatprep.subr.mxu0 0.0
    %784 = vmatpush2.msra.mxu0 %v717
    %785 = vmatprep.subr.mxu0 0.0
    %786 = vmatpush2.msra.mxu0 %v716
    %787 = vmatprep.subr.mxu0 0.0
    %788 = vmatpush2.msra.mxu0 %v715
    %789 = vmatprep.subr.mxu0 0.0
    %790 = vmatpush2.msra.mxu0 %v714
    %791 = vmatprep.subr.mxu0 0.0
    %792 = vmatpush2.msra.mxu0 %v713
    %793 = vmatprep.subr.mxu0 0.0
    %794 = vmatpush2.msra.mxu0 %v712
    %795 = vmatprep.subr.mxu0 0.0
    %796 = vmatpush2.msra.mxu0 %v711
    %797 = vmatprep.subr.mxu0 0.0
    %798 = vmatpush2.msra.mxu0 %v710
    %799 = vmatprep.subr.mxu0 0.0
    %800 = vmatpush2.msra.mxu0 %v709
    %801 = vmatprep.subr.mxu0 0.0
    %802 = vmatpush2.msra.mxu0 %v708
    %803 = vmatprep.subr.mxu0 0.0
    %804 = vmatpush2.msra.mxu0 %v707
    %805 = vmatprep.subr.mxu0 0.0
    %806 = vmatpush2.msra.mxu0 %v706
    %807 = vmatprep.mubr.f32.mxu0 %v685
    %808 = vmatmul.mubr.f32.gmra.mxu0 %v683
    %v809 = vpop.f32.mrf.mxu0
    %v810 = vadd.f32 %v742, %v809
    %v811 = vpop.f32.mrf.mxu0
    %812 = vmatprep.mubr.f32.mxu0 %v686
    %813 = vmatmul.mubr.f32.gmra.mxu0 %v684
    %v814 = vpop.f32.mrf.mxu0
    %v815 = vadd.f32 %v742, %v814
    %v816 = vpop.f32.mrf.mxu0
    %817 = vdwg.mxu0
    %818 = vmatprep.subr.mxu0 0.0
    %819 = vmatpush1.msra.mxu0 %v737
    %820 = vmatprep.subr.mxu0 0.0
    %821 = vmatpush1.msra.mxu0 %v736
    %822 = vmatprep.subr.mxu0 0.0
    %823 = vmatpush1.msra.mxu0 %v735
    %824 = vmatprep.subr.mxu0 0.0
    %825 = vmatpush1.msra.mxu0 %v734
    %826 = vmatprep.subr.mxu0 0.0
    %827 = vmatpush1.msra.mxu0 %v733
    %828 = vmatprep.subr.mxu0 0.0
    %829 = vmatpush1.msra.mxu0 %v732
    %830 = vmatprep.subr.mxu0 0.0
    %831 = vmatpush1.msra.mxu0 %v731
    %832 = vmatprep.subr.mxu0 0.0
    %833 = vmatpush1.msra.mxu0 %v730
    %834 = vmatprep.subr.mxu0 0.0
    %835 = vmatpush1.msra.mxu0 %v729
    %836 = vmatprep.subr.mxu0 0.0
    %837 = vmatpush1.msra.mxu0 %v728
    %838 = vmatprep.subr.mxu0 0.0
    %839 = vmatpush1.msra.mxu0 %v727
    %840 = vmatprep.subr.mxu0 0.0
    %841 = vmatpush1.msra.mxu0 %v726
    %842 = vmatprep.subr.mxu0 0.0
    %843 = vmatpush1.msra.mxu0 %v725
    %844 = vmatprep.subr.mxu0 0.0
    %845 = vmatpush1.msra.mxu0 %v724
    %846 = vmatprep.subr.mxu0 0.0
    %847 = vmatpush1.msra.mxu0 %v723
    %848 = vmatprep.subr.mxu0 0.0
    %849 = vmatpush1.msra.mxu0 %v722
    %850 = vmatprep.subr.mxu0 0.0
    %851 = vmatpush2.msra.mxu0 0.0
    %852 = vmatprep.subr.mxu0 0.0
    %853 = vmatpush2.msra.mxu0 0.0
    %854 = vmatprep.subr.mxu0 0.0
    %855 = vmatpush2.msra.mxu0 0.0
    %856 = vmatprep.subr.mxu0 0.0
    %857 = vmatpush2.msra.mxu0 0.0
    %858 = vmatprep.subr.mxu0 0.0
    %859 = vmatpush2.msra.mxu0 0.0
    %860 = vmatprep.subr.mxu0 0.0
    %861 = vmatpush2.msra.mxu0 0.0
    %862 = vmatprep.subr.mxu0 0.0
    %863 = vmatpush2.msra.mxu0 0.0
    %864 = vmatprep.subr.mxu0 0.0
    %865 = vmatpush2.msra.mxu0 0.0
    %866 = vmatprep.subr.mxu0 0.0
    %867 = vmatpush2.msra.mxu0 0.0
    %868 = vmatprep.subr.mxu0 0.0
    %869 = vmatpush2.msra.mxu0 0.0
    %870 = vmatprep.subr.mxu0 0.0
    %871 = vmatpush2.msra.mxu0 0.0
    %872 = vmatprep.subr.mxu0 0.0
    %873 = vmatpush2.msra.mxu0 0.0
    %874 = vmatprep.subr.mxu0 0.0
    %875 = vmatpush2.msra.mxu0 0.0
    %876 = vmatprep.subr.mxu0 0.0
    %877 = vmatpush2.msra.mxu0 0.0
    %878 = vmatprep.subr.mxu0 0.0
    %879 = vmatpush2.msra.mxu0 0.0
    %880 = vmatprep.subr.mxu0 0.0
    %881 = vmatpush2.msra.mxu0 0.0
    %882 = vmatprep.mubr.f32.mxu0 0.0
    %883 = vmatmul.mubr.f32.gmra.mxu0 %v687
    %v884 = vpop.f32.mrf.mxu0
    %v885 = vadd.f32 %v810, %v884
    %v886 = vpop.f32.mrf.mxu0
    %887 = vmatprep.mubr.f32.mxu0 0.0
    %888 = vmatmul.mubr.f32.gmra.mxu0 %v688
    %v889 = vpop.f32.mrf.mxu0
    %v890 = vadd.f32 %v815, %v889
    %v891 = vpop.f32.mrf.mxu0
    %892 = vdwg.mxu0
    %v893 = vmax.f32 %v885, 0.0
    %v894 = vmax.f32 %v890, 0.0
    %895 = vst [vmem:[#allocation3 + $0x20] sm:$0xff] %v893
    %896 = vst [vmem:[#allocation3 + $0x28] sm:$0xff] %v894
    %v897 = vld [vmem:[#allocation3 + $0x1c] sm:$0xff]
    %v898 = vld [vmem:[#allocation3 + $0x24] sm:$0xff]
    %v899 = vld [vmem:[#allocation3 + $0x2c] sm:$0xf]
    %v900 = vld [vmem:[#allocation3 + $0x1e] sm:$0xff]
    %v901 = vld [vmem:[#allocation3 + $0x26] sm:$0xff]
    %v902 = vld [vmem:[#allocation3 + $0x2e] sm:$0xf]
    %v903 = vld [vmem:[#allocation3 + $0x20] sm:$0xff]
    %v904 = vld [vmem:[#allocation3 + $0x28] sm:$0xff]
    %v905 = vld [vmem:[#allocation3 + $0x30] sm:$0xf]
    %s906 = scalar_lea.vmem [#allocation4], 1152
    %v907 = vld [vmem:[%s906] sm:$0xff]
    %v908 = vld [vmem:[%s906 + $0x8] sm:$0xff]
    %v909 = vld [vmem:[%s906 + $0x10] sm:$0xff]
    %v910 = vld [vmem:[%s906 + $0x18] sm:$0xff]
    %v911 = vld [vmem:[%s906 + $0x20] sm:$0xff]
    %v912 = vld [vmem:[%s906 + $0x28] sm:$0xff]
    %v913 = vld [vmem:[%s906 + $0x30] sm:$0xff]
    %v914 = vld [vmem:[%s906 + $0x38] sm:$0xff]
    %v915 = vld [vmem:[%s906 + $0x40] sm:$0xff]
    %v916 = vld [vmem:[%s906 + $0x48] sm:$0xff]
    %v917 = vld [vmem:[%s906 + $0x50] sm:$0xff]
    %v918 = vld [vmem:[%s906 + $0x58] sm:$0xff]
    %v919 = vld [vmem:[%s906 + $0x60] sm:$0xff]
    %v920 = vld [vmem:[%s906 + $0x68] sm:$0xff]
    %v921 = vld [vmem:[%s906 + $0x70] sm:$0xff]
    %v922 = vld [vmem:[%s906 + $0x78] sm:$0xff]
    %v923 = vld [vmem:[%s906 + $0x80] sm:$0xff]
    %v924 = vld [vmem:[%s906 + $0x88] sm:$0xff]
    %v925 = vld [vmem:[%s906 + $0x90] sm:$0xff]
    %v926 = vld [vmem:[%s906 + $0x98] sm:$0xff]
    %v927 = vld [vmem:[%s906 + $0xa0] sm:$0xff]
    %v928 = vld [vmem:[%s906 + $0xa8] sm:$0xff]
    %v929 = vld [vmem:[%s906 + $0xb0] sm:$0xff]
    %v930 = vld [vmem:[%s906 + $0xb8] sm:$0xff]
    %v931 = vld [vmem:[%s906 + $0xc0] sm:$0xff]
    %v932 = vld [vmem:[%s906 + $0xc8] sm:$0xff]
    %v933 = vld [vmem:[%s906 + $0xd0] sm:$0xff]
    %v934 = vld [vmem:[%s906 + $0xd8] sm:$0xff]
    %v935 = vld [vmem:[%s906 + $0xe0] sm:$0xff]
    %v936 = vld [vmem:[%s906 + $0xe8] sm:$0xff]
    %v937 = vld [vmem:[%s906 + $0xf0] sm:$0xff]
    %v938 = vld [vmem:[%s906 + $0xf8] sm:$0xff]
    %v939 = vld [vmem:[%s906 + $0x100] sm:$0xff]
    %v940 = vld [vmem:[%s906 + $0x108] sm:$0xff]
    %v941 = vld [vmem:[%s906 + $0x110] sm:$0xff]
    %v942 = vld [vmem:[%s906 + $0x118] sm:$0xff]
    %v943 = vld [vmem:[%s906 + $0x120] sm:$0xff]
    %v944 = vld [vmem:[%s906 + $0x128] sm:$0xff]
    %v945 = vld [vmem:[%s906 + $0x130] sm:$0xff]
    %v946 = vld [vmem:[%s906 + $0x138] sm:$0xff]
    %v947 = vld [vmem:[%s906 + $0x140] sm:$0xff]
    %v948 = vld [vmem:[%s906 + $0x148] sm:$0xff]
    %v949 = vld [vmem:[%s906 + $0x150] sm:$0xff]
    %v950 = vld [vmem:[%s906 + $0x158] sm:$0xff]
    %v951 = vld [vmem:[%s906 + $0x160] sm:$0xff]
    %v952 = vld [vmem:[%s906 + $0x168] sm:$0xff]
    %v953 = vld [vmem:[%s906 + $0x170] sm:$0xff]
    %v954 = vld [vmem:[%s906 + $0x178] sm:$0xff]
    %v955 = vld [vmem:[#allocation6 + $0x3] sm:$0x1]
    %v956 = vlaneseq
    %v957 = vshrl.u32 %v956, 7
    %v958 = vsub.s32 0, %v957
    %v959 = vrot.slane %v955, %v958
    %960 = vmatprep.subr.mxu0 0.0
    %961 = vmatpush1.msra.mxu0 %v922
    %962 = vmatprep.subr.mxu0 0.0
    %963 = vmatpush1.msra.mxu0 %v921
    %964 = vmatprep.subr.mxu0 0.0
    %965 = vmatpush1.msra.mxu0 %v920
    %966 = vmatprep.subr.mxu0 0.0
    %967 = vmatpush1.msra.mxu0 %v919
    %968 = vmatprep.subr.mxu0 0.0
    %969 = vmatpush1.msra.mxu0 %v918
    %970 = vmatprep.subr.mxu0 0.0
    %971 = vmatpush1.msra.mxu0 %v917
    %972 = vmatprep.subr.mxu0 0.0
    %973 = vmatpush1.msra.mxu0 %v916
    %974 = vmatprep.subr.mxu0 0.0
    %975 = vmatpush1.msra.mxu0 %v915
    %976 = vmatprep.subr.mxu0 0.0
    %977 = vmatpush1.msra.mxu0 %v914
    %978 = vmatprep.subr.mxu0 0.0
    %979 = vmatpush1.msra.mxu0 %v913
    %980 = vmatprep.subr.mxu0 0.0
    %981 = vmatpush1.msra.mxu0 %v912
    %982 = vmatprep.subr.mxu0 0.0
    %983 = vmatpush1.msra.mxu0 %v911
    %984 = vmatprep.subr.mxu0 0.0
    %985 = vmatpush1.msra.mxu0 %v910
    %986 = vmatprep.subr.mxu0 0.0
    %987 = vmatpush1.msra.mxu0 %v909
    %988 = vmatprep.subr.mxu0 0.0
    %989 = vmatpush1.msra.mxu0 %v908
    %990 = vmatprep.subr.mxu0 0.0
    %991 = vmatpush1.msra.mxu0 %v907
    %992 = vmatprep.subr.mxu0 0.0
    %993 = vmatpush2.msra.mxu0 %v938
    %994 = vmatprep.subr.mxu0 0.0
    %995 = vmatpush2.msra.mxu0 %v937
    %996 = vmatprep.subr.mxu0 0.0
    %997 = vmatpush2.msra.mxu0 %v936
    %998 = vmatprep.subr.mxu0 0.0
    %999 = vmatpush2.msra.mxu0 %v935
    %1000 = vmatprep.subr.mxu0 0.0
    %1001 = vmatpush2.msra.mxu0 %v934
    %1002 = vmatprep.subr.mxu0 0.0
    %1003 = vmatpush2.msra.mxu0 %v933
    %1004 = vmatprep.subr.mxu0 0.0
    %1005 = vmatpush2.msra.mxu0 %v932
    %1006 = vmatprep.subr.mxu0 0.0
    %1007 = vmatpush2.msra.mxu0 %v931
    %1008 = vmatprep.subr.mxu0 0.0
    %1009 = vmatpush2.msra.mxu0 %v930
    %1010 = vmatprep.subr.mxu0 0.0
    %1011 = vmatpush2.msra.mxu0 %v929
    %1012 = vmatprep.subr.mxu0 0.0
    %1013 = vmatpush2.msra.mxu0 %v928
    %1014 = vmatprep.subr.mxu0 0.0
    %1015 = vmatpush2.msra.mxu0 %v927
    %1016 = vmatprep.subr.mxu0 0.0
    %1017 = vmatpush2.msra.mxu0 %v926
    %1018 = vmatprep.subr.mxu0 0.0
    %1019 = vmatpush2.msra.mxu0 %v925
    %1020 = vmatprep.subr.mxu0 0.0
    %1021 = vmatpush2.msra.mxu0 %v924
    %1022 = vmatprep.subr.mxu0 0.0
    %1023 = vmatpush2.msra.mxu0 %v923
    %1024 = vmatprep.mubr.f32.mxu0 %v900
    %1025 = vmatmul.mubr.f32.gmra.mxu0 %v897
    %v1026 = vpop.f32.mrf.mxu0
    %v1027 = vadd.f32 %v959, %v1026
    %v1028 = vpop.f32.mrf.mxu0
    %1029 = vmatprep.mubr.f32.mxu0 %v901
    %1030 = vmatmul.mubr.f32.gmra.mxu0 %v898
    %v1031 = vpop.f32.mrf.mxu0
    %v1032 = vadd.f32 %v959, %v1031
    %v1033 = vpop.f32.mrf.mxu0
    %1034 = vmatprep.mubr.f32.mxu0 %v902
    %1035 = vmatmul.mubr.f32.gmra.mxu0 %v899
    %v1036 = vpop.f32.mrf.mxu0
    %v1037 = vadd.f32 %v959, %v1036
    %v1038 = vpop.f32.mrf.mxu0
    %1039 = vdwg.mxu0
    %1040 = vmatprep.subr.mxu0 0.0
    %1041 = vmatpush1.msra.mxu0 %v954
    %1042 = vmatprep.subr.mxu0 0.0
    %1043 = vmatpush1.msra.mxu0 %v953
    %1044 = vmatprep.subr.mxu0 0.0
    %1045 = vmatpush1.msra.mxu0 %v952
    %1046 = vmatprep.subr.mxu0 0.0
    %1047 = vmatpush1.msra.mxu0 %v951
    %1048 = vmatprep.subr.mxu0 0.0
    %1049 = vmatpush1.msra.mxu0 %v950
    %1050 = vmatprep.subr.mxu0 0.0
    %1051 = vmatpush1.msra.mxu0 %v949
    %1052 = vmatprep.subr.mxu0 0.0
    %1053 = vmatpush1.msra.mxu0 %v948
    %1054 = vmatprep.subr.mxu0 0.0
    %1055 = vmatpush1.msra.mxu0 %v947
    %1056 = vmatprep.subr.mxu0 0.0
    %1057 = vmatpush1.msra.mxu0 %v946
    %1058 = vmatprep.subr.mxu0 0.0
    %1059 = vmatpush1.msra.mxu0 %v945
    %1060 = vmatprep.subr.mxu0 0.0
    %1061 = vmatpush1.msra.mxu0 %v944
    %1062 = vmatprep.subr.mxu0 0.0
    %1063 = vmatpush1.msra.mxu0 %v943
    %1064 = vmatprep.subr.mxu0 0.0
    %1065 = vmatpush1.msra.mxu0 %v942
    %1066 = vmatprep.subr.mxu0 0.0
    %1067 = vmatpush1.msra.mxu0 %v941
    %1068 = vmatprep.subr.mxu0 0.0
    %1069 = vmatpush1.msra.mxu0 %v940
    %1070 = vmatprep.subr.mxu0 0.0
    %1071 = vmatpush1.msra.mxu0 %v939
    %1072 = vmatprep.subr.mxu0 0.0
    %1073 = vmatpush2.msra.mxu0 0.0
    %1074 = vmatprep.subr.mxu0 0.0
    %1075 = vmatpush2.msra.mxu0 0.0
    %1076 = vmatprep.subr.mxu0 0.0
    %1077 = vmatpush2.msra.mxu0 0.0
    %1078 = vmatprep.subr.mxu0 0.0
    %1079 = vmatpush2.msra.mxu0 0.0
    %1080 = vmatprep.subr.mxu0 0.0
    %1081 = vmatpush2.msra.mxu0 0.0
    %1082 = vmatprep.subr.mxu0 0.0
    %1083 = vmatpush2.msra.mxu0 0.0
    %1084 = vmatprep.subr.mxu0 0.0
    %1085 = vmatpush2.msra.mxu0 0.0
    %1086 = vmatprep.subr.mxu0 0.0
    %1087 = vmatpush2.msra.mxu0 0.0
    %1088 = vmatprep.subr.mxu0 0.0
    %1089 = vmatpush2.msra.mxu0 0.0
    %1090 = vmatprep.subr.mxu0 0.0
    %1091 = vmatpush2.msra.mxu0 0.0
    %1092 = vmatprep.subr.mxu0 0.0
    %1093 = vmatpush2.msra.mxu0 0.0
    %1094 = vmatprep.subr.mxu0 0.0
    %1095 = vmatpush2.msra.mxu0 0.0
    %1096 = vmatprep.subr.mxu0 0.0
    %1097 = vmatpush2.msra.mxu0 0.0
    %1098 = vmatprep.subr.mxu0 0.0
    %1099 = vmatpush2.msra.mxu0 0.0
    %1100 = vmatprep.subr.mxu0 0.0
    %1101 = vmatpush2.msra.mxu0 0.0
    %1102 = vmatprep.subr.mxu0 0.0
    %1103 = vmatpush2.msra.mxu0 0.0
    %1104 = vmatprep.mubr.f32.mxu0 0.0
    %1105 = vmatmul.mubr.f32.gmra.mxu0 %v903
    %v1106 = vpop.f32.mrf.mxu0
    %v1107 = vadd.f32 %v1027, %v1106
    %v1108 = vpop.f32.mrf.mxu0
    %1109 = vmatprep.mubr.f32.mxu0 0.0
    %1110 = vmatmul.mubr.f32.gmra.mxu0 %v904
    %v1111 = vpop.f32.mrf.mxu0
    %v1112 = vadd.f32 %v1032, %v1111
    %v1113 = vpop.f32.mrf.mxu0
    %1114 = vmatprep.mubr.f32.mxu0 0.0
    %1115 = vmatmul.mubr.f32.gmra.mxu0 %v905
    %v1116 = vpop.f32.mrf.mxu0
    %v1117 = vadd.f32 %v1037, %v1116
    %v1118 = vpop.f32.mrf.mxu0
    %1119 = vdwg.mxu0
    %v1120 = vmax.f32 %v1107, 0.0
    %v1121 = vmax.f32 %v1112, 0.0
    %v1122 = vmax.f32 %v1117, 0.0
    %1123 = vst [vmem:[#allocation2 + $0x20] sm:$0xff] %v1120
    %1124 = vst [vmem:[#allocation2 + $0x28] sm:$0xff] %v1121
    %1125 = vst [vmem:[#allocation2 + $0x30] sm:$0xf] %v1122
    %v1126 = vld [vmem:[#allocation2 + $0x18] sm:$0xff]
    %v1127 = vld [vmem:[#allocation2 + $0x20] sm:$0xff]
    %v1128 = vld [vmem:[#allocation2 + $0x28] sm:$0xff]
    %v1129 = vld [vmem:[#allocation2 + $0x30] sm:$0xf]
    %v1130 = vld [vmem:[#allocation2 + $0x1c] sm:$0xff]
    %v1131 = vld [vmem:[#allocation2 + $0x24] sm:$0xff]
    %v1132 = vld [vmem:[#allocation2 + $0x2c] sm:$0xff]
    %v1133 = vld [vmem:[#allocation2 + $0x34] sm:$0xf]
    %v1134 = vld [vmem:[#allocation2 + $0x30] sm:$0xff]
    %v1135 = vld [vmem:[#allocation2 + $0x38] sm:$0xf]
    %s1136 = scalar_lea.vmem [#allocation4], 1536
    %v1137 = vld [vmem:[%s1136] sm:$0xff]
    %v1138 = vld [vmem:[%s1136 + $0x8] sm:$0xff]
    %v1139 = vld [vmem:[%s1136 + $0x10] sm:$0xff]
    %v1140 = vld [vmem:[%s1136 + $0x18] sm:$0xff]
    %v1141 = vld [vmem:[%s1136 + $0x20] sm:$0xff]
    %v1142 = vld [vmem:[%s1136 + $0x28] sm:$0xff]
    %v1143 = vld [vmem:[%s1136 + $0x30] sm:$0xff]
    %v1144 = vld [vmem:[%s1136 + $0x38] sm:$0xff]
    %v1145 = vld [vmem:[%s1136 + $0x40] sm:$0xff]
    %v1146 = vld [vmem:[%s1136 + $0x48] sm:$0xff]
    %v1147 = vld [vmem:[%s1136 + $0x50] sm:$0xff]
    %v1148 = vld [vmem:[%s1136 + $0x58] sm:$0xff]
    %v1149 = vld [vmem:[%s1136 + $0x60] sm:$0xff]
    %v1150 = vld [vmem:[%s1136 + $0x68] sm:$0xff]
    %v1151 = vld [vmem:[%s1136 + $0x70] sm:$0xff]
    %v1152 = vld [vmem:[%s1136 + $0x78] sm:$0xff]
    %v1153 = vld [vmem:[%s1136 + $0x80] sm:$0xff]
    %v1154 = vld [vmem:[%s1136 + $0x88] sm:$0xff]
    %v1155 = vld [vmem:[%s1136 + $0x90] sm:$0xff]
    %v1156 = vld [vmem:[%s1136 + $0x98] sm:$0xff]
    %v1157 = vld [vmem:[%s1136 + $0xa0] sm:$0xff]
    %v1158 = vld [vmem:[%s1136 + $0xa8] sm:$0xff]
    %v1159 = vld [vmem:[%s1136 + $0xb0] sm:$0xff]
    %v1160 = vld [vmem:[%s1136 + $0xb8] sm:$0xff]
    %v1161 = vld [vmem:[%s1136 + $0xc0] sm:$0xff]
    %v1162 = vld [vmem:[%s1136 + $0xc8] sm:$0xff]
    %v1163 = vld [vmem:[%s1136 + $0xd0] sm:$0xff]
    %v1164 = vld [vmem:[%s1136 + $0xd8] sm:$0xff]
    %v1165 = vld [vmem:[%s1136 + $0xe0] sm:$0xff]
    %v1166 = vld [vmem:[%s1136 + $0xe8] sm:$0xff]
    %v1167 = vld [vmem:[%s1136 + $0xf0] sm:$0xff]
    %v1168 = vld [vmem:[%s1136 + $0xf8] sm:$0xff]
    %v1169 = vld [vmem:[%s1136 + $0x100] sm:$0xff]
    %v1170 = vld [vmem:[%s1136 + $0x108] sm:$0xff]
    %v1171 = vld [vmem:[%s1136 + $0x110] sm:$0xff]
    %v1172 = vld [vmem:[%s1136 + $0x118] sm:$0xff]
    %v1173 = vld [vmem:[%s1136 + $0x120] sm:$0xff]
    %v1174 = vld [vmem:[%s1136 + $0x128] sm:$0xff]
    %v1175 = vld [vmem:[%s1136 + $0x130] sm:$0xff]
    %v1176 = vld [vmem:[%s1136 + $0x138] sm:$0xff]
    %v1177 = vld [vmem:[%s1136 + $0x140] sm:$0xff]
    %v1178 = vld [vmem:[%s1136 + $0x148] sm:$0xff]
    %v1179 = vld [vmem:[%s1136 + $0x150] sm:$0xff]
    %v1180 = vld [vmem:[%s1136 + $0x158] sm:$0xff]
    %v1181 = vld [vmem:[%s1136 + $0x160] sm:$0xff]
    %v1182 = vld [vmem:[%s1136 + $0x168] sm:$0xff]
    %v1183 = vld [vmem:[%s1136 + $0x170] sm:$0xff]
    %v1184 = vld [vmem:[%s1136 + $0x178] sm:$0xff]
    %v1185 = vld [vmem:[#allocation6 + $0x4] sm:$0x1]
    %v1186 = vlaneseq
    %v1187 = vshrl.u32 %v1186, 7
    %v1188 = vsub.s32 0, %v1187
    %v1189 = vrot.slane %v1185, %v1188
    %1190 = vmatprep.subr.mxu0 0.0
    %1191 = vmatpush1.msra.mxu0 %v1152
    %1192 = vmatprep.subr.mxu0 0.0
    %1193 = vmatpush1.msra.mxu0 %v1151
    %1194 = vmatprep.subr.mxu0 0.0
    %1195 = vmatpush1.msra.mxu0 %v1150
    %1196 = vmatprep.subr.mxu0 0.0
    %1197 = vmatpush1.msra.mxu0 %v1149
    %1198 = vmatprep.subr.mxu0 0.0
    %1199 = vmatpush1.msra.mxu0 %v1148
    %1200 = vmatprep.subr.mxu0 0.0
    %1201 = vmatpush1.msra.mxu0 %v1147
    %1202 = vmatprep.subr.mxu0 0.0
    %1203 = vmatpush1.msra.mxu0 %v1146
    %1204 = vmatprep.subr.mxu0 0.0
    %1205 = vmatpush1.msra.mxu0 %v1145
    %1206 = vmatprep.subr.mxu0 0.0
    %1207 = vmatpush1.msra.mxu0 %v1144
    %1208 = vmatprep.subr.mxu0 0.0
    %1209 = vmatpush1.msra.mxu0 %v1143
    %1210 = vmatprep.subr.mxu0 0.0
    %1211 = vmatpush1.msra.mxu0 %v1142
    %1212 = vmatprep.subr.mxu0 0.0
    %1213 = vmatpush1.msra.mxu0 %v1141
    %1214 = vmatprep.subr.mxu0 0.0
    %1215 = vmatpush1.msra.mxu0 %v1140
    %1216 = vmatprep.subr.mxu0 0.0
    %1217 = vmatpush1.msra.mxu0 %v1139
    %1218 = vmatprep.subr.mxu0 0.0
    %1219 = vmatpush1.msra.mxu0 %v1138
    %1220 = vmatprep.subr.mxu0 0.0
    %1221 = vmatpush1.msra.mxu0 %v1137
    %1222 = vmatprep.subr.mxu0 0.0
    %1223 = vmatpush2.msra.mxu0 %v1168
    %1224 = vmatprep.subr.mxu0 0.0
    %1225 = vmatpush2.msra.mxu0 %v1167
    %1226 = vmatprep.subr.mxu0 0.0
    %1227 = vmatpush2.msra.mxu0 %v1166
    %1228 = vmatprep.subr.mxu0 0.0
    %1229 = vmatpush2.msra.mxu0 %v1165
    %1230 = vmatprep.subr.mxu0 0.0
    %1231 = vmatpush2.msra.mxu0 %v1164
    %1232 = vmatprep.subr.mxu0 0.0
    %1233 = vmatpush2.msra.mxu0 %v1163
    %1234 = vmatprep.subr.mxu0 0.0
    %1235 = vmatpush2.msra.mxu0 %v1162
    %1236 = vmatprep.subr.mxu0 0.0
    %1237 = vmatpush2.msra.mxu0 %v1161
    %1238 = vmatprep.subr.mxu0 0.0
    %1239 = vmatpush2.msra.mxu0 %v1160
    %1240 = vmatprep.subr.mxu0 0.0
    %1241 = vmatpush2.msra.mxu0 %v1159
    %1242 = vmatprep.subr.mxu0 0.0
    %1243 = vmatpush2.msra.mxu0 %v1158
    %1244 = vmatprep.subr.mxu0 0.0
    %1245 = vmatpush2.msra.mxu0 %v1157
    %1246 = vmatprep.subr.mxu0 0.0
    %1247 = vmatpush2.msra.mxu0 %v1156
    %1248 = vmatprep.subr.mxu0 0.0
    %1249 = vmatpush2.msra.mxu0 %v1155
    %1250 = vmatprep.subr.mxu0 0.0
    %1251 = vmatpush2.msra.mxu0 %v1154
    %1252 = vmatprep.subr.mxu0 0.0
    %1253 = vmatpush2.msra.mxu0 %v1153
    %1254 = vmatprep.mubr.f32.mxu0 %v1130
    %1255 = vmatmul.mubr.f32.gmra.mxu0 %v1126
    %v1256 = vpop.f32.mrf.mxu0
    %v1257 = vadd.f32 %v1189, %v1256
    %v1258 = vpop.f32.mrf.mxu0
    %1259 = vmatprep.mubr.f32.mxu0 %v1131
    %1260 = vmatmul.mubr.f32.gmra.mxu0 %v1127
    %v1261 = vpop.f32.mrf.mxu0
    %v1262 = vadd.f32 %v1189, %v1261
    %v1263 = vpop.f32.mrf.mxu0
    %1264 = vmatprep.mubr.f32.mxu0 %v1132
    %1265 = vmatmul.mubr.f32.gmra.mxu0 %v1128
    %v1266 = vpop.f32.mrf.mxu0
    %v1267 = vadd.f32 %v1189, %v1266
    %v1268 = vpop.f32.mrf.mxu0
    %1269 = vmatprep.mubr.f32.mxu0 %v1133
    %1270 = vmatmul.mubr.f32.gmra.mxu0 %v1129
    %v1271 = vpop.f32.mrf.mxu0
    %v1272 = vadd.f32 %v1189, %v1271
    %v1273 = vpop.f32.mrf.mxu0
    %1274 = vdwg.mxu0
    %1275 = vmatprep.subr.mxu0 0.0
    %1276 = vmatpush1.msra.mxu0 %v1184
    %1277 = vmatprep.subr.mxu0 0.0
    %1278 = vmatpush1.msra.mxu0 %v1183
    %1279 = vmatprep.subr.mxu0 0.0
    %1280 = vmatpush1.msra.mxu0 %v1182
    %1281 = vmatprep.subr.mxu0 0.0
    %1282 = vmatpush1.msra.mxu0 %v1181
    %1283 = vmatprep.subr.mxu0 0.0
    %1284 = vmatpush1.msra.mxu0 %v1180
    %1285 = vmatprep.subr.mxu0 0.0
    %1286 = vmatpush1.msra.mxu0 %v1179
    %1287 = vmatprep.subr.mxu0 0.0
    %1288 = vmatpush1.msra.mxu0 %v1178
    %1289 = vmatprep.subr.mxu0 0.0
    %1290 = vmatpush1.msra.mxu0 %v1177
    %1291 = vmatprep.subr.mxu0 0.0
    %1292 = vmatpush1.msra.mxu0 %v1176
    %1293 = vmatprep.subr.mxu0 0.0
    %1294 = vmatpush1.msra.mxu0 %v1175
    %1295 = vmatprep.subr.mxu0 0.0
    %1296 = vmatpush1.msra.mxu0 %v1174
    %1297 = vmatprep.subr.mxu0 0.0
    %1298 = vmatpush1.msra.mxu0 %v1173
    %1299 = vmatprep.subr.mxu0 0.0
    %1300 = vmatpush1.msra.mxu0 %v1172
    %1301 = vmatprep.subr.mxu0 0.0
    %1302 = vmatpush1.msra.mxu0 %v1171
    %1303 = vmatprep.subr.mxu0 0.0
    %1304 = vmatpush1.msra.mxu0 %v1170
    %1305 = vmatprep.subr.mxu0 0.0
    %1306 = vmatpush1.msra.mxu0 %v1169
    %1307 = vmatprep.subr.mxu0 0.0
    %1308 = vmatpush2.msra.mxu0 0.0
    %1309 = vmatprep.subr.mxu0 0.0
    %1310 = vmatpush2.msra.mxu0 0.0
    %1311 = vmatprep.subr.mxu0 0.0
    %1312 = vmatpush2.msra.mxu0 0.0
    %1313 = vmatprep.subr.mxu0 0.0
    %1314 = vmatpush2.msra.mxu0 0.0
    %1315 = vmatprep.subr.mxu0 0.0
    %1316 = vmatpush2.msra.mxu0 0.0
    %1317 = vmatprep.subr.mxu0 0.0
    %1318 = vmatpush2.msra.mxu0 0.0
    %1319 = vmatprep.subr.mxu0 0.0
    %1320 = vmatpush2.msra.mxu0 0.0
    %1321 = vmatprep.subr.mxu0 0.0
    %1322 = vmatpush2.msra.mxu0 0.0
    %1323 = vmatprep.subr.mxu0 0.0
    %1324 = vmatpush2.msra.mxu0 0.0
    %1325 = vmatprep.subr.mxu0 0.0
    %1326 = vmatpush2.msra.mxu0 0.0
    %1327 = vmatprep.subr.mxu0 0.0
    %1328 = vmatpush2.msra.mxu0 0.0
    %1329 = vmatprep.subr.mxu0 0.0
    %1330 = vmatpush2.msra.mxu0 0.0
    %1331 = vmatprep.subr.mxu0 0.0
    %1332 = vmatpush2.msra.mxu0 0.0
    %1333 = vmatprep.subr.mxu0 0.0
    %1334 = vmatpush2.msra.mxu0 0.0
    %1335 = vmatprep.subr.mxu0 0.0
    %1336 = vmatpush2.msra.mxu0 0.0
    %1337 = vmatprep.subr.mxu0 0.0
    %1338 = vmatpush2.msra.mxu0 0.0
    %1339 = vmatprep.mubr.f32.mxu0 0.0
    %1340 = vmatmul.mubr.f32.gmra.mxu0 %v1127
    %v1341 = vpop.f32.mrf.mxu0
    %v1342 = vadd.f32 %v1257, %v1341
    %v1343 = vpop.f32.mrf.mxu0
    %1344 = vmatprep.mubr.f32.mxu0 0.0
    %1345 = vmatmul.mubr.f32.gmra.mxu0 %v1128
    %v1346 = vpop.f32.mrf.mxu0
    %v1347 = vadd.f32 %v1262, %v1346
    %v1348 = vpop.f32.mrf.mxu0
    %1349 = vmatprep.mubr.f32.mxu0 0.0
    %1350 = vmatmul.mubr.f32.gmra.mxu0 %v1134
    %v1351 = vpop.f32.mrf.mxu0
    %v1352 = vadd.f32 %v1267, %v1351
    %v1353 = vpop.f32.mrf.mxu0
    %1354 = vmatprep.mubr.f32.mxu0 0.0
    %1355 = vmatmul.mubr.f32.gmra.mxu0 %v1135
    %v1356 = vpop.f32.mrf.mxu0
    %v1357 = vadd.f32 %v1272, %v1356
    %v1358 = vpop.f32.mrf.mxu0
    %1359 = vdwg.mxu0
    %v1360 = vmax.f32 %v1342, 0.0
    %v1361 = vmax.f32 %v1347, 0.0
    %v1362 = vmax.f32 %v1352, 0.0
    %v1363 = vmax.f32 %v1357, 0.0
    %1364 = vst [vmem:[#allocation3 + $0x20] sm:$0xff] %v1360
    %1365 = vst [vmem:[#allocation3 + $0x28] sm:$0xff] %v1361
    %1366 = vst [vmem:[#allocation3 + $0x30] sm:$0xff] %v1362
    %1367 = vst [vmem:[#allocation3 + $0x38] sm:$0xf] %v1363
    %v1368 = vld [vmem:[#allocation3 + $0x18] sm:$0xff]
    %v1369 = vld [vmem:[#allocation3 + $0x20] sm:$0xff]
    %v1370 = vld [vmem:[#allocation3 + $0x28] sm:$0xff]
    %v1371 = vld [vmem:[#allocation3 + $0x30] sm:$0xff]
    %v1372 = vld [vmem:[#allocation3 + $0x38] sm:$0xf]
    %v1373 = vld [vmem:[#allocation3 + $0x1c] sm:$0xff]
    %v1374 = vld [vmem:[#allocation3 + $0x24] sm:$0xff]
    %v1375 = vld [vmem:[#allocation3 + $0x2c] sm:$0xff]
    %v1376 = vld [vmem:[#allocation3 + $0x34] sm:$0xff]
    %v1377 = vld [vmem:[#allocation3 + $0x3c] sm:$0xf]
    %v1378 = vld [vmem:[#allocation3 + $0x38] sm:$0xff]
    %v1379 = vld [vmem:[#allocation3 + $0x40] sm:$0xf]
    %s1380 = scalar_lea.vmem [#allocation4], 1920
    %v1381 = vld [vmem:[%s1380] sm:$0xff]
    %v1382 = vld [vmem:[%s1380 + $0x8] sm:$0xff]
    %v1383 = vld [vmem:[%s1380 + $0x10] sm:$0xff]
    %v1384 = vld [vmem:[%s1380 + $0x18] sm:$0xff]
    %v1385 = vld [vmem:[%s1380 + $0x20] sm:$0xff]
    %v1386 = vld [vmem:[%s1380 + $0x28] sm:$0xff]
    %v1387 = vld [vmem:[%s1380 + $0x30] sm:$0xff]
    %v1388 = vld [vmem:[%s1380 + $0x38] sm:$0xff]
    %v1389 = vld [vmem:[%s1380 + $0x40] sm:$0xff]
    %v1390 = vld [vmem:[%s1380 + $0x48] sm:$0xff]
    %v1391 = vld [vmem:[%s1380 + $0x50] sm:$0xff]
    %v1392 = vld [vmem:[%s1380 + $0x58] sm:$0xff]
    %v1393 = vld [vmem:[%s1380 + $0x60] sm:$0xff]
    %v1394 = vld [vmem:[%s1380 + $0x68] sm:$0xff]
    %v1395 = vld [vmem:[%s1380 + $0x70] sm:$0xff]
    %v1396 = vld [vmem:[%s1380 + $0x78] sm:$0xff]
    %v1397 = vld [vmem:[%s1380 + $0x80] sm:$0xff]
    %v1398 = vld [vmem:[%s1380 + $0x88] sm:$0xff]
    %v1399 = vld [vmem:[%s1380 + $0x90] sm:$0xff]
    %v1400 = vld [vmem:[%s1380 + $0x98] sm:$0xff]
    %v1401 = vld [vmem:[%s1380 + $0xa0] sm:$0xff]
    %v1402 = vld [vmem:[%s1380 + $0xa8] sm:$0xff]
    %v1403 = vld [vmem:[%s1380 + $0xb0] sm:$0xff]
    %v1404 = vld [vmem:[%s1380 + $0xb8] sm:$0xff]
    %v1405 = vld [vmem:[%s1380 + $0xc0] sm:$0xff]
    %v1406 = vld [vmem:[%s1380 + $0xc8] sm:$0xff]
    %v1407 = vld [vmem:[%s1380 + $0xd0] sm:$0xff]
    %v1408 = vld [vmem:[%s1380 + $0xd8] sm:$0xff]
    %v1409 = vld [vmem:[%s1380 + $0xe0] sm:$0xff]
    %v1410 = vld [vmem:[%s1380 + $0xe8] sm:$0xff]
    %v1411 = vld [vmem:[%s1380 + $0xf0] sm:$0xff]
    %v1412 = vld [vmem:[%s1380 + $0xf8] sm:$0xff]
    %v1413 = vld [vmem:[%s1380 + $0x100] sm:$0xff]
    %v1414 = vld [vmem:[%s1380 + $0x108] sm:$0xff]
    %v1415 = vld [vmem:[%s1380 + $0x110] sm:$0xff]
    %v1416 = vld [vmem:[%s1380 + $0x118] sm:$0xff]
    %v1417 = vld [vmem:[%s1380 + $0x120] sm:$0xff]
    %v1418 = vld [vmem:[%s1380 + $0x128] sm:$0xff]
    %v1419 = vld [vmem:[%s1380 + $0x130] sm:$0xff]
    %v1420 = vld [vmem:[%s1380 + $0x138] sm:$0xff]
    %v1421 = vld [vmem:[%s1380 + $0x140] sm:$0xff]
    %v1422 = vld [vmem:[%s1380 + $0x148] sm:$0xff]
    %v1423 = vld [vmem:[%s1380 + $0x150] sm:$0xff]
    %v1424 = vld [vmem:[%s1380 + $0x158] sm:$0xff]
    %v1425 = vld [vmem:[%s1380 + $0x160] sm:$0xff]
    %v1426 = vld [vmem:[%s1380 + $0x168] sm:$0xff]
    %v1427 = vld [vmem:[%s1380 + $0x170] sm:$0xff]
    %v1428 = vld [vmem:[%s1380 + $0x178] sm:$0xff]
    %v1429 = vld [vmem:[#allocation6 + $0x5] sm:$0x1]
    %v1430 = vlaneseq
    %v1431 = vshrl.u32 %v1430, 7
    %v1432 = vsub.s32 0, %v1431
    %v1433 = vrot.slane %v1429, %v1432
    %1434 = vmatprep.subr.mxu0 0.0
    %1435 = vmatpush1.msra.mxu0 %v1396
    %1436 = vmatprep.subr.mxu0 0.0
    %1437 = vmatpush1.msra.mxu0 %v1395
    %1438 = vmatprep.subr.mxu0 0.0
    %1439 = vmatpush1.msra.mxu0 %v1394
    %1440 = vmatprep.subr.mxu0 0.0
    %1441 = vmatpush1.msra.mxu0 %v1393
    %1442 = vmatprep.subr.mxu0 0.0
    %1443 = vmatpush1.msra.mxu0 %v1392
    %1444 = vmatprep.subr.mxu0 0.0
    %1445 = vmatpush1.msra.mxu0 %v1391
    %1446 = vmatprep.subr.mxu0 0.0
    %1447 = vmatpush1.msra.mxu0 %v1390
    %1448 = vmatprep.subr.mxu0 0.0
    %1449 = vmatpush1.msra.mxu0 %v1389
    %1450 = vmatprep.subr.mxu0 0.0
    %1451 = vmatpush1.msra.mxu0 %v1388
    %1452 = vmatprep.subr.mxu0 0.0
    %1453 = vmatpush1.msra.mxu0 %v1387
    %1454 = vmatprep.subr.mxu0 0.0
    %1455 = vmatpush1.msra.mxu0 %v1386
    %1456 = vmatprep.subr.mxu0 0.0
    %1457 = vmatpush1.msra.mxu0 %v1385
    %1458 = vmatprep.subr.mxu0 0.0
    %1459 = vmatpush1.msra.mxu0 %v1384
    %1460 = vmatprep.subr.mxu0 0.0
    %1461 = vmatpush1.msra.mxu0 %v1383
    %1462 = vmatprep.subr.mxu0 0.0
    %1463 = vmatpush1.msra.mxu0 %v1382
    %1464 = vmatprep.subr.mxu0 0.0
    %1465 = vmatpush1.msra.mxu0 %v1381
    %1466 = vmatprep.subr.mxu0 0.0
    %1467 = vmatpush2.msra.mxu0 %v1412
    %1468 = vmatprep.subr.mxu0 0.0
    %1469 = vmatpush2.msra.mxu0 %v1411
    %1470 = vmatprep.subr.mxu0 0.0
    %1471 = vmatpush2.msra.mxu0 %v1410
    %1472 = vmatprep.subr.mxu0 0.0
    %1473 = vmatpush2.msra.mxu0 %v1409
    %1474 = vmatprep.subr.mxu0 0.0
    %1475 = vmatpush2.msra.mxu0 %v1408
    %1476 = vmatprep.subr.mxu0 0.0
    %1477 = vmatpush2.msra.mxu0 %v1407
    %1478 = vmatprep.subr.mxu0 0.0
    %1479 = vmatpush2.msra.mxu0 %v1406
    %1480 = vmatprep.subr.mxu0 0.0
    %1481 = vmatpush2.msra.mxu0 %v1405
    %1482 = vmatprep.subr.mxu0 0.0
    %1483 = vmatpush2.msra.mxu0 %v1404
    %1484 = vmatprep.subr.mxu0 0.0
    %1485 = vmatpush2.msra.mxu0 %v1403
    %1486 = vmatprep.subr.mxu0 0.0
    %1487 = vmatpush2.msra.mxu0 %v1402
    %1488 = vmatprep.subr.mxu0 0.0
    %1489 = vmatpush2.msra.mxu0 %v1401
    %1490 = vmatprep.subr.mxu0 0.0
    %1491 = vmatpush2.msra.mxu0 %v1400
    %1492 = vmatprep.subr.mxu0 0.0
    %1493 = vmatpush2.msra.mxu0 %v1399
    %1494 = vmatprep.subr.mxu0 0.0
    %1495 = vmatpush2.msra.mxu0 %v1398
    %1496 = vmatprep.subr.mxu0 0.0
    %1497 = vmatpush2.msra.mxu0 %v1397
    %1498 = vmatprep.mubr.f32.mxu0 %v1373
    %1499 = vmatmul.mubr.f32.gmra.mxu0 %v1368
    %v1500 = vpop.f32.mrf.mxu0
    %v1501 = vadd.f32 %v1433, %v1500
    %v1502 = vpop.f32.mrf.mxu0
    %1503 = vmatprep.mubr.f32.mxu0 %v1374
    %1504 = vmatmul.mubr.f32.gmra.mxu0 %v1369
    %v1505 = vpop.f32.mrf.mxu0
    %v1506 = vadd.f32 %v1433, %v1505
    %v1507 = vpop.f32.mrf.mxu0
    %1508 = vmatprep.mubr.f32.mxu0 %v1375
    %1509 = vmatmul.mubr.f32.gmra.mxu0 %v1370
    %v1510 = vpop.f32.mrf.mxu0
    %v1511 = vadd.f32 %v1433, %v1510
    %v1512 = vpop.f32.mrf.mxu0
    %1513 = vmatprep.mubr.f32.mxu0 %v1376
    %1514 = vmatmul.mubr.f32.gmra.mxu0 %v1371
    %v1515 = vpop.f32.mrf.mxu0
    %v1516 = vadd.f32 %v1433, %v1515
    %v1517 = vpop.f32.mrf.mxu0
    %1518 = vmatprep.mubr.f32.mxu0 %v1377
    %1519 = vmatmul.mubr.f32.gmra.mxu0 %v1372
    %v1520 = vpop.f32.mrf.mxu0
    %v1521 = vadd.f32 %v1433, %v1520
    %v1522 = vpop.f32.mrf.mxu0
    %1523 = vdwg.mxu0
    %1524 = vmatprep.subr.mxu0 0.0
    %1525 = vmatpush1.msra.mxu0 %v1428
    %1526 = vmatprep.subr.mxu0 0.0
    %1527 = vmatpush1.msra.mxu0 %v1427
    %1528 = vmatprep.subr.mxu0 0.0
    %1529 = vmatpush1.msra.mxu0 %v1426
    %1530 = vmatprep.subr.mxu0 0.0
    %1531 = vmatpush1.msra.mxu0 %v1425
    %1532 = vmatprep.subr.mxu0 0.0
    %1533 = vmatpush1.msra.mxu0 %v1424
    %1534 = vmatprep.subr.mxu0 0.0
    %1535 = vmatpush1.msra.mxu0 %v1423
    %1536 = vmatprep.subr.mxu0 0.0
    %1537 = vmatpush1.msra.mxu0 %v1422
    %1538 = vmatprep.subr.mxu0 0.0
    %1539 = vmatpush1.msra.mxu0 %v1421
    %1540 = vmatprep.subr.mxu0 0.0
    %1541 = vmatpush1.msra.mxu0 %v1420
    %1542 = vmatprep.subr.mxu0 0.0
    %1543 = vmatpush1.msra.mxu0 %v1419
    %1544 = vmatprep.subr.mxu0 0.0
    %1545 = vmatpush1.msra.mxu0 %v1418
    %1546 = vmatprep.subr.mxu0 0.0
    %1547 = vmatpush1.msra.mxu0 %v1417
    %1548 = vmatprep.subr.mxu0 0.0
    %1549 = vmatpush1.msra.mxu0 %v1416
    %1550 = vmatprep.subr.mxu0 0.0
    %1551 = vmatpush1.msra.mxu0 %v1415
    %1552 = vmatprep.subr.mxu0 0.0
    %1553 = vmatpush1.msra.mxu0 %v1414
    %1554 = vmatprep.subr.mxu0 0.0
    %1555 = vmatpush1.msra.mxu0 %v1413
    %1556 = vmatprep.subr.mxu0 0.0
    %1557 = vmatpush2.msra.mxu0 0.0
    %1558 = vmatprep.subr.mxu0 0.0
    %1559 = vmatpush2.msra.mxu0 0.0
    %1560 = vmatprep.subr.mxu0 0.0
    %1561 = vmatpush2.msra.mxu0 0.0
    %1562 = vmatprep.subr.mxu0 0.0
    %1563 = vmatpush2.msra.mxu0 0.0
    %1564 = vmatprep.subr.mxu0 0.0
    %1565 = vmatpush2.msra.mxu0 0.0
    %1566 = vmatprep.subr.mxu0 0.0
    %1567 = vmatpush2.msra.mxu0 0.0
    %1568 = vmatprep.subr.mxu0 0.0
    %1569 = vmatpush2.msra.mxu0 0.0
    %1570 = vmatprep.subr.mxu0 0.0
    %1571 = vmatpush2.msra.mxu0 0.0
    %1572 = vmatprep.subr.mxu0 0.0
    %1573 = vmatpush2.msra.mxu0 0.0
    %1574 = vmatprep.subr.mxu0 0.0
    %1575 = vmatpush2.msra.mxu0 0.0
    %1576 = vmatprep.subr.mxu0 0.0
    %1577 = vmatpush2.msra.mxu0 0.0
    %1578 = vmatprep.subr.mxu0 0.0
    %1579 = vmatpush2.msra.mxu0 0.0
    %1580 = vmatprep.subr.mxu0 0.0
    %1581 = vmatpush2.msra.mxu0 0.0
    %1582 = vmatprep.subr.mxu0 0.0
    %1583 = vmatpush2.msra.mxu0 0.0
    %1584 = vmatprep.subr.mxu0 0.0
    %1585 = vmatpush2.msra.mxu0 0.0
    %1586 = vmatprep.subr.mxu0 0.0
    %1587 = vmatpush2.msra.mxu0 0.0
    %1588 = vmatprep.mubr.f32.mxu0 0.0
    %1589 = vmatmul.mubr.f32.gmra.mxu0 %v1369
    %v1590 = vpop.f32.mrf.mxu0
    %v1591 = vadd.f32 %v1501, %v1590
    %v1592 = vpop.f32.mrf.mxu0
    %1593 = vmatprep.mubr.f32.mxu0 0.0
    %1594 = vmatmul.mubr.f32.gmra.mxu0 %v1370
    %v1595 = vpop.f32.mrf.mxu0
    %v1596 = vadd.f32 %v1506, %v1595
    %v1597 = vpop.f32.mrf.mxu0
    %1598 = vmatprep.mubr.f32.mxu0 0.0
    %1599 = vmatmul.mubr.f32.gmra.mxu0 %v1371
    %v1600 = vpop.f32.mrf.mxu0
    %v1601 = vadd.f32 %v1511, %v1600
    %v1602 = vpop.f32.mrf.mxu0
    %1603 = vmatprep.mubr.f32.mxu0 0.0
    %1604 = vmatmul.mubr.f32.gmra.mxu0 %v1378
    %v1605 = vpop.f32.mrf.mxu0
    %v1606 = vadd.f32 %v1516, %v1605
    %v1607 = vpop.f32.mrf.mxu0
    %1608 = vmatprep.mubr.f32.mxu0 0.0
    %1609 = vmatmul.mubr.f32.gmra.mxu0 %v1379
    %v1610 = vpop.f32.mrf.mxu0
    %v1611 = vadd.f32 %v1521, %v1610
    %v1612 = vpop.f32.mrf.mxu0
    %1613 = vdwg.mxu0
    %v1614 = vmax.f32 %v1591, 0.0
    %v1615 = vmax.f32 %v1596, 0.0
    %v1616 = vmax.f32 %v1601, 0.0
    %v1617 = vmax.f32 %v1606, 0.0
    %v1618 = vmax.f32 %v1611, 0.0
    %1619 = vst [vmem:[#allocation2 + $0x20] sm:$0xff] %v1614
    %1620 = vst [vmem:[#allocation2 + $0x28] sm:$0xff] %v1615
    %1621 = vst [vmem:[#allocation2 + $0x30] sm:$0xff] %v1616
    %1622 = vst [vmem:[#allocation2 + $0x38] sm:$0xff] %v1617
    %1623 = vst [vmem:[#allocation2 + $0x40] sm:$0xf] %v1618
    %v1624 = vld [vmem:[#allocation2 + $0x10] sm:$0xff]
    %v1625 = vld [vmem:[#allocation2 + $0x18] sm:$0xff]
    %v1626 = vld [vmem:[#allocation2 + $0x20] sm:$0xff]
    %v1627 = vld [vmem:[#allocation2 + $0x28] sm:$0xff]
    %v1628 = vld [vmem:[#allocation2 + $0x30] sm:$0xff]
    %v1629 = vld [vmem:[#allocation2 + $0x38] sm:$0xff]
    %v1630 = vld [vmem:[#allocation2 + $0x40] sm:$0xf]
    %v1631 = vld [vmem:[#allocation2 + $0x40] sm:$0xff]
    %v1632 = vld [vmem:[#allocation2 + $0x48] sm:$0xf]
    %v1633 = vld [vmem:[#allocation2 + $0x48] sm:$0xff]
    %v1634 = vld [vmem:[#allocation2 + $0x50] sm:$0xf]
    %s1635 = scalar_lea.vmem [#allocation4], 2304
    %v1636 = vld [vmem:[%s1635] sm:$0xff]
    %v1637 = vld [vmem:[%s1635 + $0x8] sm:$0xff]
    %v1638 = vld [vmem:[%s1635 + $0x10] sm:$0xff]
    %v1639 = vld [vmem:[%s1635 + $0x18] sm:$0xff]
    %v1640 = vld [vmem:[%s1635 + $0x20] sm:$0xff]
    %v1641 = vld [vmem:[%s1635 + $0x28] sm:$0xff]
    %v1642 = vld [vmem:[%s1635 + $0x30] sm:$0xff]
    %v1643 = vld [vmem:[%s1635 + $0x38] sm:$0xff]
    %v1644 = vld [vmem:[%s1635 + $0x40] sm:$0xff]
    %v1645 = vld [vmem:[%s1635 + $0x48] sm:$0xff]
    %v1646 = vld [vmem:[%s1635 + $0x50] sm:$0xff]
    %v1647 = vld [vmem:[%s1635 + $0x58] sm:$0xff]
    %v1648 = vld [vmem:[%s1635 + $0x60] sm:$0xff]
    %v1649 = vld [vmem:[%s1635 + $0x68] sm:$0xff]
    %v1650 = vld [vmem:[%s1635 + $0x70] sm:$0xff]
    %v1651 = vld [vmem:[%s1635 + $0x78] sm:$0xff]
    %v1652 = vld [vmem:[%s1635 + $0x80] sm:$0xff]
    %v1653 = vld [vmem:[%s1635 + $0x88] sm:$0xff]
    %v1654 = vld [vmem:[%s1635 + $0x90] sm:$0xff]
    %v1655 = vld [vmem:[%s1635 + $0x98] sm:$0xff]
    %v1656 = vld [vmem:[%s1635 + $0xa0] sm:$0xff]
    %v1657 = vld [vmem:[%s1635 + $0xa8] sm:$0xff]
    %v1658 = vld [vmem:[%s1635 + $0xb0] sm:$0xff]
    %v1659 = vld [vmem:[%s1635 + $0xb8] sm:$0xff]
    %v1660 = vld [vmem:[%s1635 + $0xc0] sm:$0xff]
    %v1661 = vld [vmem:[%s1635 + $0xc8] sm:$0xff]
    %v1662 = vld [vmem:[%s1635 + $0xd0] sm:$0xff]
    %v1663 = vld [vmem:[%s1635 + $0xd8] sm:$0xff]
    %v1664 = vld [vmem:[%s1635 + $0xe0] sm:$0xff]
    %v1665 = vld [vmem:[%s1635 + $0xe8] sm:$0xff]
    %v1666 = vld [vmem:[%s1635 + $0xf0] sm:$0xff]
    %v1667 = vld [vmem:[%s1635 + $0xf8] sm:$0xff]
    %v1668 = vld [vmem:[%s1635 + $0x100] sm:$0xff]
    %v1669 = vld [vmem:[%s1635 + $0x108] sm:$0xff]
    %v1670 = vld [vmem:[%s1635 + $0x110] sm:$0xff]
    %v1671 = vld [vmem:[%s1635 + $0x118] sm:$0xff]
    %v1672 = vld [vmem:[%s1635 + $0x120] sm:$0xff]
    %v1673 = vld [vmem:[%s1635 + $0x128] sm:$0xff]
    %v1674 = vld [vmem:[%s1635 + $0x130] sm:$0xff]
    %v1675 = vld [vmem:[%s1635 + $0x138] sm:$0xff]
    %v1676 = vld [vmem:[%s1635 + $0x140] sm:$0xff]
    %v1677 = vld [vmem:[%s1635 + $0x148] sm:$0xff]
    %v1678 = vld [vmem:[%s1635 + $0x150] sm:$0xff]
    %v1679 = vld [vmem:[%s1635 + $0x158] sm:$0xff]
    %v1680 = vld [vmem:[%s1635 + $0x160] sm:$0xff]
    %v1681 = vld [vmem:[%s1635 + $0x168] sm:$0xff]
    %v1682 = vld [vmem:[%s1635 + $0x170] sm:$0xff]
    %v1683 = vld [vmem:[%s1635 + $0x178] sm:$0xff]
    %v1684 = vld [vmem:[#allocation6 + $0x6] sm:$0x1]
    %v1685 = vlaneseq
    %v1686 = vshrl.u32 %v1685, 7
    %v1687 = vsub.s32 0, %v1686
    %v1688 = vrot.slane %v1684, %v1687
    %1689 = vmatprep.subr.mxu0 0.0
    %1690 = vmatpush1.msra.mxu0 %v1651
    %1691 = vmatprep.subr.mxu0 0.0
    %1692 = vmatpush1.msra.mxu0 %v1650
    %1693 = vmatprep.subr.mxu0 0.0
    %1694 = vmatpush1.msra.mxu0 %v1649
    %1695 = vmatprep.subr.mxu0 0.0
    %1696 = vmatpush1.msra.mxu0 %v1648
    %1697 = vmatprep.subr.mxu0 0.0
    %1698 = vmatpush1.msra.mxu0 %v1647
    %1699 = vmatprep.subr.mxu0 0.0
    %1700 = vmatpush1.msra.mxu0 %v1646
    %1701 = vmatprep.subr.mxu0 0.0
    %1702 = vmatpush1.msra.mxu0 %v1645
    %1703 = vmatprep.subr.mxu0 0.0
    %1704 = vmatpush1.msra.mxu0 %v1644
    %1705 = vmatprep.subr.mxu0 0.0
    %1706 = vmatpush1.msra.mxu0 %v1643
    %1707 = vmatprep.subr.mxu0 0.0
    %1708 = vmatpush1.msra.mxu0 %v1642
    %1709 = vmatprep.subr.mxu0 0.0
    %1710 = vmatpush1.msra.mxu0 %v1641
    %1711 = vmatprep.subr.mxu0 0.0
    %1712 = vmatpush1.msra.mxu0 %v1640
    %1713 = vmatprep.subr.mxu0 0.0
    %1714 = vmatpush1.msra.mxu0 %v1639
    %1715 = vmatprep.subr.mxu0 0.0
    %1716 = vmatpush1.msra.mxu0 %v1638
    %1717 = vmatprep.subr.mxu0 0.0
    %1718 = vmatpush1.msra.mxu0 %v1637
    %1719 = vmatprep.subr.mxu0 0.0
    %1720 = vmatpush1.msra.mxu0 %v1636
    %1721 = vmatprep.subr.mxu0 0.0
    %1722 = vmatpush2.msra.mxu0 %v1667
    %1723 = vmatprep.subr.mxu0 0.0
    %1724 = vmatpush2.msra.mxu0 %v1666
    %1725 = vmatprep.subr.mxu0 0.0
    %1726 = vmatpush2.msra.mxu0 %v1665
    %1727 = vmatprep.subr.mxu0 0.0
    %1728 = vmatpush2.msra.mxu0 %v1664
    %1729 = vmatprep.subr.mxu0 0.0
    %1730 = vmatpush2.msra.mxu0 %v1663
    %1731 = vmatprep.subr.mxu0 0.0
    %1732 = vmatpush2.msra.mxu0 %v1662
    %1733 = vmatprep.subr.mxu0 0.0
    %1734 = vmatpush2.msra.mxu0 %v1661
    %1735 = vmatprep.subr.mxu0 0.0
    %1736 = vmatpush2.msra.mxu0 %v1660
    %1737 = vmatprep.subr.mxu0 0.0
    %1738 = vmatpush2.msra.mxu0 %v1659
    %1739 = vmatprep.subr.mxu0 0.0
    %1740 = vmatpush2.msra.mxu0 %v1658
    %1741 = vmatprep.subr.mxu0 0.0
    %1742 = vmatpush2.msra.mxu0 %v1657
    %1743 = vmatprep.subr.mxu0 0.0
    %1744 = vmatpush2.msra.mxu0 %v1656
    %1745 = vmatprep.subr.mxu0 0.0
    %1746 = vmatpush2.msra.mxu0 %v1655
    %1747 = vmatprep.subr.mxu0 0.0
    %1748 = vmatpush2.msra.mxu0 %v1654
    %1749 = vmatprep.subr.mxu0 0.0
    %1750 = vmatpush2.msra.mxu0 %v1653
    %1751 = vmatprep.subr.mxu0 0.0
    %1752 = vmatpush2.msra.mxu0 %v1652
    %1753 = vmatprep.mubr.f32.mxu0 %v1625
    %1754 = vmatmul.mubr.f32.gmra.mxu0 %v1624
    %v1755 = vpop.f32.mrf.mxu0
    %v1756 = vadd.f32 %v1688, %v1755
    %v1757 = vpop.f32.mrf.mxu0
    %1758 = vmatprep.mubr.f32.mxu0 %v1626
    %1759 = vmatmul.mubr.f32.gmra.mxu0 %v1625
    %v1760 = vpop.f32.mrf.mxu0
    %v1761 = vadd.f32 %v1688, %v1760
    %v1762 = vpop.f32.mrf.mxu0
    %1763 = vmatprep.mubr.f32.mxu0 %v1627
    %1764 = vmatmul.mubr.f32.gmra.mxu0 %v1626
    %v1765 = vpop.f32.mrf.mxu0
    %v1766 = vadd.f32 %v1688, %v1765
    %v1767 = vpop.f32.mrf.mxu0
    %1768 = vmatprep.mubr.f32.mxu0 %v1628
    %1769 = vmatmul.mubr.f32.gmra.mxu0 %v1627
    %v1770 = vpop.f32.mrf.mxu0
    %v1771 = vadd.f32 %v1688, %v1770
    %v1772 = vpop.f32.mrf.mxu0
    %1773 = vmatprep.mubr.f32.mxu0 %v1629
    %1774 = vmatmul.mubr.f32.gmra.mxu0 %v1628
    %v1775 = vpop.f32.mrf.mxu0
    %v1776 = vadd.f32 %v1688, %v1775
    %v1777 = vpop.f32.mrf.mxu0
    %1778 = vmatprep.mubr.f32.mxu0 %v1631
    %1779 = vmatmul.mubr.f32.gmra.mxu0 %v1629
    %v1780 = vpop.f32.mrf.mxu0
    %v1781 = vadd.f32 %v1688, %v1780
    %v1782 = vpop.f32.mrf.mxu0
    %1783 = vmatprep.mubr.f32.mxu0 %v1632
    %1784 = vmatmul.mubr.f32.gmra.mxu0 %v1630
    %v1785 = vpop.f32.mrf.mxu0
    %v1786 = vadd.f32 %v1688, %v1785
    %v1787 = vpop.f32.mrf.mxu0
    %1788 = vdwg.mxu0
    %1789 = vmatprep.subr.mxu0 0.0
    %1790 = vmatpush1.msra.mxu0 %v1683
    %1791 = vmatprep.subr.mxu0 0.0
    %1792 = vmatpush1.msra.mxu0 %v1682
    %1793 = vmatprep.subr.mxu0 0.0
    %1794 = vmatpush1.msra.mxu0 %v1681
    %1795 = vmatprep.subr.mxu0 0.0
    %1796 = vmatpush1.msra.mxu0 %v1680
    %1797 = vmatprep.subr.mxu0 0.0
    %1798 = vmatpush1.msra.mxu0 %v1679
    %1799 = vmatprep.subr.mxu0 0.0
    %1800 = vmatpush1.msra.mxu0 %v1678
    %1801 = vmatprep.subr.mxu0 0.0
    %1802 = vmatpush1.msra.mxu0 %v1677
    %1803 = vmatprep.subr.mxu0 0.0
    %1804 = vmatpush1.msra.mxu0 %v1676
    %1805 = vmatprep.subr.mxu0 0.0
    %1806 = vmatpush1.msra.mxu0 %v1675
    %1807 = vmatprep.subr.mxu0 0.0
    %1808 = vmatpush1.msra.mxu0 %v1674
    %1809 = vmatprep.subr.mxu0 0.0
    %1810 = vmatpush1.msra.mxu0 %v1673
    %1811 = vmatprep.subr.mxu0 0.0
    %1812 = vmatpush1.msra.mxu0 %v1672
    %1813 = vmatprep.subr.mxu0 0.0
    %1814 = vmatpush1.msra.mxu0 %v1671
    %1815 = vmatprep.subr.mxu0 0.0
    %1816 = vmatpush1.msra.mxu0 %v1670
    %1817 = vmatprep.subr.mxu0 0.0
    %1818 = vmatpush1.msra.mxu0 %v1669
    %1819 = vmatprep.subr.mxu0 0.0
    %1820 = vmatpush1.msra.mxu0 %v1668
    %1821 = vmatprep.subr.mxu0 0.0
    %1822 = vmatpush2.msra.mxu0 0.0
    %1823 = vmatprep.subr.mxu0 0.0
    %1824 = vmatpush2.msra.mxu0 0.0
    %1825 = vmatprep.subr.mxu0 0.0
    %1826 = vmatpush2.msra.mxu0 0.0
    %1827 = vmatprep.subr.mxu0 0.0
    %1828 = vmatpush2.msra.mxu0 0.0
    %1829 = vmatprep.subr.mxu0 0.0
    %1830 = vmatpush2.msra.mxu0 0.0
    %1831 = vmatprep.subr.mxu0 0.0
    %1832 = vmatpush2.msra.mxu0 0.0
    %1833 = vmatprep.subr.mxu0 0.0
    %1834 = vmatpush2.msra.mxu0 0.0
    %1835 = vmatprep.subr.mxu0 0.0
    %1836 = vmatpush2.msra.mxu0 0.0
    %1837 = vmatprep.subr.mxu0 0.0
    %1838 = vmatpush2.msra.mxu0 0.0
    %1839 = vmatprep.subr.mxu0 0.0
    %1840 = vmatpush2.msra.mxu0 0.0
    %1841 = vmatprep.subr.mxu0 0.0
    %1842 = vmatpush2.msra.mxu0 0.0
    %1843 = vmatprep.subr.mxu0 0.0
    %1844 = vmatpush2.msra.mxu0 0.0
    %1845 = vmatprep.subr.mxu0 0.0
    %1846 = vmatpush2.msra.mxu0 0.0
    %1847 = vmatprep.subr.mxu0 0.0
    %1848 = vmatpush2.msra.mxu0 0.0
    %1849 = vmatprep.subr.mxu0 0.0
    %1850 = vmatpush2.msra.mxu0 0.0
    %1851 = vmatprep.subr.mxu0 0.0
    %1852 = vmatpush2.msra.mxu0 0.0
    %1853 = vmatprep.mubr.f32.mxu0 0.0
    %1854 = vmatmul.mubr.f32.gmra.mxu0 %v1626
    %v1855 = vpop.f32.mrf.mxu0
    %v1856 = vadd.f32 %v1756, %v1855
    %v1857 = vpop.f32.mrf.mxu0
    %1858 = vmatprep.mubr.f32.mxu0 0.0
    %1859 = vmatmul.mubr.f32.gmra.mxu0 %v1627
    %v1860 = vpop.f32.mrf.mxu0
    %v1861 = vadd.f32 %v1761, %v1860
    %v1862 = vpop.f32.mrf.mxu0
    %1863 = vmatprep.mubr.f32.mxu0 0.0
    %1864 = vmatmul.mubr.f32.gmra.mxu0 %v1628
    %v1865 = vpop.f32.mrf.mxu0
    %v1866 = vadd.f32 %v1766, %v1865
    %v1867 = vpop.f32.mrf.mxu0
    %1868 = vmatprep.mubr.f32.mxu0 0.0
    %1869 = vmatmul.mubr.f32.gmra.mxu0 %v1629
    %v1870 = vpop.f32.mrf.mxu0
    %v1871 = vadd.f32 %v1771, %v1870
    %v1872 = vpop.f32.mrf.mxu0
    %1873 = vmatprep.mubr.f32.mxu0 0.0
    %1874 = vmatmul.mubr.f32.gmra.mxu0 %v1631
    %v1875 = vpop.f32.mrf.mxu0
    %v1876 = vadd.f32 %v1776, %v1875
    %v1877 = vpop.f32.mrf.mxu0
    %1878 = vmatprep.mubr.f32.mxu0 0.0
    %1879 = vmatmul.mubr.f32.gmra.mxu0 %v1633
    %v1880 = vpop.f32.mrf.mxu0
    %v1881 = vadd.f32 %v1781, %v1880
    %v1882 = vpop.f32.mrf.mxu0
    %1883 = vmatprep.mubr.f32.mxu0 0.0
    %1884 = vmatmul.mubr.f32.gmra.mxu0 %v1634
    %v1885 = vpop.f32.mrf.mxu0
    %v1886 = vadd.f32 %v1786, %v1885
    %v1887 = vpop.f32.mrf.mxu0
    %1888 = vdwg.mxu0
    %v1889 = vmax.f32 %v1856, 0.0
    %v1890 = vmax.f32 %v1861, 0.0
    %v1891 = vmax.f32 %v1866, 0.0
    %v1892 = vmax.f32 %v1871, 0.0
    %v1893 = vmax.f32 %v1876, 0.0
    %v1894 = vmax.f32 %v1881, 0.0
    %v1895 = vmax.f32 %v1886, 0.0
    %1896 = vst [vmem:[#allocation3 + $0x20] sm:$0xff] %v1889
    %1897 = vst [vmem:[#allocation3 + $0x28] sm:$0xff] %v1890
    %1898 = vst [vmem:[#allocation3 + $0x30] sm:$0xff] %v1891
    %1899 = vst [vmem:[#allocation3 + $0x38] sm:$0xff] %v1892
    %1900 = vst [vmem:[#allocation3 + $0x40] sm:$0xff] %v1893
    %1901 = vst [vmem:[#allocation3 + $0x48] sm:$0xff] %v1894
    %1902 = vst [vmem:[#allocation3 + $0x50] sm:$0xf] %v1895
    %v1903 = vld [vmem:[#allocation3 + $0x10] sm:$0xff]
    %v1904 = vld [vmem:[#allocation3 + $0x18] sm:$0xff]
    %v1905 = vld [vmem:[#allocation3 + $0x20] sm:$0xff]
    %v1906 = vld [vmem:[#allocation3 + $0x28] sm:$0xff]
    %v1907 = vld [vmem:[#allocation3 + $0x30] sm:$0xff]
    %v1908 = vld [vmem:[#allocation3 + $0x38] sm:$0xff]
    %v1909 = vld [vmem:[#allocation3 + $0x40] sm:$0xff]
    %v1910 = vld [vmem:[#allocation3 + $0x48] sm:$0xff]
    %v1911 = vld [vmem:[#allocation3 + $0x50] sm:$0xf]
    %v1912 = vld [vmem:[#allocation3 + $0x50] sm:$0xff]
    %v1913 = vld [vmem:[#allocation3 + $0x58] sm:$0xf]
    %v1914 = vld [vmem:[#allocation3 + $0x58] sm:$0xff]
    %v1915 = vld [vmem:[#allocation3 + $0x60] sm:$0xf]
    %s1916 = scalar_lea.vmem [#allocation4], 2688
    %v1917 = vld [vmem:[%s1916] sm:$0xff]
    %v1918 = vld [vmem:[%s1916 + $0x8] sm:$0xff]
    %v1919 = vld [vmem:[%s1916 + $0x10] sm:$0xff]
    %v1920 = vld [vmem:[%s1916 + $0x18] sm:$0xff]
    %v1921 = vld [vmem:[%s1916 + $0x20] sm:$0xff]
    %v1922 = vld [vmem:[%s1916 + $0x28] sm:$0xff]
    %v1923 = vld [vmem:[%s1916 + $0x30] sm:$0xff]
    %v1924 = vld [vmem:[%s1916 + $0x38] sm:$0xff]
    %v1925 = vld [vmem:[%s1916 + $0x40] sm:$0xff]
    %v1926 = vld [vmem:[%s1916 + $0x48] sm:$0xff]
    %v1927 = vld [vmem:[%s1916 + $0x50] sm:$0xff]
    %v1928 = vld [vmem:[%s1916 + $0x58] sm:$0xff]
    %v1929 = vld [vmem:[%s1916 + $0x60] sm:$0xff]
    %v1930 = vld [vmem:[%s1916 + $0x68] sm:$0xff]
    %v1931 = vld [vmem:[%s1916 + $0x70] sm:$0xff]
    %v1932 = vld [vmem:[%s1916 + $0x78] sm:$0xff]
    %v1933 = vld [vmem:[%s1916 + $0x80] sm:$0xff]
    %v1934 = vld [vmem:[%s1916 + $0x88] sm:$0xff]
    %v1935 = vld [vmem:[%s1916 + $0x90] sm:$0xff]
    %v1936 = vld [vmem:[%s1916 + $0x98] sm:$0xff]
    %v1937 = vld [vmem:[%s1916 + $0xa0] sm:$0xff]
    %v1938 = vld [vmem:[%s1916 + $0xa8] sm:$0xff]
    %v1939 = vld [vmem:[%s1916 + $0xb0] sm:$0xff]
    %v1940 = vld [vmem:[%s1916 + $0xb8] sm:$0xff]
    %v1941 = vld [vmem:[%s1916 + $0xc0] sm:$0xff]
    %v1942 = vld [vmem:[%s1916 + $0xc8] sm:$0xff]
    %v1943 = vld [vmem:[%s1916 + $0xd0] sm:$0xff]
    %v1944 = vld [vmem:[%s1916 + $0xd8] sm:$0xff]
    %v1945 = vld [vmem:[%s1916 + $0xe0] sm:$0xff]
    %v1946 = vld [vmem:[%s1916 + $0xe8] sm:$0xff]
    %v1947 = vld [vmem:[%s1916 + $0xf0] sm:$0xff]
    %v1948 = vld [vmem:[%s1916 + $0xf8] sm:$0xff]
    %v1949 = vld [vmem:[%s1916 + $0x100] sm:$0xff]
    %v1950 = vld [vmem:[%s1916 + $0x108] sm:$0xff]
    %v1951 = vld [vmem:[%s1916 + $0x110] sm:$0xff]
    %v1952 = vld [vmem:[%s1916 + $0x118] sm:$0xff]
    %v1953 = vld [vmem:[%s1916 + $0x120] sm:$0xff]
    %v1954 = vld [vmem:[%s1916 + $0x128] sm:$0xff]
    %v1955 = vld [vmem:[%s1916 + $0x130] sm:$0xff]
    %v1956 = vld [vmem:[%s1916 + $0x138] sm:$0xff]
    %v1957 = vld [vmem:[%s1916 + $0x140] sm:$0xff]
    %v1958 = vld [vmem:[%s1916 + $0x148] sm:$0xff]
    %v1959 = vld [vmem:[%s1916 + $0x150] sm:$0xff]
    %v1960 = vld [vmem:[%s1916 + $0x158] sm:$0xff]
    %v1961 = vld [vmem:[%s1916 + $0x160] sm:$0xff]
    %v1962 = vld [vmem:[%s1916 + $0x168] sm:$0xff]
    %v1963 = vld [vmem:[%s1916 + $0x170] sm:$0xff]
    %v1964 = vld [vmem:[%s1916 + $0x178] sm:$0xff]
    %v1965 = vld [vmem:[#allocation6 + $0x7] sm:$0x1]
    %v1966 = vlaneseq
    %v1967 = vshrl.u32 %v1966, 7
    %v1968 = vsub.s32 0, %v1967
    %v1969 = vrot.slane %v1965, %v1968
    %1970 = vmatprep.subr.mxu0 0.0
    %1971 = vmatpush1.msra.mxu0 %v1932
    %1972 = vmatprep.subr.mxu0 0.0
    %1973 = vmatpush1.msra.mxu0 %v1931
    %1974 = vmatprep.subr.mxu0 0.0
    %1975 = vmatpush1.msra.mxu0 %v1930
    %1976 = vmatprep.subr.mxu0 0.0
    %1977 = vmatpush1.msra.mxu0 %v1929
    %1978 = vmatprep.subr.mxu0 0.0
    %1979 = vmatpush1.msra.mxu0 %v1928
    %1980 = vmatprep.subr.mxu0 0.0
    %1981 = vmatpush1.msra.mxu0 %v1927
    %1982 = vmatprep.subr.mxu0 0.0
    %1983 = vmatpush1.msra.mxu0 %v1926
    %1984 = vmatprep.subr.mxu0 0.0
    %1985 = vmatpush1.msra.mxu0 %v1925
    %1986 = vmatprep.subr.mxu0 0.0
    %1987 = vmatpush1.msra.mxu0 %v1924
    %1988 = vmatprep.subr.mxu0 0.0
    %1989 = vmatpush1.msra.mxu0 %v1923
    %1990 = vmatprep.subr.mxu0 0.0
    %1991 = vmatpush1.msra.mxu0 %v1922
    %1992 = vmatprep.subr.mxu0 0.0
    %1993 = vmatpush1.msra.mxu0 %v1921
    %1994 = vmatprep.subr.mxu0 0.0
    %1995 = vmatpush1.msra.mxu0 %v1920
    %1996 = vmatprep.subr.mxu0 0.0
    %1997 = vmatpush1.msra.mxu0 %v1919
    %1998 = vmatprep.subr.mxu0 0.0
    %1999 = vmatpush1.msra.mxu0 %v1918
    %2000 = vmatprep.subr.mxu0 0.0
    %2001 = vmatpush1.msra.mxu0 %v1917
    %2002 = vmatprep.subr.mxu0 0.0
    %2003 = vmatpush2.msra.mxu0 %v1948
    %2004 = vmatprep.subr.mxu0 0.0
    %2005 = vmatpush2.msra.mxu0 %v1947
    %2006 = vmatprep.subr.mxu0 0.0
    %2007 = vmatpush2.msra.mxu0 %v1946
    %2008 = vmatprep.subr.mxu0 0.0
    %2009 = vmatpush2.msra.mxu0 %v1945
    %2010 = vmatprep.subr.mxu0 0.0
    %2011 = vmatpush2.msra.mxu0 %v1944
    %2012 = vmatprep.subr.mxu0 0.0
    %2013 = vmatpush2.msra.mxu0 %v1943
    %2014 = vmatprep.subr.mxu0 0.0
    %2015 = vmatpush2.msra.mxu0 %v1942
    %2016 = vmatprep.subr.mxu0 0.0
    %2017 = vmatpush2.msra.mxu0 %v1941
    %2018 = vmatprep.subr.mxu0 0.0
    %2019 = vmatpush2.msra.mxu0 %v1940
    %2020 = vmatprep.subr.mxu0 0.0
    %2021 = vmatpush2.msra.mxu0 %v1939
    %2022 = vmatprep.subr.mxu0 0.0
    %2023 = vmatpush2.msra.mxu0 %v1938
    %2024 = vmatprep.subr.mxu0 0.0
    %2025 = vmatpush2.msra.mxu0 %v1937
    %2026 = vmatprep.subr.mxu0 0.0
    %2027 = vmatpush2.msra.mxu0 %v1936
    %2028 = vmatprep.subr.mxu0 0.0
    %2029 = vmatpush2.msra.mxu0 %v1935
    %2030 = vmatprep.subr.mxu0 0.0
    %2031 = vmatpush2.msra.mxu0 %v1934
    %2032 = vmatprep.subr.mxu0 0.0
    %2033 = vmatpush2.msra.mxu0 %v1933
    %2034 = vmatprep.mubr.f32.mxu0 %v1904
    %2035 = vmatmul.mubr.f32.gmra.mxu0 %v1903
    %v2036 = vpop.f32.mrf.mxu0
    %v2037 = vadd.f32 %v1969, %v2036
    %v2038 = vpop.f32.mrf.mxu0
    %2039 = vmatprep.mubr.f32.mxu0 %v1905
    %2040 = vmatmul.mubr.f32.gmra.mxu0 %v1904
    %v2041 = vpop.f32.mrf.mxu0
    %v2042 = vadd.f32 %v1969, %v2041
    %v2043 = vpop.f32.mrf.mxu0
    %2044 = vmatprep.mubr.f32.mxu0 %v1906
    %2045 = vmatmul.mubr.f32.gmra.mxu0 %v1905
    %v2046 = vpop.f32.mrf.mxu0
    %v2047 = vadd.f32 %v1969, %v2046
    %v2048 = vpop.f32.mrf.mxu0
    %2049 = vmatprep.mubr.f32.mxu0 %v1907
    %2050 = vmatmul.mubr.f32.gmra.mxu0 %v1906
    %v2051 = vpop.f32.mrf.mxu0
    %v2052 = vadd.f32 %v1969, %v2051
    %v2053 = vpop.f32.mrf.mxu0
    %2054 = vmatprep.mubr.f32.mxu0 %v1908
    %2055 = vmatmul.mubr.f32.gmra.mxu0 %v1907
    %v2056 = vpop.f32.mrf.mxu0
    %v2057 = vadd.f32 %v1969, %v2056
    %v2058 = vpop.f32.mrf.mxu0
    %2059 = vmatprep.mubr.f32.mxu0 %v1909
    %2060 = vmatmul.mubr.f32.gmra.mxu0 %v1908
    %v2061 = vpop.f32.mrf.mxu0
    %v2062 = vadd.f32 %v1969, %v2061
    %v2063 = vpop.f32.mrf.mxu0
    %2064 = vmatprep.mubr.f32.mxu0 %v1910
    %2065 = vmatmul.mubr.f32.gmra.mxu0 %v1909
    %v2066 = vpop.f32.mrf.mxu0
    %v2067 = vadd.f32 %v1969, %v2066
    %v2068 = vpop.f32.mrf.mxu0
    %2069 = vmatprep.mubr.f32.mxu0 %v1912
    %2070 = vmatmul.mubr.f32.gmra.mxu0 %v1910
    %v2071 = vpop.f32.mrf.mxu0
    %v2072 = vadd.f32 %v1969, %v2071
    %v2073 = vpop.f32.mrf.mxu0
    %2074 = vmatprep.mubr.f32.mxu0 %v1913
    %2075 = vmatmul.mubr.f32.gmra.mxu0 %v1911
    %v2076 = vpop.f32.mrf.mxu0
    %v2077 = vadd.f32 %v1969, %v2076
    %v2078 = vpop.f32.mrf.mxu0
    %2079 = vdwg.mxu0
    %2080 = vmatprep.subr.mxu0 0.0
    %2081 = vmatpush1.msra.mxu0 %v1964
    %2082 = vmatprep.subr.mxu0 0.0
    %2083 = vmatpush1.msra.mxu0 %v1963
    %2084 = vmatprep.subr.mxu0 0.0
    %2085 = vmatpush1.msra.mxu0 %v1962
    %2086 = vmatprep.subr.mxu0 0.0
    %2087 = vmatpush1.msra.mxu0 %v1961
    %2088 = vmatprep.subr.mxu0 0.0
    %2089 = vmatpush1.msra.mxu0 %v1960
    %2090 = vmatprep.subr.mxu0 0.0
    %2091 = vmatpush1.msra.mxu0 %v1959
    %2092 = vmatprep.subr.mxu0 0.0
    %2093 = vmatpush1.msra.mxu0 %v1958
    %2094 = vmatprep.subr.mxu0 0.0
    %2095 = vmatpush1.msra.mxu0 %v1957
    %2096 = vmatprep.subr.mxu0 0.0
    %2097 = vmatpush1.msra.mxu0 %v1956
    %2098 = vmatprep.subr.mxu0 0.0
    %2099 = vmatpush1.msra.mxu0 %v1955
    %2100 = vmatprep.subr.mxu0 0.0
    %2101 = vmatpush1.msra.mxu0 %v1954
    %2102 = vmatprep.subr.mxu0 0.0
    %2103 = vmatpush1.msra.mxu0 %v1953
    %2104 = vmatprep.subr.mxu0 0.0
    %2105 = vmatpush1.msra.mxu0 %v1952
    %2106 = vmatprep.subr.mxu0 0.0
    %2107 = vmatpush1.msra.mxu0 %v1951
    %2108 = vmatprep.subr.mxu0 0.0
    %2109 = vmatpush1.msra.mxu0 %v1950
    %2110 = vmatprep.subr.mxu0 0.0
    %2111 = vmatpush1.msra.mxu0 %v1949
    %2112 = vmatprep.subr.mxu0 0.0
    %2113 = vmatpush2.msra.mxu0 0.0
    %2114 = vmatprep.subr.mxu0 0.0
    %2115 = vmatpush2.msra.mxu0 0.0
    %2116 = vmatprep.subr.mxu0 0.0
    %2117 = vmatpush2.msra.mxu0 0.0
    %2118 = vmatprep.subr.mxu0 0.0
    %2119 = vmatpush2.msra.mxu0 0.0
    %2120 = vmatprep.subr.mxu0 0.0
    %2121 = vmatpush2.msra.mxu0 0.0
    %2122 = vmatprep.subr.mxu0 0.0
    %2123 = vmatpush2.msra.mxu0 0.0
    %2124 = vmatprep.subr.mxu0 0.0
    %2125 = vmatpush2.msra.mxu0 0.0
    %2126 = vmatprep.subr.mxu0 0.0
    %2127 = vmatpush2.msra.mxu0 0.0
    %2128 = vmatprep.subr.mxu0 0.0
    %2129 = vmatpush2.msra.mxu0 0.0
    %2130 = vmatprep.subr.mxu0 0.0
    %2131 = vmatpush2.msra.mxu0 0.0
    %2132 = vmatprep.subr.mxu0 0.0
    %2133 = vmatpush2.msra.mxu0 0.0
    %2134 = vmatprep.subr.mxu0 0.0
    %2135 = vmatpush2.msra.mxu0 0.0
    %2136 = vmatprep.subr.mxu0 0.0
    %2137 = vmatpush2.msra.mxu0 0.0
    %2138 = vmatprep.subr.mxu0 0.0
    %2139 = vmatpush2.msra.mxu0 0.0
    %2140 = vmatprep.subr.mxu0 0.0
    %2141 = vmatpush2.msra.mxu0 0.0
    %2142 = vmatprep.subr.mxu0 0.0
    %2143 = vmatpush2.msra.mxu0 0.0
    %2144 = vmatprep.mubr.f32.mxu0 0.0
    %2145 = vmatmul.mubr.f32.gmra.mxu0 %v1905
    %v2146 = vpop.f32.mrf.mxu0
    %v2147 = vadd.f32 %v2037, %v2146
    %v2148 = vpop.f32.mrf.mxu0
    %2149 = vmatprep.mubr.f32.mxu0 0.0
    %2150 = vmatmul.mubr.f32.gmra.mxu0 %v1906
    %v2151 = vpop.f32.mrf.mxu0
    %v2152 = vadd.f32 %v2042, %v2151
    %v2153 = vpop.f32.mrf.mxu0
    %2154 = vmatprep.mubr.f32.mxu0 0.0
    %2155 = vmatmul.mubr.f32.gmra.mxu0 %v1907
    %v2156 = vpop.f32.mrf.mxu0
    %v2157 = vadd.f32 %v2047, %v2156
    %v2158 = vpop.f32.mrf.mxu0
    %2159 = vmatprep.mubr.f32.mxu0 0.0
    %2160 = vmatmul.mubr.f32.gmra.mxu0 %v1908
    %v2161 = vpop.f32.mrf.mxu0
    %v2162 = vadd.f32 %v2052, %v2161
    %v2163 = vpop.f32.mrf.mxu0
    %2164 = vmatprep.mubr.f32.mxu0 0.0
    %2165 = vmatmul.mubr.f32.gmra.mxu0 %v1909
    %v2166 = vpop.f32.mrf.mxu0
    %v2167 = vadd.f32 %v2057, %v2166
    %v2168 = vpop.f32.mrf.mxu0
    %2169 = vmatprep.mubr.f32.mxu0 0.0
    %2170 = vmatmul.mubr.f32.gmra.mxu0 %v1910
    %v2171 = vpop.f32.mrf.mxu0
    %v2172 = vadd.f32 %v2062, %v2171
    %v2173 = vpop.f32.mrf.mxu0
    %2174 = vmatprep.mubr.f32.mxu0 0.0
    %2175 = vmatmul.mubr.f32.gmra.mxu0 %v1912
    %v2176 = vpop.f32.mrf.mxu0
    %v2177 = vadd.f32 %v2067, %v2176
    %v2178 = vpop.f32.mrf.mxu0
    %2179 = vmatprep.mubr.f32.mxu0 0.0
    %2180 = vmatmul.mubr.f32.gmra.mxu0 %v1914
    %v2181 = vpop.f32.mrf.mxu0
    %v2182 = vadd.f32 %v2072, %v2181
    %v2183 = vpop.f32.mrf.mxu0
    %2184 = vmatprep.mubr.f32.mxu0 0.0
    %2185 = vmatmul.mubr.f32.gmra.mxu0 %v1915
    %v2186 = vpop.f32.mrf.mxu0
    %v2187 = vadd.f32 %v2077, %v2186
    %v2188 = vpop.f32.mrf.mxu0
    %2189 = vdwg.mxu0
    %v2190 = vmax.f32 %v2147, 0.0
    %v2191 = vmax.f32 %v2152, 0.0
    %v2192 = vmax.f32 %v2157, 0.0
    %v2193 = vmax.f32 %v2162, 0.0
    %v2194 = vmax.f32 %v2167, 0.0
    %v2195 = vmax.f32 %v2172, 0.0
    %v2196 = vmax.f32 %v2177, 0.0
    %v2197 = vmax.f32 %v2182, 0.0
    %v2198 = vmax.f32 %v2187, 0.0
    %2199 = vst [vmem:[#allocation2 + $0x20] sm:$0xff] %v2190
    %2200 = vst [vmem:[#allocation2 + $0x28] sm:$0xff] %v2191
    %2201 = vst [vmem:[#allocation2 + $0x30] sm:$0xff] %v2192
    %2202 = vst [vmem:[#allocation2 + $0x38] sm:$0xff] %v2193
    %2203 = vst [vmem:[#allocation2 + $0x40] sm:$0xff] %v2194
    %2204 = vst [vmem:[#allocation2 + $0x48] sm:$0xff] %v2195
    %2205 = vst [vmem:[#allocation2 + $0x50] sm:$0xff] %v2196
    %2206 = vst [vmem:[#allocation2 + $0x58] sm:$0xff] %v2197
    %2207 = vst [vmem:[#allocation2 + $0x60] sm:$0xf] %v2198
    %v2208 = vld [vmem:[#allocation2] sm:$0xff]
    %v2209 = vld [vmem:[#allocation2 + $0x8] sm:$0xff]
    %v2210 = vld [vmem:[#allocation2 + $0x10] sm:$0xff]
    %v2211 = vld [vmem:[#allocation2 + $0x18] sm:$0xff]
    %v2212 = vld [vmem:[#allocation2 + $0x20] sm:$0xff]
    %v2213 = vld [vmem:[#allocation2 + $0x28] sm:$0xff]
    %v2214 = vld [vmem:[#allocation2 + $0x30] sm:$0xff]
    %v2215 = vld [vmem:[#allocation2 + $0x38] sm:$0xff]
    %v2216 = vld [vmem:[#allocation2 + $0x40] sm:$0xff]
    %v2217 = vld [vmem:[#allocation2 + $0x48] sm:$0xff]
    %v2218 = vld [vmem:[#allocation2 + $0x50] sm:$0xff]
    %v2219 = vld [vmem:[#allocation2 + $0x58] sm:$0xff]
    %v2220 = vld [vmem:[#allocation2 + $0x60] sm:$0xf]
    %v2221 = vld [vmem:[#allocation2 + $0x60] sm:$0xff]
    %v2222 = vld [vmem:[#allocation2 + $0x68] sm:$0xff]
    %v2223 = vld [vmem:[#allocation2 + $0x70] sm:$0xf]
    %v2224 = vld [vmem:[#allocation2 + $0x70] sm:$0xff]
    %v2225 = vld [vmem:[#allocation2 + $0x78] sm:$0xff]
    %v2226 = vld [vmem:[#allocation2 + $0x80] sm:$0xf]
    %s2227 = scalar_lea.vmem [#allocation4], 3072
    %v2228 = vld [vmem:[%s2227] sm:$0xff]
    %v2229 = vld [vmem:[%s2227 + $0x8] sm:$0xff]
    %v2230 = vld [vmem:[%s2227 + $0x10] sm:$0xff]
    %v2231 = vld [vmem:[%s2227 + $0x18] sm:$0xff]
    %v2232 = vld [vmem:[%s2227 + $0x20] sm:$0xff]
    %v2233 = vld [vmem:[%s2227 + $0x28] sm:$0xff]
    %v2234 = vld [vmem:[%s2227 + $0x30] sm:$0xff]
    %v2235 = vld [vmem:[%s2227 + $0x38] sm:$0xff]
    %v2236 = vld [vmem:[%s2227 + $0x40] sm:$0xff]
    %v2237 = vld [vmem:[%s2227 + $0x48] sm:$0xff]
    %v2238 = vld [vmem:[%s2227 + $0x50] sm:$0xff]
    %v2239 = vld [vmem:[%s2227 + $0x58] sm:$0xff]
    %v2240 = vld [vmem:[%s2227 + $0x60] sm:$0xff]
    %v2241 = vld [vmem:[%s2227 + $0x68] sm:$0xff]
    %v2242 = vld [vmem:[%s2227 + $0x70] sm:$0xff]
    %v2243 = vld [vmem:[%s2227 + $0x78] sm:$0xff]
    %v2244 = vld [vmem:[%s2227 + $0x80] sm:$0xff]
    %v2245 = vld [vmem:[%s2227 + $0x88] sm:$0xff]
    %v2246 = vld [vmem:[%s2227 + $0x90] sm:$0xff]
    %v2247 = vld [vmem:[%s2227 + $0x98] sm:$0xff]
    %v2248 = vld [vmem:[%s2227 + $0xa0] sm:$0xff]
    %v2249 = vld [vmem:[%s2227 + $0xa8] sm:$0xff]
    %v2250 = vld [vmem:[%s2227 + $0xb0] sm:$0xff]
    %v2251 = vld [vmem:[%s2227 + $0xb8] sm:$0xff]
    %v2252 = vld [vmem:[%s2227 + $0xc0] sm:$0xff]
    %v2253 = vld [vmem:[%s2227 + $0xc8] sm:$0xff]
    %v2254 = vld [vmem:[%s2227 + $0xd0] sm:$0xff]
    %v2255 = vld [vmem:[%s2227 + $0xd8] sm:$0xff]
    %v2256 = vld [vmem:[%s2227 + $0xe0] sm:$0xff]
    %v2257 = vld [vmem:[%s2227 + $0xe8] sm:$0xff]
    %v2258 = vld [vmem:[%s2227 + $0xf0] sm:$0xff]
    %v2259 = vld [vmem:[%s2227 + $0xf8] sm:$0xff]
    %v2260 = vld [vmem:[%s2227 + $0x100] sm:$0xff]
    %v2261 = vld [vmem:[%s2227 + $0x108] sm:$0xff]
    %v2262 = vld [vmem:[%s2227 + $0x110] sm:$0xff]
    %v2263 = vld [vmem:[%s2227 + $0x118] sm:$0xff]
    %v2264 = vld [vmem:[%s2227 + $0x120] sm:$0xff]
    %v2265 = vld [vmem:[%s2227 + $0x128] sm:$0xff]
    %v2266 = vld [vmem:[%s2227 + $0x130] sm:$0xff]
    %v2267 = vld [vmem:[%s2227 + $0x138] sm:$0xff]
    %v2268 = vld [vmem:[%s2227 + $0x140] sm:$0xff]
    %v2269 = vld [vmem:[%s2227 + $0x148] sm:$0xff]
    %v2270 = vld [vmem:[%s2227 + $0x150] sm:$0xff]
    %v2271 = vld [vmem:[%s2227 + $0x158] sm:$0xff]
    %v2272 = vld [vmem:[%s2227 + $0x160] sm:$0xff]
    %v2273 = vld [vmem:[%s2227 + $0x168] sm:$0xff]
    %v2274 = vld [vmem:[%s2227 + $0x170] sm:$0xff]
    %v2275 = vld [vmem:[%s2227 + $0x178] sm:$0xff]
    %v2276 = vld [vmem:[#allocation6 + $0x8] sm:$0x1]
    %v2277 = vlaneseq
    %v2278 = vshrl.u32 %v2277, 7
    %v2279 = vsub.s32 0, %v2278
    %v2280 = vrot.slane %v2276, %v2279
    %2281 = vmatprep.subr.mxu0 0.0
    %2282 = vmatpush1.msra.mxu0 %v2243
    %2283 = vmatprep.subr.mxu0 0.0
    %2284 = vmatpush1.msra.mxu0 %v2242
    %2285 = vmatprep.subr.mxu0 0.0
    %2286 = vmatpush1.msra.mxu0 %v2241
    %2287 = vmatprep.subr.mxu0 0.0
    %2288 = vmatpush1.msra.mxu0 %v2240
    %2289 = vmatprep.subr.mxu0 0.0
    %2290 = vmatpush1.msra.mxu0 %v2239
    %2291 = vmatprep.subr.mxu0 0.0
    %2292 = vmatpush1.msra.mxu0 %v2238
    %2293 = vmatprep.subr.mxu0 0.0
    %2294 = vmatpush1.msra.mxu0 %v2237
    %2295 = vmatprep.subr.mxu0 0.0
    %2296 = vmatpush1.msra.mxu0 %v2236
    %2297 = vmatprep.subr.mxu0 0.0
    %2298 = vmatpush1.msra.mxu0 %v2235
    %2299 = vmatprep.subr.mxu0 0.0
    %2300 = vmatpush1.msra.mxu0 %v2234
    %2301 = vmatprep.subr.mxu0 0.0
    %2302 = vmatpush1.msra.mxu0 %v2233
    %2303 = vmatprep.subr.mxu0 0.0
    %2304 = vmatpush1.msra.mxu0 %v2232
    %2305 = vmatprep.subr.mxu0 0.0
    %2306 = vmatpush1.msra.mxu0 %v2231
    %2307 = vmatprep.subr.mxu0 0.0
    %2308 = vmatpush1.msra.mxu0 %v2230
    %2309 = vmatprep.subr.mxu0 0.0
    %2310 = vmatpush1.msra.mxu0 %v2229
    %2311 = vmatprep.subr.mxu0 0.0
    %2312 = vmatpush1.msra.mxu0 %v2228
    %2313 = vmatprep.subr.mxu0 0.0
    %2314 = vmatpush2.msra.mxu0 %v2259
    %2315 = vmatprep.subr.mxu0 0.0
    %2316 = vmatpush2.msra.mxu0 %v2258
    %2317 = vmatprep.subr.mxu0 0.0
    %2318 = vmatpush2.msra.mxu0 %v2257
    %2319 = vmatprep.subr.mxu0 0.0
    %2320 = vmatpush2.msra.mxu0 %v2256
    %2321 = vmatprep.subr.mxu0 0.0
    %2322 = vmatpush2.msra.mxu0 %v2255
    %2323 = vmatprep.subr.mxu0 0.0
    %2324 = vmatpush2.msra.mxu0 %v2254
    %2325 = vmatprep.subr.mxu0 0.0
    %2326 = vmatpush2.msra.mxu0 %v2253
    %2327 = vmatprep.subr.mxu0 0.0
    %2328 = vmatpush2.msra.mxu0 %v2252
    %2329 = vmatprep.subr.mxu0 0.0
    %2330 = vmatpush2.msra.mxu0 %v2251
    %2331 = vmatprep.subr.mxu0 0.0
    %2332 = vmatpush2.msra.mxu0 %v2250
    %2333 = vmatprep.subr.mxu0 0.0
    %2334 = vmatpush2.msra.mxu0 %v2249
    %2335 = vmatprep.subr.mxu0 0.0
    %2336 = vmatpush2.msra.mxu0 %v2248
    %2337 = vmatprep.subr.mxu0 0.0
    %2338 = vmatpush2.msra.mxu0 %v2247
    %2339 = vmatprep.subr.mxu0 0.0
    %2340 = vmatpush2.msra.mxu0 %v2246
    %2341 = vmatprep.subr.mxu0 0.0
    %2342 = vmatpush2.msra.mxu0 %v2245
    %2343 = vmatprep.subr.mxu0 0.0
    %2344 = vmatpush2.msra.mxu0 %v2244
    %2345 = vmatprep.mubr.f32.mxu0 %v2210
    %2346 = vmatmul.mubr.f32.gmra.mxu0 %v2208
    %v2347 = vpop.f32.mrf.mxu0
    %v2348 = vadd.f32 %v2280, %v2347
    %v2349 = vpop.f32.mrf.mxu0
    %2350 = vmatprep.mubr.f32.mxu0 %v2211
    %2351 = vmatmul.mubr.f32.gmra.mxu0 %v2209
    %v2352 = vpop.f32.mrf.mxu0
    %v2353 = vadd.f32 %v2280, %v2352
    %v2354 = vpop.f32.mrf.mxu0
    %2355 = vmatprep.mubr.f32.mxu0 %v2212
    %2356 = vmatmul.mubr.f32.gmra.mxu0 %v2210
    %v2357 = vpop.f32.mrf.mxu0
    %v2358 = vadd.f32 %v2280, %v2357
    %v2359 = vpop.f32.mrf.mxu0
    %2360 = vmatprep.mubr.f32.mxu0 %v2213
    %2361 = vmatmul.mubr.f32.gmra.mxu0 %v2211
    %v2362 = vpop.f32.mrf.mxu0
    %v2363 = vadd.f32 %v2280, %v2362
    %v2364 = vpop.f32.mrf.mxu0
    %2365 = vmatprep.mubr.f32.mxu0 %v2214
    %2366 = vmatmul.mubr.f32.gmra.mxu0 %v2212
    %v2367 = vpop.f32.mrf.mxu0
    %v2368 = vadd.f32 %v2280, %v2367
    %v2369 = vpop.f32.mrf.mxu0
    %2370 = vmatprep.mubr.f32.mxu0 %v2215
    %2371 = vmatmul.mubr.f32.gmra.mxu0 %v2213
    %v2372 = vpop.f32.mrf.mxu0
    %v2373 = vadd.f32 %v2280, %v2372
    %v2374 = vpop.f32.mrf.mxu0
    %2375 = vmatprep.mubr.f32.mxu0 %v2216
    %2376 = vmatmul.mubr.f32.gmra.mxu0 %v2214
    %v2377 = vpop.f32.mrf.mxu0
    %v2378 = vadd.f32 %v2280, %v2377
    %v2379 = vpop.f32.mrf.mxu0
    %2380 = vmatprep.mubr.f32.mxu0 %v2217
    %2381 = vmatmul.mubr.f32.gmra.mxu0 %v2215
    %v2382 = vpop.f32.mrf.mxu0
    %v2383 = vadd.f32 %v2280, %v2382
    %v2384 = vpop.f32.mrf.mxu0
    %2385 = vmatprep.mubr.f32.mxu0 %v2218
    %2386 = vmatmul.mubr.f32.gmra.mxu0 %v2216
    %v2387 = vpop.f32.mrf.mxu0
    %v2388 = vadd.f32 %v2280, %v2387
    %v2389 = vpop.f32.mrf.mxu0
    %2390 = vmatprep.mubr.f32.mxu0 %v2219
    %2391 = vmatmul.mubr.f32.gmra.mxu0 %v2217
    %v2392 = vpop.f32.mrf.mxu0
    %v2393 = vadd.f32 %v2280, %v2392
    %v2394 = vpop.f32.mrf.mxu0
    %2395 = vmatprep.mubr.f32.mxu0 %v2221
    %2396 = vmatmul.mubr.f32.gmra.mxu0 %v2218
    %v2397 = vpop.f32.mrf.mxu0
    %v2398 = vadd.f32 %v2280, %v2397
    %v2399 = vpop.f32.mrf.mxu0
    %2400 = vmatprep.mubr.f32.mxu0 %v2222
    %2401 = vmatmul.mubr.f32.gmra.mxu0 %v2219
    %v2402 = vpop.f32.mrf.mxu0
    %v2403 = vadd.f32 %v2280, %v2402
    %v2404 = vpop.f32.mrf.mxu0
    %2405 = vmatprep.mubr.f32.mxu0 %v2223
    %2406 = vmatmul.mubr.f32.gmra.mxu0 %v2220
    %v2407 = vpop.f32.mrf.mxu0
    %v2408 = vadd.f32 %v2280, %v2407
    %v2409 = vpop.f32.mrf.mxu0
    %2410 = vdwg.mxu0
    %2411 = vmatprep.subr.mxu0 0.0
    %2412 = vmatpush1.msra.mxu0 %v2275
    %2413 = vmatprep.subr.mxu0 0.0
    %2414 = vmatpush1.msra.mxu0 %v2274
    %2415 = vmatprep.subr.mxu0 0.0
    %2416 = vmatpush1.msra.mxu0 %v2273
    %2417 = vmatprep.subr.mxu0 0.0
    %2418 = vmatpush1.msra.mxu0 %v2272
    %2419 = vmatprep.subr.mxu0 0.0
    %2420 = vmatpush1.msra.mxu0 %v2271
    %2421 = vmatprep.subr.mxu0 0.0
    %2422 = vmatpush1.msra.mxu0 %v2270
    %2423 = vmatprep.subr.mxu0 0.0
    %2424 = vmatpush1.msra.mxu0 %v2269
    %2425 = vmatprep.subr.mxu0 0.0
    %2426 = vmatpush1.msra.mxu0 %v2268
    %2427 = vmatprep.subr.mxu0 0.0
    %2428 = vmatpush1.msra.mxu0 %v2267
    %2429 = vmatprep.subr.mxu0 0.0
    %2430 = vmatpush1.msra.mxu0 %v2266
    %2431 = vmatprep.subr.mxu0 0.0
    %2432 = vmatpush1.msra.mxu0 %v2265
    %2433 = vmatprep.subr.mxu0 0.0
    %2434 = vmatpush1.msra.mxu0 %v2264
    %2435 = vmatprep.subr.mxu0 0.0
    %2436 = vmatpush1.msra.mxu0 %v2263
    %2437 = vmatprep.subr.mxu0 0.0
    %2438 = vmatpush1.msra.mxu0 %v2262
    %2439 = vmatprep.subr.mxu0 0.0
    %2440 = vmatpush1.msra.mxu0 %v2261
    %2441 = vmatprep.subr.mxu0 0.0
    %2442 = vmatpush1.msra.mxu0 %v2260
    %2443 = vmatprep.subr.mxu0 0.0
    %2444 = vmatpush2.msra.mxu0 0.0
    %2445 = vmatprep.subr.mxu0 0.0
    %2446 = vmatpush2.msra.mxu0 0.0
    %2447 = vmatprep.subr.mxu0 0.0
    %2448 = vmatpush2.msra.mxu0 0.0
    %2449 = vmatprep.subr.mxu0 0.0
    %2450 = vmatpush2.msra.mxu0 0.0
    %2451 = vmatprep.subr.mxu0 0.0
    %2452 = vmatpush2.msra.mxu0 0.0
    %2453 = vmatprep.subr.mxu0 0.0
    %2454 = vmatpush2.msra.mxu0 0.0
    %2455 = vmatprep.subr.mxu0 0.0
    %2456 = vmatpush2.msra.mxu0 0.0
    %2457 = vmatprep.subr.mxu0 0.0
    %2458 = vmatpush2.msra.mxu0 0.0
    %2459 = vmatprep.subr.mxu0 0.0
    %2460 = vmatpush2.msra.mxu0 0.0
    %2461 = vmatprep.subr.mxu0 0.0
    %2462 = vmatpush2.msra.mxu0 0.0
    %2463 = vmatprep.subr.mxu0 0.0
    %2464 = vmatpush2.msra.mxu0 0.0
    %2465 = vmatprep.subr.mxu0 0.0
    %2466 = vmatpush2.msra.mxu0 0.0
    %2467 = vmatprep.subr.mxu0 0.0
    %2468 = vmatpush2.msra.mxu0 0.0
    %2469 = vmatprep.subr.mxu0 0.0
    %2470 = vmatpush2.msra.mxu0 0.0
    %2471 = vmatprep.subr.mxu0 0.0
    %2472 = vmatpush2.msra.mxu0 0.0
    %2473 = vmatprep.subr.mxu0 0.0
    %2474 = vmatpush2.msra.mxu0 0.0
    %2475 = vmatprep.mubr.f32.mxu0 0.0
    %2476 = vmatmul.mubr.f32.gmra.mxu0 %v2212
    %v2477 = vpop.f32.mrf.mxu0
    %v2478 = vadd.f32 %v2348, %v2477
    %v2479 = vpop.f32.mrf.mxu0
    %2480 = vmatprep.mubr.f32.mxu0 0.0
    %2481 = vmatmul.mubr.f32.gmra.mxu0 %v2213
    %v2482 = vpop.f32.mrf.mxu0
    %v2483 = vadd.f32 %v2353, %v2482
    %v2484 = vpop.f32.mrf.mxu0
    %2485 = vmatprep.mubr.f32.mxu0 0.0
    %2486 = vmatmul.mubr.f32.gmra.mxu0 %v2214
    %v2487 = vpop.f32.mrf.mxu0
    %v2488 = vadd.f32 %v2358, %v2487
    %v2489 = vpop.f32.mrf.mxu0
    %2490 = vmatprep.mubr.f32.mxu0 0.0
    %2491 = vmatmul.mubr.f32.gmra.mxu0 %v2215
    %v2492 = vpop.f32.mrf.mxu0
    %v2493 = vadd.f32 %v2363, %v2492
    %v2494 = vpop.f32.mrf.mxu0
    %2495 = vmatprep.mubr.f32.mxu0 0.0
    %2496 = vmatmul.mubr.f32.gmra.mxu0 %v2216
    %v2497 = vpop.f32.mrf.mxu0
    %v2498 = vadd.f32 %v2368, %v2497
    %v2499 = vpop.f32.mrf.mxu0
    %2500 = vmatprep.mubr.f32.mxu0 0.0
    %2501 = vmatmul.mubr.f32.gmra.mxu0 %v2217
    %v2502 = vpop.f32.mrf.mxu0
    %v2503 = vadd.f32 %v2373, %v2502
    %v2504 = vpop.f32.mrf.mxu0
    %2505 = vmatprep.mubr.f32.mxu0 0.0
    %2506 = vmatmul.mubr.f32.gmra.mxu0 %v2218
    %v2507 = vpop.f32.mrf.mxu0
    %v2508 = vadd.f32 %v2378, %v2507
    %v2509 = vpop.f32.mrf.mxu0
    %2510 = vmatprep.mubr.f32.mxu0 0.0
    %2511 = vmatmul.mubr.f32.gmra.mxu0 %v2219
    %v2512 = vpop.f32.mrf.mxu0
    %v2513 = vadd.f32 %v2383, %v2512
    %v2514 = vpop.f32.mrf.mxu0
    %2515 = vmatprep.mubr.f32.mxu0 0.0
    %2516 = vmatmul.mubr.f32.gmra.mxu0 %v2221
    %v2517 = vpop.f32.mrf.mxu0
    %v2518 = vadd.f32 %v2388, %v2517
    %v2519 = vpop.f32.mrf.mxu0
    %2520 = vmatprep.mubr.f32.mxu0 0.0
    %2521 = vmatmul.mubr.f32.gmra.mxu0 %v2222
    %v2522 = vpop.f32.mrf.mxu0
    %v2523 = vadd.f32 %v2393, %v2522
    %v2524 = vpop.f32.mrf.mxu0
    %2525 = vmatprep.mubr.f32.mxu0 0.0
    %2526 = vmatmul.mubr.f32.gmra.mxu0 %v2224
    %v2527 = vpop.f32.mrf.mxu0
    %v2528 = vadd.f32 %v2398, %v2527
    %v2529 = vpop.f32.mrf.mxu0
    %2530 = vmatprep.mubr.f32.mxu0 0.0
    %2531 = vmatmul.mubr.f32.gmra.mxu0 %v2225
    %v2532 = vpop.f32.mrf.mxu0
    %v2533 = vadd.f32 %v2403, %v2532
    %v2534 = vpop.f32.mrf.mxu0
    %2535 = vmatprep.mubr.f32.mxu0 0.0
    %2536 = vmatmul.mubr.f32.gmra.mxu0 %v2226
    %v2537 = vpop.f32.mrf.mxu0
    %v2538 = vadd.f32 %v2408, %v2537
    %v2539 = vpop.f32.mrf.mxu0
    %2540 = vdwg.mxu0
    %v2541 = vmax.f32 %v2478, 0.0
    %v2542 = vmax.f32 %v2483, 0.0
    %v2543 = vmax.f32 %v2488, 0.0
    %v2544 = vmax.f32 %v2493, 0.0
    %v2545 = vmax.f32 %v2498, 0.0
    %v2546 = vmax.f32 %v2503, 0.0
    %v2547 = vmax.f32 %v2508, 0.0
    %v2548 = vmax.f32 %v2513, 0.0
    %v2549 = vmax.f32 %v2518, 0.0
    %v2550 = vmax.f32 %v2523, 0.0
    %v2551 = vmax.f32 %v2528, 0.0
    %v2552 = vmax.f32 %v2533, 0.0
    %v2553 = vmax.f32 %v2538, 0.0
    %2554 = vst [vmem:[#allocation3 + $0x20] sm:$0xff] %v2541
    %2555 = vst [vmem:[#allocation3 + $0x28] sm:$0xff] %v2542
    %2556 = vst [vmem:[#allocation3 + $0x30] sm:$0xff] %v2543
    %2557 = vst [vmem:[#allocation3 + $0x38] sm:$0xff] %v2544
    %2558 = vst [vmem:[#allocation3 + $0x40] sm:$0xff] %v2545
    %2559 = vst [vmem:[#allocation3 + $0x48] sm:$0xff] %v2546
    %2560 = vst [vmem:[#allocation3 + $0x50] sm:$0xff] %v2547
    %2561 = vst [vmem:[#allocation3 + $0x58] sm:$0xff] %v2548
    %2562 = vst [vmem:[#allocation3 + $0x60] sm:$0xff] %v2549
    %2563 = vst [vmem:[#allocation3 + $0x68] sm:$0xff] %v2550
    %2564 = vst [vmem:[#allocation3 + $0x70] sm:$0xff] %v2551
    %2565 = vst [vmem:[#allocation3 + $0x78] sm:$0xff] %v2552
    %2566 = vst [vmem:[#allocation3 + $0x80] sm:$0xf] %v2553
    %v2567 = vld [vmem:[#allocation3] sm:$0xff]
    %v2568 = vld [vmem:[#allocation3 + $0x8] sm:$0xff]
    %v2569 = vld [vmem:[#allocation3 + $0x10] sm:$0xff]
    %v2570 = vld [vmem:[#allocation3 + $0x18] sm:$0xff]
    %v2571 = vld [vmem:[#allocation3 + $0x20] sm:$0xff]
    %v2572 = vld [vmem:[#allocation3 + $0x28] sm:$0xff]
    %v2573 = vld [vmem:[#allocation3 + $0x30] sm:$0xff]
    %v2574 = vld [vmem:[#allocation3 + $0x38] sm:$0xff]
    %v2575 = vld [vmem:[#allocation3 + $0x40] sm:$0xff]
    %v2576 = vld [vmem:[#allocation3 + $0x48] sm:$0xff]
    %v2577 = vld [vmem:[#allocation3 + $0x50] sm:$0xff]
    %v2578 = vld [vmem:[#allocation3 + $0x58] sm:$0xff]
    %v2579 = vld [vmem:[#allocation3 + $0x60] sm:$0xff]
    %v2580 = vld [vmem:[#allocation3 + $0x68] sm:$0xff]
    %v2581 = vld [vmem:[#allocation3 + $0x70] sm:$0xff]
    %v2582 = vld [vmem:[#allocation3 + $0x78] sm:$0xff]
    %v2583 = vld [vmem:[#allocation3 + $0x80] sm:$0xf]
    %v2584 = vld [vmem:[#allocation3 + $0x80] sm:$0xff]
    %v2585 = vld [vmem:[#allocation3 + $0x88] sm:$0xff]
    %v2586 = vld [vmem:[#allocation3 + $0x90] sm:$0xf]
    %v2587 = vld [vmem:[#allocation3 + $0x90] sm:$0xff]
    %v2588 = vld [vmem:[#allocation3 + $0x98] sm:$0xff]
    %v2589 = vld [vmem:[#allocation3 + $0xa0] sm:$0xf]
    %s2590 = scalar_lea.vmem [#allocation4], 3456
    %v2591 = vld [vmem:[%s2590] sm:$0xff]
    %v2592 = vld [vmem:[%s2590 + $0x8] sm:$0xff]
    %v2593 = vld [vmem:[%s2590 + $0x10] sm:$0xff]
    %v2594 = vld [vmem:[%s2590 + $0x18] sm:$0xff]
    %v2595 = vld [vmem:[%s2590 + $0x20] sm:$0xff]
    %v2596 = vld [vmem:[%s2590 + $0x28] sm:$0xff]
    %v2597 = vld [vmem:[%s2590 + $0x30] sm:$0xff]
    %v2598 = vld [vmem:[%s2590 + $0x38] sm:$0xff]
    %v2599 = vld [vmem:[%s2590 + $0x40] sm:$0xff]
    %v2600 = vld [vmem:[%s2590 + $0x48] sm:$0xff]
    %v2601 = vld [vmem:[%s2590 + $0x50] sm:$0xff]
    %v2602 = vld [vmem:[%s2590 + $0x58] sm:$0xff]
    %v2603 = vld [vmem:[%s2590 + $0x60] sm:$0xff]
    %v2604 = vld [vmem:[%s2590 + $0x68] sm:$0xff]
    %v2605 = vld [vmem:[%s2590 + $0x70] sm:$0xff]
    %v2606 = vld [vmem:[%s2590 + $0x78] sm:$0xff]
    %v2607 = vld [vmem:[%s2590 + $0x80] sm:$0xff]
    %v2608 = vld [vmem:[%s2590 + $0x88] sm:$0xff]
    %v2609 = vld [vmem:[%s2590 + $0x90] sm:$0xff]
    %v2610 = vld [vmem:[%s2590 + $0x98] sm:$0xff]
    %v2611 = vld [vmem:[%s2590 + $0xa0] sm:$0xff]
    %v2612 = vld [vmem:[%s2590 + $0xa8] sm:$0xff]
    %v2613 = vld [vmem:[%s2590 + $0xb0] sm:$0xff]
    %v2614 = vld [vmem:[%s2590 + $0xb8] sm:$0xff]
    %v2615 = vld [vmem:[%s2590 + $0xc0] sm:$0xff]
    %v2616 = vld [vmem:[%s2590 + $0xc8] sm:$0xff]
    %v2617 = vld [vmem:[%s2590 + $0xd0] sm:$0xff]
    %v2618 = vld [vmem:[%s2590 + $0xd8] sm:$0xff]
    %v2619 = vld [vmem:[%s2590 + $0xe0] sm:$0xff]
    %v2620 = vld [vmem:[%s2590 + $0xe8] sm:$0xff]
    %v2621 = vld [vmem:[%s2590 + $0xf0] sm:$0xff]
    %v2622 = vld [vmem:[%s2590 + $0xf8] sm:$0xff]
    %v2623 = vld [vmem:[%s2590 + $0x100] sm:$0xff]
    %v2624 = vld [vmem:[%s2590 + $0x108] sm:$0xff]
    %v2625 = vld [vmem:[%s2590 + $0x110] sm:$0xff]
    %v2626 = vld [vmem:[%s2590 + $0x118] sm:$0xff]
    %v2627 = vld [vmem:[%s2590 + $0x120] sm:$0xff]
    %v2628 = vld [vmem:[%s2590 + $0x128] sm:$0xff]
    %v2629 = vld [vmem:[%s2590 + $0x130] sm:$0xff]
    %v2630 = vld [vmem:[%s2590 + $0x138] sm:$0xff]
    %v2631 = vld [vmem:[%s2590 + $0x140] sm:$0xff]
    %v2632 = vld [vmem:[%s2590 + $0x148] sm:$0xff]
    %v2633 = vld [vmem:[%s2590 + $0x150] sm:$0xff]
    %v2634 = vld [vmem:[%s2590 + $0x158] sm:$0xff]
    %v2635 = vld [vmem:[%s2590 + $0x160] sm:$0xff]
    %v2636 = vld [vmem:[%s2590 + $0x168] sm:$0xff]
    %v2637 = vld [vmem:[%s2590 + $0x170] sm:$0xff]
    %v2638 = vld [vmem:[%s2590 + $0x178] sm:$0xff]
    %v2639 = vld [vmem:[#allocation6 + $0x9] sm:$0x1]
    %v2640 = vlaneseq
    %v2641 = vshrl.u32 %v2640, 7
    %v2642 = vsub.s32 0, %v2641
    %v2643 = vrot.slane %v2639, %v2642
    %2644 = vmatprep.subr.mxu0 0.0
    %2645 = vmatpush1.msra.mxu0 %v2606
    %2646 = vmatprep.subr.mxu0 0.0
    %2647 = vmatpush1.msra.mxu0 %v2605
    %2648 = vmatprep.subr.mxu0 0.0
    %2649 = vmatpush1.msra.mxu0 %v2604
    %2650 = vmatprep.subr.mxu0 0.0
    %2651 = vmatpush1.msra.mxu0 %v2603
    %2652 = vmatprep.subr.mxu0 0.0
    %2653 = vmatpush1.msra.mxu0 %v2602
    %2654 = vmatprep.subr.mxu0 0.0
    %2655 = vmatpush1.msra.mxu0 %v2601
    %2656 = vmatprep.subr.mxu0 0.0
    %2657 = vmatpush1.msra.mxu0 %v2600
    %2658 = vmatprep.subr.mxu0 0.0
    %2659 = vmatpush1.msra.mxu0 %v2599
    %2660 = vmatprep.subr.mxu0 0.0
    %2661 = vmatpush1.msra.mxu0 %v2598
    %2662 = vmatprep.subr.mxu0 0.0
    %2663 = vmatpush1.msra.mxu0 %v2597
    %2664 = vmatprep.subr.mxu0 0.0
    %2665 = vmatpush1.msra.mxu0 %v2596
    %2666 = vmatprep.subr.mxu0 0.0
    %2667 = vmatpush1.msra.mxu0 %v2595
    %2668 = vmatprep.subr.mxu0 0.0
    %2669 = vmatpush1.msra.mxu0 %v2594
    %2670 = vmatprep.subr.mxu0 0.0
    %2671 = vmatpush1.msra.mxu0 %v2593
    %2672 = vmatprep.subr.mxu0 0.0
    %2673 = vmatpush1.msra.mxu0 %v2592
    %2674 = vmatprep.subr.mxu0 0.0
    %2675 = vmatpush1.msra.mxu0 %v2591
    %2676 = vmatprep.subr.mxu0 0.0
    %2677 = vmatpush2.msra.mxu0 %v2622
    %2678 = vmatprep.subr.mxu0 0.0
    %2679 = vmatpush2.msra.mxu0 %v2621
    %2680 = vmatprep.subr.mxu0 0.0
    %2681 = vmatpush2.msra.mxu0 %v2620
    %2682 = vmatprep.subr.mxu0 0.0
    %2683 = vmatpush2.msra.mxu0 %v2619
    %2684 = vmatprep.subr.mxu0 0.0
    %2685 = vmatpush2.msra.mxu0 %v2618
    %2686 = vmatprep.subr.mxu0 0.0
    %2687 = vmatpush2.msra.mxu0 %v2617
    %2688 = vmatprep.subr.mxu0 0.0
    %2689 = vmatpush2.msra.mxu0 %v2616
    %2690 = vmatprep.subr.mxu0 0.0
    %2691 = vmatpush2.msra.mxu0 %v2615
    %2692 = vmatprep.subr.mxu0 0.0
    %2693 = vmatpush2.msra.mxu0 %v2614
    %2694 = vmatprep.subr.mxu0 0.0
    %2695 = vmatpush2.msra.mxu0 %v2613
    %2696 = vmatprep.subr.mxu0 0.0
    %2697 = vmatpush2.msra.mxu0 %v2612
    %2698 = vmatprep.subr.mxu0 0.0
    %2699 = vmatpush2.msra.mxu0 %v2611
    %2700 = vmatprep.subr.mxu0 0.0
    %2701 = vmatpush2.msra.mxu0 %v2610
    %2702 = vmatprep.subr.mxu0 0.0
    %2703 = vmatpush2.msra.mxu0 %v2609
    %2704 = vmatprep.subr.mxu0 0.0
    %2705 = vmatpush2.msra.mxu0 %v2608
    %2706 = vmatprep.subr.mxu0 0.0
    %2707 = vmatpush2.msra.mxu0 %v2607
    %2708 = vmatprep.mubr.f32.mxu0 %v2569
    %2709 = vmatmul.mubr.f32.gmra.mxu0 %v2567
    %v2710 = vpop.f32.mrf.mxu0
    %v2711 = vadd.f32 %v2643, %v2710
    %v2712 = vpop.f32.mrf.mxu0
    %2713 = vmatprep.mubr.f32.mxu0 %v2570
    %2714 = vmatmul.mubr.f32.gmra.mxu0 %v2568
    %v2715 = vpop.f32.mrf.mxu0
    %v2716 = vadd.f32 %v2643, %v2715
    %v2717 = vpop.f32.mrf.mxu0
    %2718 = vmatprep.mubr.f32.mxu0 %v2571
    %2719 = vmatmul.mubr.f32.gmra.mxu0 %v2569
    %v2720 = vpop.f32.mrf.mxu0
    %v2721 = vadd.f32 %v2643, %v2720
    %v2722 = vpop.f32.mrf.mxu0
    %2723 = vmatprep.mubr.f32.mxu0 %v2572
    %2724 = vmatmul.mubr.f32.gmra.mxu0 %v2570
    %v2725 = vpop.f32.mrf.mxu0
    %v2726 = vadd.f32 %v2643, %v2725
    %v2727 = vpop.f32.mrf.mxu0
    %2728 = vmatprep.mubr.f32.mxu0 %v2573
    %2729 = vmatmul.mubr.f32.gmra.mxu0 %v2571
    %v2730 = vpop.f32.mrf.mxu0
    %v2731 = vadd.f32 %v2643, %v2730
    %v2732 = vpop.f32.mrf.mxu0
    %2733 = vmatprep.mubr.f32.mxu0 %v2574
    %2734 = vmatmul.mubr.f32.gmra.mxu0 %v2572
    %v2735 = vpop.f32.mrf.mxu0
    %v2736 = vadd.f32 %v2643, %v2735
    %v2737 = vpop.f32.mrf.mxu0
    %2738 = vmatprep.mubr.f32.mxu0 %v2575
    %2739 = vmatmul.mubr.f32.gmra.mxu0 %v2573
    %v2740 = vpop.f32.mrf.mxu0
    %v2741 = vadd.f32 %v2643, %v2740
    %v2742 = vpop.f32.mrf.mxu0
    %2743 = vmatprep.mubr.f32.mxu0 %v2576
    %2744 = vmatmul.mubr.f32.gmra.mxu0 %v2574
    %v2745 = vpop.f32.mrf.mxu0
    %v2746 = vadd.f32 %v2643, %v2745
    %v2747 = vpop.f32.mrf.mxu0
    %2748 = vmatprep.mubr.f32.mxu0 %v2577
    %2749 = vmatmul.mubr.f32.gmra.mxu0 %v2575
    %v2750 = vpop.f32.mrf.mxu0
    %v2751 = vadd.f32 %v2643, %v2750
    %v2752 = vpop.f32.mrf.mxu0
    %2753 = vmatprep.mubr.f32.mxu0 %v2578
    %2754 = vmatmul.mubr.f32.gmra.mxu0 %v2576
    %v2755 = vpop.f32.mrf.mxu0
    %v2756 = vadd.f32 %v2643, %v2755
    %v2757 = vpop.f32.mrf.mxu0
    %2758 = vmatprep.mubr.f32.mxu0 %v2579
    %2759 = vmatmul.mubr.f32.gmra.mxu0 %v2577
    %v2760 = vpop.f32.mrf.mxu0
    %v2761 = vadd.f32 %v2643, %v2760
    %v2762 = vpop.f32.mrf.mxu0
    %2763 = vmatprep.mubr.f32.mxu0 %v2580
    %2764 = vmatmul.mubr.f32.gmra.mxu0 %v2578
    %v2765 = vpop.f32.mrf.mxu0
    %v2766 = vadd.f32 %v2643, %v2765
    %v2767 = vpop.f32.mrf.mxu0
    %2768 = vmatprep.mubr.f32.mxu0 %v2581
    %2769 = vmatmul.mubr.f32.gmra.mxu0 %v2579
    %v2770 = vpop.f32.mrf.mxu0
    %v2771 = vadd.f32 %v2643, %v2770
    %v2772 = vpop.f32.mrf.mxu0
    %2773 = vmatprep.mubr.f32.mxu0 %v2582
    %2774 = vmatmul.mubr.f32.gmra.mxu0 %v2580
    %v2775 = vpop.f32.mrf.mxu0
    %v2776 = vadd.f32 %v2643, %v2775
    %v2777 = vpop.f32.mrf.mxu0
    %2778 = vmatprep.mubr.f32.mxu0 %v2584
    %2779 = vmatmul.mubr.f32.gmra.mxu0 %v2581
    %v2780 = vpop.f32.mrf.mxu0
    %v2781 = vadd.f32 %v2643, %v2780
    %v2782 = vpop.f32.mrf.mxu0
    %2783 = vmatprep.mubr.f32.mxu0 %v2585
    %2784 = vmatmul.mubr.f32.gmra.mxu0 %v2582
    %v2785 = vpop.f32.mrf.mxu0
    %v2786 = vadd.f32 %v2643, %v2785
    %v2787 = vpop.f32.mrf.mxu0
    %2788 = vmatprep.mubr.f32.mxu0 %v2586
    %2789 = vmatmul.mubr.f32.gmra.mxu0 %v2583
    %v2790 = vpop.f32.mrf.mxu0
    %v2791 = vadd.f32 %v2643, %v2790
    %v2792 = vpop.f32.mrf.mxu0
    %2793 = vdwg.mxu0
    %2794 = vmatprep.subr.mxu0 0.0
    %2795 = vmatpush1.msra.mxu0 %v2638
    %2796 = vmatprep.subr.mxu0 0.0
    %2797 = vmatpush1.msra.mxu0 %v2637
    %2798 = vmatprep.subr.mxu0 0.0
    %2799 = vmatpush1.msra.mxu0 %v2636
    %2800 = vmatprep.subr.mxu0 0.0
    %2801 = vmatpush1.msra.mxu0 %v2635
    %2802 = vmatprep.subr.mxu0 0.0
    %2803 = vmatpush1.msra.mxu0 %v2634
    %2804 = vmatprep.subr.mxu0 0.0
    %2805 = vmatpush1.msra.mxu0 %v2633
    %2806 = vmatprep.subr.mxu0 0.0
    %2807 = vmatpush1.msra.mxu0 %v2632
    %2808 = vmatprep.subr.mxu0 0.0
    %2809 = vmatpush1.msra.mxu0 %v2631
    %2810 = vmatprep.subr.mxu0 0.0
    %2811 = vmatpush1.msra.mxu0 %v2630
    %2812 = vmatprep.subr.mxu0 0.0
    %2813 = vmatpush1.msra.mxu0 %v2629
    %2814 = vmatprep.subr.mxu0 0.0
    %2815 = vmatpush1.msra.mxu0 %v2628
    %2816 = vmatprep.subr.mxu0 0.0
    %2817 = vmatpush1.msra.mxu0 %v2627
    %2818 = vmatprep.subr.mxu0 0.0
    %2819 = vmatpush1.msra.mxu0 %v2626
    %2820 = vmatprep.subr.mxu0 0.0
    %2821 = vmatpush1.msra.mxu0 %v2625
    %2822 = vmatprep.subr.mxu0 0.0
    %2823 = vmatpush1.msra.mxu0 %v2624
    %2824 = vmatprep.subr.mxu0 0.0
    %2825 = vmatpush1.msra.mxu0 %v2623
    %2826 = vmatprep.subr.mxu0 0.0
    %2827 = vmatpush2.msra.mxu0 0.0
    %2828 = vmatprep.subr.mxu0 0.0
    %2829 = vmatpush2.msra.mxu0 0.0
    %2830 = vmatprep.subr.mxu0 0.0
    %2831 = vmatpush2.msra.mxu0 0.0
    %2832 = vmatprep.subr.mxu0 0.0
    %2833 = vmatpush2.msra.mxu0 0.0
    %2834 = vmatprep.subr.mxu0 0.0
    %2835 = vmatpush2.msra.mxu0 0.0
    %2836 = vmatprep.subr.mxu0 0.0
    %2837 = vmatpush2.msra.mxu0 0.0
    %2838 = vmatprep.subr.mxu0 0.0
    %2839 = vmatpush2.msra.mxu0 0.0
    %2840 = vmatprep.subr.mxu0 0.0
    %2841 = vmatpush2.msra.mxu0 0.0
    %2842 = vmatprep.subr.mxu0 0.0
    %2843 = vmatpush2.msra.mxu0 0.0
    %2844 = vmatprep.subr.mxu0 0.0
    %2845 = vmatpush2.msra.mxu0 0.0
    %2846 = vmatprep.subr.mxu0 0.0
    %2847 = vmatpush2.msra.mxu0 0.0
    %2848 = vmatprep.subr.mxu0 0.0
    %2849 = vmatpush2.msra.mxu0 0.0
    %2850 = vmatprep.subr.mxu0 0.0
    %2851 = vmatpush2.msra.mxu0 0.0
    %2852 = vmatprep.subr.mxu0 0.0
    %2853 = vmatpush2.msra.mxu0 0.0
    %2854 = vmatprep.subr.mxu0 0.0
    %2855 = vmatpush2.msra.mxu0 0.0
    %2856 = vmatprep.subr.mxu0 0.0
    %2857 = vmatpush2.msra.mxu0 0.0
    %2858 = vmatprep.mubr.f32.mxu0 0.0
    %2859 = vmatmul.mubr.f32.gmra.mxu0 %v2571
    %v2860 = vpop.f32.mrf.mxu0
    %v2861 = vadd.f32 %v2711, %v2860
    %v2862 = vpop.f32.mrf.mxu0
    %2863 = vmatprep.mubr.f32.mxu0 0.0
    %2864 = vmatmul.mubr.f32.gmra.mxu0 %v2572
    %v2865 = vpop.f32.mrf.mxu0
    %v2866 = vadd.f32 %v2716, %v2865
    %v2867 = vpop.f32.mrf.mxu0
    %2868 = vmatprep.mubr.f32.mxu0 0.0
    %2869 = vmatmul.mubr.f32.gmra.mxu0 %v2573
    %v2870 = vpop.f32.mrf.mxu0
    %v2871 = vadd.f32 %v2721, %v2870
    %v2872 = vpop.f32.mrf.mxu0
    %2873 = vmatprep.mubr.f32.mxu0 0.0
    %2874 = vmatmul.mubr.f32.gmra.mxu0 %v2574
    %v2875 = vpop.f32.mrf.mxu0
    %v2876 = vadd.f32 %v2726, %v2875
    %v2877 = vpop.f32.mrf.mxu0
    %2878 = vmatprep.mubr.f32.mxu0 0.0
    %2879 = vmatmul.mubr.f32.gmra.mxu0 %v2575
    %v2880 = vpop.f32.mrf.mxu0
    %v2881 = vadd.f32 %v2731, %v2880
    %v2882 = vpop.f32.mrf.mxu0
    %2883 = vmatprep.mubr.f32.mxu0 0.0
    %2884 = vmatmul.mubr.f32.gmra.mxu0 %v2576
    %v2885 = vpop.f32.mrf.mxu0
    %v2886 = vadd.f32 %v2736, %v2885
    %v2887 = vpop.f32.mrf.mxu0
    %2888 = vmatprep.mubr.f32.mxu0 0.0
    %2889 = vmatmul.mubr.f32.gmra.mxu0 %v2577
    %v2890 = vpop.f32.mrf.mxu0
    %v2891 = vadd.f32 %v2741, %v2890
    %v2892 = vpop.f32.mrf.mxu0
    %2893 = vmatprep.mubr.f32.mxu0 0.0
    %2894 = vmatmul.mubr.f32.gmra.mxu0 %v2578
    %v2895 = vpop.f32.mrf.mxu0
    %v2896 = vadd.f32 %v2746, %v2895
    %v2897 = vpop.f32.mrf.mxu0
    %2898 = vmatprep.mubr.f32.mxu0 0.0
    %2899 = vmatmul.mubr.f32.gmra.mxu0 %v2579
    %v2900 = vpop.f32.mrf.mxu0
    %v2901 = vadd.f32 %v2751, %v2900
    %v2902 = vpop.f32.mrf.mxu0
    %2903 = vmatprep.mubr.f32.mxu0 0.0
    %2904 = vmatmul.mubr.f32.gmra.mxu0 %v2580
    %v2905 = vpop.f32.mrf.mxu0
    %v2906 = vadd.f32 %v2756, %v2905
    %v2907 = vpop.f32.mrf.mxu0
    %2908 = vmatprep.mubr.f32.mxu0 0.0
    %2909 = vmatmul.mubr.f32.gmra.mxu0 %v2581
    %v2910 = vpop.f32.mrf.mxu0
    %v2911 = vadd.f32 %v2761, %v2910
    %v2912 = vpop.f32.mrf.mxu0
    %2913 = vmatprep.mubr.f32.mxu0 0.0
    %2914 = vmatmul.mubr.f32.gmra.mxu0 %v2582
    %v2915 = vpop.f32.mrf.mxu0
    %v2916 = vadd.f32 %v2766, %v2915
    %v2917 = vpop.f32.mrf.mxu0
    %2918 = vmatprep.mubr.f32.mxu0 0.0
    %2919 = vmatmul.mubr.f32.gmra.mxu0 %v2584
    %v2920 = vpop.f32.mrf.mxu0
    %v2921 = vadd.f32 %v2771, %v2920
    %v2922 = vpop.f32.mrf.mxu0
    %2923 = vmatprep.mubr.f32.mxu0 0.0
    %2924 = vmatmul.mubr.f32.gmra.mxu0 %v2585
    %v2925 = vpop.f32.mrf.mxu0
    %v2926 = vadd.f32 %v2776, %v2925
    %v2927 = vpop.f32.mrf.mxu0
    %2928 = vmatprep.mubr.f32.mxu0 0.0
    %2929 = vmatmul.mubr.f32.gmra.mxu0 %v2587
    %v2930 = vpop.f32.mrf.mxu0
    %v2931 = vadd.f32 %v2781, %v2930
    %v2932 = vpop.f32.mrf.mxu0
    %2933 = vmatprep.mubr.f32.mxu0 0.0
    %2934 = vmatmul.mubr.f32.gmra.mxu0 %v2588
    %v2935 = vpop.f32.mrf.mxu0
    %v2936 = vadd.f32 %v2786, %v2935
    %v2937 = vpop.f32.mrf.mxu0
    %2938 = vmatprep.mubr.f32.mxu0 0.0
    %2939 = vmatmul.mubr.f32.gmra.mxu0 %v2589
    %v2940 = vpop.f32.mrf.mxu0
    %v2941 = vadd.f32 %v2791, %v2940
    %v2942 = vpop.f32.mrf.mxu0
    %2943 = vdwg.mxu0
    %v2944 = vmax.f32 %v2861, 0.0
    %v2945 = vmax.f32 %v2866, 0.0
    %v2946 = vmax.f32 %v2871, 0.0
    %v2947 = vmax.f32 %v2876, 0.0
    %v2948 = vmax.f32 %v2881, 0.0
    %v2949 = vmax.f32 %v2886, 0.0
    %v2950 = vmax.f32 %v2891, 0.0
    %v2951 = vmax.f32 %v2896, 0.0
    %v2952 = vmax.f32 %v2901, 0.0
    %v2953 = vmax.f32 %v2906, 0.0
    %v2954 = vmax.f32 %v2911, 0.0
    %v2955 = vmax.f32 %v2916, 0.0
    %v2956 = vmax.f32 %v2921, 0.0
    %v2957 = vmax.f32 %v2926, 0.0
    %v2958 = vmax.f32 %v2931, 0.0
    %v2959 = vmax.f32 %v2936, 0.0
    %v2960 = vmax.f32 %v2941, 0.0
    %2961 = vst [vmem:[#allocation2 + $0x20] sm:$0xff] %v2944
    %2962 = vst [vmem:[#allocation2 + $0x28] sm:$0xff] %v2945
    %2963 = vst [vmem:[#allocation2 + $0x30] sm:$0xff] %v2946
    %2964 = vst [vmem:[#allocation2 + $0x38] sm:$0xff] %v2947
    %2965 = vst [vmem:[#allocation2 + $0x40] sm:$0xff] %v2948
    %2966 = vst [vmem:[#allocation2 + $0x48] sm:$0xff] %v2949
    %2967 = vst [vmem:[#allocation2 + $0x50] sm:$0xff] %v2950
    %2968 = vst [vmem:[#allocation2 + $0x58] sm:$0xff] %v2951
    %2969 = vst [vmem:[#allocation2 + $0x60] sm:$0xff] %v2952
    %2970 = vst [vmem:[#allocation2 + $0x68] sm:$0xff] %v2953
    %2971 = vst [vmem:[#allocation2 + $0x70] sm:$0xff] %v2954
    %2972 = vst [vmem:[#allocation2 + $0x78] sm:$0xff] %v2955
    %2973 = vst [vmem:[#allocation2 + $0x80] sm:$0xff] %v2956
    %2974 = vst [vmem:[#allocation2 + $0x88] sm:$0xff] %v2957
    %2975 = vst [vmem:[#allocation2 + $0x90] sm:$0xff] %v2958
    %2976 = vst [vmem:[#allocation2 + $0x98] sm:$0xff] %v2959
    %2977 = vst [vmem:[#allocation2 + $0xa0] sm:$0xf] %v2960
    %v2978 = vld [vmem:[#allocation8] sm:$0xff]
    %v2979 = vld [vmem:[#allocation8 + $0x8] sm:$0xff]
    %v2980 = vld [vmem:[#allocation8 + $0x10] sm:$0xff]
    %v2981 = vld [vmem:[#allocation8 + $0x18] sm:$0xff]
    %v2982 = vld [vmem:[#allocation8 + $0x20] sm:$0xff]
    %v2983 = vld [vmem:[#allocation8 + $0x28] sm:$0xff]
    %v2984 = vld [vmem:[#allocation8 + $0x30] sm:$0xff]
    %v2985 = vld [vmem:[#allocation8 + $0x38] sm:$0xff]
    %v2986 = vld [vmem:[#allocation2 + $0x20] sm:$0xff]
    %v2987 = vld [vmem:[#allocation2 + $0x28] sm:$0xff]
    %v2988 = vld [vmem:[#allocation2 + $0x30] sm:$0xff]
    %v2989 = vld [vmem:[#allocation2 + $0x38] sm:$0xff]
    %v2990 = vld [vmem:[#allocation2 + $0x40] sm:$0xff]
    %v2991 = vld [vmem:[#allocation2 + $0x48] sm:$0xff]
    %v2992 = vld [vmem:[#allocation2 + $0x50] sm:$0xff]
    %v2993 = vld [vmem:[#allocation2 + $0x58] sm:$0xff]
    %v2994 = vld [vmem:[#allocation2 + $0x60] sm:$0xff]
    %v2995 = vld [vmem:[#allocation2 + $0x68] sm:$0xff]
    %v2996 = vld [vmem:[#allocation2 + $0x70] sm:$0xff]
    %v2997 = vld [vmem:[#allocation2 + $0x78] sm:$0xff]
    %v2998 = vld [vmem:[#allocation2 + $0x80] sm:$0xff]
    %v2999 = vld [vmem:[#allocation2 + $0x88] sm:$0xff]
    %v3000 = vld [vmem:[#allocation2 + $0x90] sm:$0xff]
    %v3001 = vld [vmem:[#allocation2 + $0x98] sm:$0xff]
    %v3002 = vld [vmem:[#allocation2 + $0xa0] sm:$0xf]
    %v3003 = vld [vmem:[%s5] sm:$0xff]
    %v3004 = vld [vmem:[%s5 + $0x8] sm:$0xff]
    %v3005 = vld [vmem:[%s5 + $0x10] sm:$0xff]
    %v3006 = vld [vmem:[%s5 + $0x18] sm:$0xff]
    %3008 = vset.pattern.permute.xlu0 0
    %3009 = vperm.xlu0 %3008, %v3003
    %v3010 = vpop.permute.xlu0 %3009
    %3013 = vset.pattern.permute.xlu0 0
    %3014 = vperm.xlu0 %3013, %v3004
    %v3015 = vpop.permute.xlu0 %3014
    %3018 = vset.pattern.permute.xlu0 0
    %3019 = vperm.xlu0 %3018, %v3005
    %v3020 = vpop.permute.xlu0 %3019
    %3023 = vset.pattern.permute.xlu0 0
    %3024 = vperm.xlu0 %3023, %v3006
    %v3025 = vpop.permute.xlu0 %3024
    %vm3027 = vcmask 31744
    %v3029 = vsel %vm3027, %v2979, 0
    %v3032 = vsel %vm3027, %v2981, 0
    %v3035 = vsel %vm3027, %v2983, 0
    %v3038 = vsel %vm3027, %v2985, 0
    %vm3040 = vcmask 1043456
    %v3042 = vsel %vm3040, %v3002, 0
    %3044 = vmatprep.subr.mxu0 0.0
    %3045 = vmatpush1.msra.mxu0 %v3001
    %3046 = vmatprep.subr.mxu0 0.0
    %3047 = vmatpush1.msra.mxu0 %v3000
    %3048 = vmatprep.subr.mxu0 0.0
    %3049 = vmatpush1.msra.mxu0 %v2999
    %3050 = vmatprep.subr.mxu0 0.0
    %3051 = vmatpush1.msra.mxu0 %v2998
    %3052 = vmatprep.subr.mxu0 0.0
    %3053 = vmatpush1.msra.mxu0 %v2997
    %3054 = vmatprep.subr.mxu0 0.0
    %3055 = vmatpush1.msra.mxu0 %v2996
    %3056 = vmatprep.subr.mxu0 0.0
    %3057 = vmatpush1.msra.mxu0 %v2995
    %3058 = vmatprep.subr.mxu0 0.0
    %3059 = vmatpush1.msra.mxu0 %v2994
    %3060 = vmatprep.subr.mxu0 0.0
    %3061 = vmatpush1.msra.mxu0 %v2993
    %3062 = vmatprep.subr.mxu0 0.0
    %3063 = vmatpush1.msra.mxu0 %v2992
    %3064 = vmatprep.subr.mxu0 0.0
    %3065 = vmatpush1.msra.mxu0 %v2991
    %3066 = vmatprep.subr.mxu0 0.0
    %3067 = vmatpush1.msra.mxu0 %v2990
    %3068 = vmatprep.subr.mxu0 0.0
    %3069 = vmatpush1.msra.mxu0 %v2989
    %3070 = vmatprep.subr.mxu0 0.0
    %3071 = vmatpush1.msra.mxu0 %v2988
    %3072 = vmatprep.subr.mxu0 0.0
    %3073 = vmatpush1.msra.mxu0 %v2987
    %3074 = vmatprep.subr.mxu0 0.0
    %3075 = vmatpush1.msra.mxu0 %v2986
    %3076 = vmatprep.subr.mxu0 0.0
    %3077 = vmatpush2.msra.mxu0 0.0
    %3078 = vmatprep.subr.mxu0 0.0
    %3079 = vmatpush2.msra.mxu0 0.0
    %3080 = vmatprep.subr.mxu0 0.0
    %3081 = vmatpush2.msra.mxu0 0.0
    %3082 = vmatprep.subr.mxu0 0.0
    %3083 = vmatpush2.msra.mxu0 0.0
    %3084 = vmatprep.subr.mxu0 0.0
    %3085 = vmatpush2.msra.mxu0 0.0
    %3086 = vmatprep.subr.mxu0 0.0
    %3087 = vmatpush2.msra.mxu0 0.0
    %3088 = vmatprep.subr.mxu0 0.0
    %3089 = vmatpush2.msra.mxu0 0.0
    %3090 = vmatprep.subr.mxu0 0.0
    %3091 = vmatpush2.msra.mxu0 0.0
    %3092 = vmatprep.subr.mxu0 0.0
    %3093 = vmatpush2.msra.mxu0 0.0
    %3094 = vmatprep.subr.mxu0 0.0
    %3095 = vmatpush2.msra.mxu0 0.0
    %3096 = vmatprep.subr.mxu0 0.0
    %3097 = vmatpush2.msra.mxu0 0.0
    %3098 = vmatprep.subr.mxu0 0.0
    %3099 = vmatpush2.msra.mxu0 0.0
    %3100 = vmatprep.subr.mxu0 0.0
    %3101 = vmatpush2.msra.mxu0 0.0
    %3102 = vmatprep.subr.mxu0 0.0
    %3103 = vmatpush2.msra.mxu0 0.0
    %3104 = vmatprep.subr.mxu0 0.0
    %3105 = vmatpush2.msra.mxu0 0.0
    %3106 = vmatprep.subr.mxu0 0.0
    %3107 = vmatpush2.msra.mxu0 %v3042
    %3108 = vmatprep.mubr.f32.mxu0 %v3029
    %3109 = vmatmul.mubr.f32.gmra.mxu0 %v2978
    %v3110 = vpop.f32.mrf.mxu0
    %v3111 = vadd.f32 %v3010, %v3110
    %v3112 = vpop.f32.mrf.mxu0
    %3113 = vmatprep.mubr.f32.mxu0 %v3032
    %3114 = vmatmul.mubr.f32.gmra.mxu0 %v2980
    %v3115 = vpop.f32.mrf.mxu0
    %v3116 = vadd.f32 %v3015, %v3115
    %v3117 = vpop.f32.mrf.mxu0
    %3118 = vmatprep.mubr.f32.mxu0 %v3035
    %3119 = vmatmul.mubr.f32.gmra.mxu0 %v2982
    %v3120 = vpop.f32.mrf.mxu0
    %v3121 = vadd.f32 %v3020, %v3120
    %v3122 = vpop.f32.mrf.mxu0
    %3123 = vmatprep.mubr.f32.mxu0 %v3038
    %3124 = vmatmul.mubr.f32.gmra.mxu0 %v2984
    %v3125 = vpop.f32.mrf.mxu0
    %v3126 = vadd.f32 %v3025, %v3125
    %v3127 = vpop.f32.mrf.mxu0
    %3128 = vdwg.mxu0
    %v3129 = vadd.f32 %v3111, %v3116
    %v3130 = vadd.f32 %v3129, %v3121
    %v3131 = vadd.f32 %v3130, %v3126
    %v3132 = vrot.slane %v3131, 4
    %v3133 = vadd.f32 %v3131, %v3132
    %v3134 = vrot.slane %v3133, 2
    %v3135 = vadd.f32 %v3133, %v3134
    %v3136 = vrot.slane %v3135, 1
    %v3137 = vadd.f32 %v3135, %v3136
    %v3138 = vmul.f32 %v3111, %v3111
    %v3139 = vmul.f32 %v3116, %v3116
    %v3140 = vmul.f32 %v3121, %v3121
    %v3141 = vmul.f32 %v3126, %v3126
    %v3142 = vadd.f32 %v3138, %v3139
    %v3143 = vadd.f32 %v3142, %v3140
    %v3144 = vadd.f32 %v3143, %v3141
    %v3145 = vrot.slane %v3144, 4
    %v3146 = vadd.f32 %v3144, %v3145
    %v3147 = vrot.slane %v3146, 2
    %v3148 = vadd.f32 %v3146, %v3147
    %v3149 = vrot.slane %v3148, 1
    %v3150 = vadd.f32 %v3148, %v3149
    %v3151 = vld [vmem:[%s10] sm:$0xff]
    %v3152 = vld [vmem:[%s10 + $0x8] sm:$0xff]
    %v3153 = vld [vmem:[%s10 + $0x10] sm:$0xff]
    %v3154 = vld [vmem:[%s10 + $0x18] sm:$0xff]
    %v3155 = vld [vmem:[%s10 + $0x20] sm:$0xff]
    %v3156 = vld [vmem:[%s10 + $0x28] sm:$0xff]
    %v3157 = vld [vmem:[%s10 + $0x30] sm:$0xff]
    %v3158 = vld [vmem:[%s10 + $0x38] sm:$0xff]
    %v3159 = vld [vmem:[%s10 + $0x40] sm:$0xff]
    %v3160 = vld [vmem:[%s10 + $0x48] sm:$0xff]
    %v3161 = vld [vmem:[%s10 + $0x50] sm:$0xff]
    %v3162 = vld [vmem:[%s10 + $0x58] sm:$0xff]
    %v3163 = vld [vmem:[%s10 + $0x60] sm:$0xff]
    %v3164 = vld [vmem:[%s10 + $0x68] sm:$0xff]
    %v3165 = vld [vmem:[%s10 + $0x70] sm:$0xff]
    %v3166 = vld [vmem:[%s10 + $0x78] sm:$0xff]
    %3167 = vmatprep.subr.mxu0 0.0
    %3168 = vmatpush1.msra.mxu0 %v3166
    %3169 = vmatprep.subr.mxu0 0.0
    %3170 = vmatpush1.msra.mxu0 %v3165
    %3171 = vmatprep.subr.mxu0 0.0
    %3172 = vmatpush1.msra.mxu0 %v3164
    %3173 = vmatprep.subr.mxu0 0.0
    %3174 = vmatpush1.msra.mxu0 %v3163
    %3175 = vmatprep.subr.mxu0 0.0
    %3176 = vmatpush1.msra.mxu0 %v3162
    %3177 = vmatprep.subr.mxu0 0.0
    %3178 = vmatpush1.msra.mxu0 %v3161
    %3179 = vmatprep.subr.mxu0 0.0
    %3180 = vmatpush1.msra.mxu0 %v3160
    %3181 = vmatprep.subr.mxu0 0.0
    %3182 = vmatpush1.msra.mxu0 %v3159
    %3183 = vmatprep.subr.mxu0 0.0
    %3184 = vmatpush1.msra.mxu0 %v3158
    %3185 = vmatprep.subr.mxu0 0.0
    %3186 = vmatpush1.msra.mxu0 %v3157
    %3187 = vmatprep.subr.mxu0 0.0
    %3188 = vmatpush1.msra.mxu0 %v3156
    %3189 = vmatprep.subr.mxu0 0.0
    %3190 = vmatpush1.msra.mxu0 %v3155
    %3191 = vmatprep.subr.mxu0 0.0
    %3192 = vmatpush1.msra.mxu0 %v3154
    %3193 = vmatprep.subr.mxu0 0.0
    %3194 = vmatpush1.msra.mxu0 %v3153
    %3195 = vmatprep.subr.mxu0 0.0
    %3196 = vmatpush1.msra.mxu0 %v3152
    %3197 = vmatprep.subr.mxu0 0.0
    %3198 = vmatpush1.msra.mxu0 %v3151
    %3199 = vmatprep.subr.mxu0 0.0
    %3200 = vmatpush2.msra.mxu0 0.0
    %3201 = vmatprep.subr.mxu0 0.0
    %3202 = vmatpush2.msra.mxu0 0.0
    %3203 = vmatprep.subr.mxu0 0.0
    %3204 = vmatpush2.msra.mxu0 0.0
    %3205 = vmatprep.subr.mxu0 0.0
    %3206 = vmatpush2.msra.mxu0 0.0
    %3207 = vmatprep.subr.mxu0 0.0
    %3208 = vmatpush2.msra.mxu0 0.0
    %3209 = vmatprep.subr.mxu0 0.0
    %3210 = vmatpush2.msra.mxu0 0.0
    %3211 = vmatprep.subr.mxu0 0.0
    %3212 = vmatpush2.msra.mxu0 0.0
    %3213 = vmatprep.subr.mxu0 0.0
    %3214 = vmatpush2.msra.mxu0 0.0
    %3215 = vmatprep.subr.mxu0 0.0
    %3216 = vmatpush2.msra.mxu0 0.0
    %3217 = vmatprep.subr.mxu0 0.0
    %3218 = vmatpush2.msra.mxu0 0.0
    %3219 = vmatprep.subr.mxu0 0.0
    %3220 = vmatpush2.msra.mxu0 0.0
    %3221 = vmatprep.subr.mxu0 0.0
    %3222 = vmatpush2.msra.mxu0 0.0
    %3223 = vmatprep.subr.mxu0 0.0
    %3224 = vmatpush2.msra.mxu0 0.0
    %3225 = vmatprep.subr.mxu0 0.0
    %3226 = vmatpush2.msra.mxu0 0.0
    %3227 = vmatprep.subr.mxu0 0.0
    %3228 = vmatpush2.msra.mxu0 0.0
    %3229 = vmatprep.subr.mxu0 0.0
    %3230 = vmatpush2.msra.mxu0 0.0
    %3231 = vmatprep.mubr.f32.mxu0 0.0
    %3232 = vmatmul.mubr.f32.gmra.mxu0 %v3137
    %v3233 = vpop.f32.mrf.mxu0
    %v3234 = vadd.f32 0.0, %v3233
    %v3235 = vpop.f32.mrf.mxu0
    %3236 = vdwg.mxu0
    %3237 = vmatprep.subr.mxu0 0.0
    %3238 = vmatpush1.msra.mxu0 %v3166
    %3239 = vmatprep.subr.mxu0 0.0
    %3240 = vmatpush1.msra.mxu0 %v3165
    %3241 = vmatprep.subr.mxu0 0.0
    %3242 = vmatpush1.msra.mxu0 %v3164
    %3243 = vmatprep.subr.mxu0 0.0
    %3244 = vmatpush1.msra.mxu0 %v3163
    %3245 = vmatprep.subr.mxu0 0.0
    %3246 = vmatpush1.msra.mxu0 %v3162
    %3247 = vmatprep.subr.mxu0 0.0
    %3248 = vmatpush1.msra.mxu0 %v3161
    %3249 = vmatprep.subr.mxu0 0.0
    %3250 = vmatpush1.msra.mxu0 %v3160
    %3251 = vmatprep.subr.mxu0 0.0
    %3252 = vmatpush1.msra.mxu0 %v3159
    %3253 = vmatprep.subr.mxu0 0.0
    %3254 = vmatpush1.msra.mxu0 %v3158
    %3255 = vmatprep.subr.mxu0 0.0
    %3256 = vmatpush1.msra.mxu0 %v3157
    %3257 = vmatprep.subr.mxu0 0.0
    %3258 = vmatpush1.msra.mxu0 %v3156
    %3259 = vmatprep.subr.mxu0 0.0
    %3260 = vmatpush1.msra.mxu0 %v3155
    %3261 = vmatprep.subr.mxu0 0.0
    %3262 = vmatpush1.msra.mxu0 %v3154
    %3263 = vmatprep.subr.mxu0 0.0
    %3264 = vmatpush1.msra.mxu0 %v3153
    %3265 = vmatprep.subr.mxu0 0.0
    %3266 = vmatpush1.msra.mxu0 %v3152
    %3267 = vmatprep.subr.mxu0 0.0
    %3268 = vmatpush1.msra.mxu0 %v3151
    %3269 = vmatprep.subr.mxu0 0.0
    %3270 = vmatpush2.msra.mxu0 0.0
    %3271 = vmatprep.subr.mxu0 0.0
    %3272 = vmatpush2.msra.mxu0 0.0
    %3273 = vmatprep.subr.mxu0 0.0
    %3274 = vmatpush2.msra.mxu0 0.0
    %3275 = vmatprep.subr.mxu0 0.0
    %3276 = vmatpush2.msra.mxu0 0.0
    %3277 = vmatprep.subr.mxu0 0.0
    %3278 = vmatpush2.msra.mxu0 0.0
    %3279 = vmatprep.subr.mxu0 0.0
    %3280 = vmatpush2.msra.mxu0 0.0
    %3281 = vmatprep.subr.mxu0 0.0
    %3282 = vmatpush2.msra.mxu0 0.0
    %3283 = vmatprep.subr.mxu0 0.0
    %3284 = vmatpush2.msra.mxu0 0.0
    %3285 = vmatprep.subr.mxu0 0.0
    %3286 = vmatpush2.msra.mxu0 0.0
    %3287 = vmatprep.subr.mxu0 0.0
    %3288 = vmatpush2.msra.mxu0 0.0
    %3289 = vmatprep.subr.mxu0 0.0
    %3290 = vmatpush2.msra.mxu0 0.0
    %3291 = vmatprep.subr.mxu0 0.0
    %3292 = vmatpush2.msra.mxu0 0.0
    %3293 = vmatprep.subr.mxu0 0.0
    %3294 = vmatpush2.msra.mxu0 0.0
    %3295 = vmatprep.subr.mxu0 0.0
    %3296 = vmatpush2.msra.mxu0 0.0
    %3297 = vmatprep.subr.mxu0 0.0
    %3298 = vmatpush2.msra.mxu0 0.0
    %3299 = vmatprep.subr.mxu0 0.0
    %3300 = vmatpush2.msra.mxu0 0.0
    %3301 = vmatprep.mubr.f32.mxu0 0.0
    %3302 = vmatmul.mubr.f32.gmra.mxu0 %v3150
    %v3303 = vpop.f32.mrf.mxu0
    %v3304 = vadd.f32 0.0, %v3303
    %v3305 = vpop.f32.mrf.mxu0
    %3306 = vdwg.mxu0
    %v3307 = vrcp.pop 384.0
    %v3308 = vmul.f32 %v3234, %v3307
    %v3309 = vmul.f32 %v3304, %v3307
    %v3310 = vmul.f32 %v3308, %v3308
    %v3311 = vsub.f32 %v3309, %v3310
    %v3312 = vadd.f32 %v3311, 1e-05
    %v3313 = vrsqrt.pop %v3312
    %v3314 = vld [vmem:[#allocation9] sm:$0x1]
    %v3315 = vmul.f32 %v3314, %v3313
    %v3316 = vld [vmem:[#allocation11] sm:$0x1]
    %v3317 = vmul.f32 %v3308, %v3315
    %v3318 = vsub.f32 %v3316, %v3317
    %v3319 = vld [vmem:[#allocation14] sm:$0xff]
    %vm3320 = vcmask 64512
    %v3322 = vsel %vm3320, %v3315, 0
    %3324 = vmatprep.subr.mxu0 0.0
    %3325 = vmatpush1.msra.mxu0 0.0
    %3326 = vmatprep.subr.mxu0 0.0
    %3327 = vmatpush1.msra.mxu0 0.0
    %3328 = vmatprep.subr.mxu0 0.0
    %3329 = vmatpush1.msra.mxu0 0.0
    %3330 = vmatprep.subr.mxu0 0.0
    %3331 = vmatpush1.msra.mxu0 0.0
    %3332 = vmatprep.subr.mxu0 0.0
    %3333 = vmatpush1.msra.mxu0 0.0
    %3334 = vmatprep.subr.mxu0 0.0
    %3335 = vmatpush1.msra.mxu0 0.0
    %3336 = vmatprep.subr.mxu0 0.0
    %3337 = vmatpush1.msra.mxu0 0.0
    %3338 = vmatprep.subr.mxu0 0.0
    %3339 = vmatpush1.msra.mxu0 0.0
    %3340 = vmatprep.subr.mxu0 0.0
    %3341 = vmatpush1.msra.mxu0 0.0
    %3342 = vmatprep.subr.mxu0 0.0
    %3343 = vmatpush1.msra.mxu0 0.0
    %3344 = vmatprep.subr.mxu0 0.0
    %3345 = vmatpush1.msra.mxu0 0.0
    %3346 = vmatprep.subr.mxu0 0.0
    %3347 = vmatpush1.msra.mxu0 0.0
    %3348 = vmatprep.subr.mxu0 0.0
    %3349 = vmatpush1.msra.mxu0 0.0
    %3350 = vmatprep.subr.mxu0 0.0
    %3351 = vmatpush1.msra.mxu0 0.0
    %3352 = vmatprep.subr.mxu0 0.0
    %3353 = vmatpush1.msra.mxu0 0.0
    %3354 = vmatprep.subr.mxu0 0.0
    %3355 = vmatpush1.msra.mxu0 %v3319
    %3356 = vmatprep.subr.mxu0 0.0
    %3357 = vmatpush2.msra.mxu0 0.0
    %3358 = vmatprep.subr.mxu0 0.0
    %3359 = vmatpush2.msra.mxu0 0.0
    %3360 = vmatprep.subr.mxu0 0.0
    %3361 = vmatpush2.msra.mxu0 0.0
    %3362 = vmatprep.subr.mxu0 0.0
    %3363 = vmatpush2.msra.mxu0 0.0
    %3364 = vmatprep.subr.mxu0 0.0
    %3365 = vmatpush2.msra.mxu0 0.0
    %3366 = vmatprep.subr.mxu0 0.0
    %3367 = vmatpush2.msra.mxu0 0.0
    %3368 = vmatprep.subr.mxu0 0.0
    %3369 = vmatpush2.msra.mxu0 0.0
    %3370 = vmatprep.subr.mxu0 0.0
    %3371 = vmatpush2.msra.mxu0 0.0
    %3372 = vmatprep.subr.mxu0 0.0
    %3373 = vmatpush2.msra.mxu0 0.0
    %3374 = vmatprep.subr.mxu0 0.0
    %3375 = vmatpush2.msra.mxu0 0.0
    %3376 = vmatprep.subr.mxu0 0.0
    %3377 = vmatpush2.msra.mxu0 0.0
    %3378 = vmatprep.subr.mxu0 0.0
    %3379 = vmatpush2.msra.mxu0 0.0
    %3380 = vmatprep.subr.mxu0 0.0
    %3381 = vmatpush2.msra.mxu0 0.0
    %3382 = vmatprep.subr.mxu0 0.0
    %3383 = vmatpush2.msra.mxu0 0.0
    %3384 = vmatprep.subr.mxu0 0.0
    %3385 = vmatpush2.msra.mxu0 0.0
    %3386 = vmatprep.subr.mxu0 0.0
    %3387 = vmatpush2.msra.mxu0 0.0
    %3388 = vmatprep.mubr.f32.mxu0 0.0
    %3389 = vmatmul.mubr.f32.gmra.mxu0 %v3322
    %v3390 = vpop.f32.mrf.mxu0
    %v3391 = vadd.f32 0.0, %v3390
    %v3392 = vpop.f32.mrf.mxu0
    %3393 = vdwg.mxu0
    %v3395 = vsel %vm3320, %v3318, 0
    %3397 = vmatprep.subr.mxu0 0.0
    %3398 = vmatpush1.msra.mxu0 0.0
    %3399 = vmatprep.subr.mxu0 0.0
    %3400 = vmatpush1.msra.mxu0 0.0
    %3401 = vmatprep.subr.mxu0 0.0
    %3402 = vmatpush1.msra.mxu0 0.0
    %3403 = vmatprep.subr.mxu0 0.0
    %3404 = vmatpush1.msra.mxu0 0.0
    %3405 = vmatprep.subr.mxu0 0.0
    %3406 = vmatpush1.msra.mxu0 0.0
    %3407 = vmatprep.subr.mxu0 0.0
    %3408 = vmatpush1.msra.mxu0 0.0
    %3409 = vmatprep.subr.mxu0 0.0
    %3410 = vmatpush1.msra.mxu0 0.0
    %3411 = vmatprep.subr.mxu0 0.0
    %3412 = vmatpush1.msra.mxu0 0.0
    %3413 = vmatprep.subr.mxu0 0.0
    %3414 = vmatpush1.msra.mxu0 0.0
    %3415 = vmatprep.subr.mxu0 0.0
    %3416 = vmatpush1.msra.mxu0 0.0
    %3417 = vmatprep.subr.mxu0 0.0
    %3418 = vmatpush1.msra.mxu0 0.0
    %3419 = vmatprep.subr.mxu0 0.0
    %3420 = vmatpush1.msra.mxu0 0.0
    %3421 = vmatprep.subr.mxu0 0.0
    %3422 = vmatpush1.msra.mxu0 0.0
    %3423 = vmatprep.subr.mxu0 0.0
    %3424 = vmatpush1.msra.mxu0 0.0
    %3425 = vmatprep.subr.mxu0 0.0
    %3426 = vmatpush1.msra.mxu0 0.0
    %3427 = vmatprep.subr.mxu0 0.0
    %3428 = vmatpush1.msra.mxu0 %v3319
    %3429 = vmatprep.subr.mxu0 0.0
    %3430 = vmatpush2.msra.mxu0 0.0
    %3431 = vmatprep.subr.mxu0 0.0
    %3432 = vmatpush2.msra.mxu0 0.0
    %3433 = vmatprep.subr.mxu0 0.0
    %3434 = vmatpush2.msra.mxu0 0.0
    %3435 = vmatprep.subr.mxu0 0.0
    %3436 = vmatpush2.msra.mxu0 0.0
    %3437 = vmatprep.subr.mxu0 0.0
    %3438 = vmatpush2.msra.mxu0 0.0
    %3439 = vmatprep.subr.mxu0 0.0
    %3440 = vmatpush2.msra.mxu0 0.0
    %3441 = vmatprep.subr.mxu0 0.0
    %3442 = vmatpush2.msra.mxu0 0.0
    %3443 = vmatprep.subr.mxu0 0.0
    %3444 = vmatpush2.msra.mxu0 0.0
    %3445 = vmatprep.subr.mxu0 0.0
    %3446 = vmatpush2.msra.mxu0 0.0
    %3447 = vmatprep.subr.mxu0 0.0
    %3448 = vmatpush2.msra.mxu0 0.0
    %3449 = vmatprep.subr.mxu0 0.0
    %3450 = vmatpush2.msra.mxu0 0.0
    %3451 = vmatprep.subr.mxu0 0.0
    %3452 = vmatpush2.msra.mxu0 0.0
    %3453 = vmatprep.subr.mxu0 0.0
    %3454 = vmatpush2.msra.mxu0 0.0
    %3455 = vmatprep.subr.mxu0 0.0
    %3456 = vmatpush2.msra.mxu0 0.0
    %3457 = vmatprep.subr.mxu0 0.0
    %3458 = vmatpush2.msra.mxu0 0.0
    %3459 = vmatprep.subr.mxu0 0.0
    %3460 = vmatpush2.msra.mxu0 0.0
    %3461 = vmatprep.mubr.f32.mxu0 0.0
    %3462 = vmatmul.mubr.f32.gmra.mxu0 %v3395
    %v3463 = vpop.f32.mrf.mxu0
    %v3464 = vadd.f32 0.0, %v3463
    %v3465 = vpop.f32.mrf.mxu0
    %3466 = vdwg.mxu0
    %v3467 = vlaneseq
    %v3468 = vshrl.u32 %v3467, 7
    %v3469 = vsub.s32 0, %v3468
    %v3470 = vrot.slane %v3391, %v3469
    %v3471 = vmul.f32 %v3111, %v3470
    %v3472 = vmul.f32 %v3116, %v3470
    %v3473 = vmul.f32 %v3121, %v3470
    %v3474 = vmul.f32 %v3126, %v3470
    %v3475 = vlaneseq
    %v3476 = vshrl.u32 %v3475, 7
    %v3477 = vsub.s32 0, %v3476
    %v3478 = vrot.slane %v3464, %v3477
    %v3479 = vadd.f32 %v3471, %v3478
    %v3480 = vadd.f32 %v3472, %v3478
    %v3481 = vadd.f32 %v3473, %v3478
    %v3482 = vadd.f32 %v3474, %v3478
    %v3483 = vxor.u32 %v3479, 2147483648
    %v3484 = vxor.u32 %v3480, 2147483648
    %v3485 = vxor.u32 %v3481, 2147483648
    %v3486 = vxor.u32 %v3482, 2147483648
    %v3487 = vmul.f32 %v3483, 1.442695
    %v3488 = vpow.pop %v3487
    %v3489 = vmul.f32 %v3484, 1.442695
    %v3490 = vpow.pop %v3489
    %v3491 = vmul.f32 %v3485, 1.442695
    %v3492 = vpow.pop %v3491
    %v3493 = vmul.f32 %v3486, 1.442695
    %v3494 = vpow.pop %v3493
    %v3495 = vadd.f32 %v3488, 1.0
    %v3496 = vadd.f32 %v3490, 1.0
    %v3497 = vadd.f32 %v3492, 1.0
    %v3498 = vadd.f32 %v3494, 1.0
    %v3499 = vrcp.pop %v3495
    %v3500 = vmul.f32 1.0, %v3499
    %v3501 = vrcp.pop %v3496
    %v3502 = vmul.f32 1.0, %v3501
    %v3503 = vrcp.pop %v3497
    %v3504 = vmul.f32 1.0, %v3503
    %v3505 = vrcp.pop %v3498
    %v3506 = vmul.f32 1.0, %v3505
    %v3507 = vld [vmem:[#allocation12] sm:$0xff]
    %v3508 = vld [vmem:[#allocation12 + $0x8] sm:$0xff]
    %v3509 = vld [vmem:[#allocation12 + $0x10] sm:$0xff]
    %v3510 = vld [vmem:[#allocation12 + $0x18] sm:$0xff]
    %v3511 = vmul.f32 %v3500, %v3507
    %v3512 = vmul.f32 %v3502, %v3508
    %v3513 = vmul.f32 %v3504, %v3509
    %v3514 = vmul.f32 %v3506, %v3510
    %v3515 = vadd.f32 %v3511, %v3512
    %v3516 = vadd.f32 %v3515, %v3513
    %v3517 = vadd.f32 %v3516, %v3514
    %v3518 = vrot.slane %v3517, 4
    %v3519 = vadd.f32 %v3517, %v3518
    %v3520 = vrot.slane %v3519, 2
    %v3521 = vadd.f32 %v3519, %v3520
    %v3522 = vrot.slane %v3521, 1
    %v3523 = vadd.f32 %v3521, %v3522
    %s3524 = scalar_lea.vmem [#allocation12], 32
    %v3525 = vld [vmem:[%s3524] sm:$0xff]
    %v3526 = vld [vmem:[%s3524 + $0x8] sm:$0xff]
    %v3527 = vld [vmem:[%s3524 + $0x10] sm:$0xff]
    %v3528 = vld [vmem:[%s3524 + $0x18] sm:$0xff]
    %v3529 = vmul.f32 %v3500, %v3525
    %v3530 = vmul.f32 %v3502, %v3526
    %v3531 = vmul.f32 %v3504, %v3527
    %v3532 = vmul.f32 %v3506, %v3528
    %v3533 = vadd.f32 %v3529, %v3530
    %v3534 = vadd.f32 %v3533, %v3531
    %v3535 = vadd.f32 %v3534, %v3532
    %v3536 = vrot.slane %v3535, 4
    %v3537 = vadd.f32 %v3535, %v3536
    %v3538 = vrot.slane %v3537, 2
    %v3539 = vadd.f32 %v3537, %v3538
    %v3540 = vrot.slane %v3539, 1
    %v3541 = vadd.f32 %v3539, %v3540
    %s3542 = scalar_lea.vmem [#allocation12], 64
    %v3543 = vld [vmem:[%s3542] sm:$0xff]
    %v3544 = vld [vmem:[%s3542 + $0x8] sm:$0xff]
    %v3545 = vld [vmem:[%s3542 + $0x10] sm:$0xff]
    %v3546 = vld [vmem:[%s3542 + $0x18] sm:$0xff]
    %v3547 = vmul.f32 %v3500, %v3543
    %v3548 = vmul.f32 %v3502, %v3544
    %v3549 = vmul.f32 %v3504, %v3545
    %v3550 = vmul.f32 %v3506, %v3546
    %v3551 = vadd.f32 %v3547, %v3548
    %v3552 = vadd.f32 %v3551, %v3549
    %v3553 = vadd.f32 %v3552, %v3550
    %v3554 = vrot.slane %v3553, 4
    %v3555 = vadd.f32 %v3553, %v3554
    %v3556 = vrot.slane %v3555, 2
    %v3557 = vadd.f32 %v3555, %v3556
    %v3558 = vrot.slane %v3557, 1
    %v3559 = vadd.f32 %v3557, %v3558
    %vm3560 = vcmask 1040384
    %v3561 = vsel %vm3560, %v3523, %v3541
    %vm3562 = vcmask 1041408
    %v3563 = vsel %vm3562, %v3561, %v3559
    %v3564 = vld [vmem:[%s12] sm:$0xff]
    %v3565 = vld [vmem:[%s12 + $0x8] sm:$0xff]
    %v3566 = vld [vmem:[%s12 + $0x10] sm:$0xff]
    %v3567 = vld [vmem:[%s12 + $0x18] sm:$0xff]
    %v3568 = vld [vmem:[%s12 + $0x20] sm:$0xff]
    %v3569 = vld [vmem:[%s12 + $0x28] sm:$0xff]
    %v3570 = vld [vmem:[%s12 + $0x30] sm:$0xff]
    %v3571 = vld [vmem:[%s12 + $0x38] sm:$0xff]
    %v3572 = vld [vmem:[%s12 + $0x40] sm:$0xff]
    %v3573 = vld [vmem:[%s12 + $0x48] sm:$0xff]
    %v3574 = vld [vmem:[%s12 + $0x50] sm:$0xff]
    %v3575 = vld [vmem:[%s12 + $0x58] sm:$0xff]
    %v3576 = vld [vmem:[%s12 + $0x60] sm:$0xff]
    %v3577 = vld [vmem:[%s12 + $0x68] sm:$0xff]
    %v3578 = vld [vmem:[%s12 + $0x70] sm:$0xff]
    %v3579 = vld [vmem:[%s12 + $0x78] sm:$0xff]
    %v3580 = vld [vmem:[%s9] sm:$0x7]
    %3582 = vset.pattern.permute.xlu0 0
    %3583 = vperm.xlu0 %3582, %v3580
    %v3584 = vpop.permute.xlu0 %3583
    %3586 = vmatprep.subr.mxu0 0.0
    %3587 = vmatpush1.msra.mxu0 %v3579
    %3588 = vmatprep.subr.mxu0 0.0
    %3589 = vmatpush1.msra.mxu0 %v3578
    %3590 = vmatprep.subr.mxu0 0.0
    %3591 = vmatpush1.msra.mxu0 %v3577
    %3592 = vmatprep.subr.mxu0 0.0
    %3593 = vmatpush1.msra.mxu0 %v3576
    %3594 = vmatprep.subr.mxu0 0.0
    %3595 = vmatpush1.msra.mxu0 %v3575
    %3596 = vmatprep.subr.mxu0 0.0
    %3597 = vmatpush1.msra.mxu0 %v3574
    %3598 = vmatprep.subr.mxu0 0.0
    %3599 = vmatpush1.msra.mxu0 %v3573
    %3600 = vmatprep.subr.mxu0 0.0
    %3601 = vmatpush1.msra.mxu0 %v3572
    %3602 = vmatprep.subr.mxu0 0.0
    %3603 = vmatpush1.msra.mxu0 %v3571
    %3604 = vmatprep.subr.mxu0 0.0
    %3605 = vmatpush1.msra.mxu0 %v3570
    %3606 = vmatprep.subr.mxu0 0.0
    %3607 = vmatpush1.msra.mxu0 %v3569
    %3608 = vmatprep.subr.mxu0 0.0
    %3609 = vmatpush1.msra.mxu0 %v3568
    %3610 = vmatprep.subr.mxu0 0.0
    %3611 = vmatpush1.msra.mxu0 %v3567
    %3612 = vmatprep.subr.mxu0 0.0
    %3613 = vmatpush1.msra.mxu0 %v3566
    %3614 = vmatprep.subr.mxu0 0.0
    %3615 = vmatpush1.msra.mxu0 %v3565
    %3616 = vmatprep.subr.mxu0 0.0
    %3617 = vmatpush1.msra.mxu0 %v3564
    %3618 = vmatprep.subr.mxu0 0.0
    %3619 = vmatpush2.msra.mxu0 0.0
    %3620 = vmatprep.subr.mxu0 0.0
    %3621 = vmatpush2.msra.mxu0 0.0
    %3622 = vmatprep.subr.mxu0 0.0
    %3623 = vmatpush2.msra.mxu0 0.0
    %3624 = vmatprep.subr.mxu0 0.0
    %3625 = vmatpush2.msra.mxu0 0.0
    %3626 = vmatprep.subr.mxu0 0.0
    %3627 = vmatpush2.msra.mxu0 0.0
    %3628 = vmatprep.subr.mxu0 0.0
    %3629 = vmatpush2.msra.mxu0 0.0
    %3630 = vmatprep.subr.mxu0 0.0
    %3631 = vmatpush2.msra.mxu0 0.0
    %3632 = vmatprep.subr.mxu0 0.0
    %3633 = vmatpush2.msra.mxu0 0.0
    %3634 = vmatprep.subr.mxu0 0.0
    %3635 = vmatpush2.msra.mxu0 0.0
    %3636 = vmatprep.subr.mxu0 0.0
    %3637 = vmatpush2.msra.mxu0 0.0
    %3638 = vmatprep.subr.mxu0 0.0
    %3639 = vmatpush2.msra.mxu0 0.0
    %3640 = vmatprep.subr.mxu0 0.0
    %3641 = vmatpush2.msra.mxu0 0.0
    %3642 = vmatprep.subr.mxu0 0.0
    %3643 = vmatpush2.msra.mxu0 0.0
    %3644 = vmatprep.subr.mxu0 0.0
    %3645 = vmatpush2.msra.mxu0 0.0
    %3646 = vmatprep.subr.mxu0 0.0
    %3647 = vmatpush2.msra.mxu0 0.0
    %3648 = vmatprep.subr.mxu0 0.0
    %3649 = vmatpush2.msra.mxu0 0.0
    %3650 = vmatprep.mubr.f32.mxu0 0.0
    %3651 = vmatmul.mubr.f32.gmra.mxu0 %v3563
    %v3652 = vpop.f32.mrf.mxu0
    %v3653 = vadd.f32 %v3584, %v3652
    %v3654 = vpop.f32.mrf.mxu0
    %3655 = vdwg.mxu0
    %vm3656 = vcmask 124928
    %3657 = vst.msk [vmem:[%s13] sm:$0x7] %vm3656, %v3653
    // Predicated region
    $region82: #{tree_cns_forward.1} parent=1 // pred_check
      _
    $region83: #{tree_cns_forward.1} parent=1 // pred_check_branch
      %3659 = sbr.rel (0) target = $region85
    $region84: #{tree_cns_forward.1} parent=1 // pred_region
      _
    $region85: #{tree_cns_forward.1} parent=1 // pred_fallthru
      _
    // Predicated region
    $region86: #{tree_cns_forward.1} parent=1 // pred_check
      _
    $region87: #{tree_cns_forward.1} parent=1 // pred_check_branch
      %3661 = sbr.rel (0) target = $region89
    $region88: #{tree_cns_forward.1} parent=1 // pred_region
      _
    $region89: #{tree_cns_forward.1} parent=1 // pred_fallthru
      _
    %3662 = vsyncpa [#allocation5], 1
    %3663 = vsyncpa [#allocation7], 1
    %3664 = vsyncpa [#allocation10], 1
    %3665 = vsyncpa [#allocation13], 1

</llo_original>
